<compile_context>
chip_gen: v7x
topology: tpu7x:2x2x1
jax: 0.10.0
libtpu: 0.0.40
codegen_flags: <defaults>
</compile_context>

<pallas_src>
import math

import jax
import jax.numpy as jnp
from jax.experimental import pallas as pl
from jax.experimental.pallas import tpu as pltpu


def _round_up(a: int, b: int) -> int:
    return ((a + b - 1) // b) * b


def _siren_kernel(x_ref, w_in_ref, w_sq_ref, w_img_ref, w_out_ref,
                  b_main_ref, b_img_ref, b_out_ref, out_ref):
    """Channels-first SIREN MLP on one row tile.

    x_ref     : (Cin, TM)    encoded positions (row tile, channels-first)
    w_in_ref  : (2, D, Cin)  [0] = 30*W0 (first SIREN layer, w0 folded in)
                             [1] = W4x  (skip half of layers1[0])
    w_sq_ref  : (8, D, D)    [W1, W2, W3, W4h, W5, W6, W7, W_fc_feature]
    w_img_ref : (D//2, D)    img_layers weight
    w_out_ref : (D//2, 1)    fc_img weight (stored as a column)
    b_main_ref: (D, 9)       biases of layers0[0..3], layers1[0..3], fc_feature
                             (column 0 already scaled by w0=30)
    b_img_ref : (D//2, 1)    img_layers bias
    b_out_ref : (1, 1)       fc_img bias
    out_ref   : (1, TM)      output density (lane-dense)

    Weights keep the PyTorch (out_dim, in_dim) layout, so every layer is
    simply  h_new = W @ h + b  with h of shape (D, TM).
    """
    f32 = jnp.float32
    x = x_ref[...]                                              # (Cin, TM)

    def dot(w, h):
        return jnp.dot(w, h, preferred_element_type=f32)

    # layers0[0] — first SIREN layer; w0=30 folded into weights/bias.
    h = jnp.sin(dot(w_in_ref[0], x) + b_main_ref[:, 0:1])       # (D, TM)
    # layers0[1..3]
    for i in range(3):
        h = jnp.sin(dot(w_sq_ref[i], h) + b_main_ref[:, i + 1:i + 2])
    # layers1[0] — cat([h, x], -1) expressed as a split matmul (no concat).
    h = jnp.sin(dot(w_sq_ref[3], h) + dot(w_in_ref[1], x) + b_main_ref[:, 4:5])
    # layers1[1..3]
    for i in range(4, 7):
        h = jnp.sin(dot(w_sq_ref[i], h) + b_main_ref[:, i + 1:i + 2])
    # fc_feature (plain Linear, no activation)
    feat = dot(w_sq_ref[7], h) + b_main_ref[:, 8:9]
    # img_layers (SIREN layer, D -> D//2)
    h = jnp.sin(dot(w_img_ref[...], feat) + b_img_ref[...])     # (D//2, TM)
    # fc_img (D//2 -> 1) as a VPU weighted sum + sublane reduce.
    img = jnp.sum(w_out_ref[...] * h, axis=0, keepdims=True) + b_out_ref[...]
    out_ref[...] = img                                          # (1, TM)


def init_siren_params(key, pos_in_dims, D):
    """Parameters in PyTorch nn.Linear layout: W (out_dim, in_dim), b (out_dim,).
    Init distributions match the PyTorch module's __init__."""

    def siren_layer(k, in_dim, out_dim, w0, is_first):
        w_std = (1.0 / in_dim) if is_first else (math.sqrt(6.0 / in_dim) / w0)
        kw, kb = jax.random.split(k)
        W = jax.random.uniform(kw, (out_dim, in_dim), jnp.float32, -w_std, w_std)
        b = jax.random.uniform(kb, (out_dim,), jnp.float32, -w_std, w_std)
        return W, b

    def plain_linear(k, in_dim, out_dim):
        bound = 1.0 / math.sqrt(in_dim)
        kw, kb = jax.random.split(k)
        W = jax.random.uniform(kw, (out_dim, in_dim), jnp.float32, -bound, bound)
        b = jax.random.uniform(kb, (out_dim,), jnp.float32, -bound, bound)
        return W, b

    keys = jax.random.split(key, 11)
    params = []
    # layers0
    params.append(siren_layer(keys[0], pos_in_dims, D, w0=30.0, is_first=True))
    params.append(siren_layer(keys[1], D, D, w0=1.0, is_first=False))
    params.append(siren_layer(keys[2], D, D, w0=1.0, is_first=False))
    params.append(siren_layer(keys[3], D, D, w0=1.0, is_first=False))
    # layers1
    params.append(siren_layer(keys[4], D + pos_in_dims, D, w0=1.0, is_first=False))
    params.append(siren_layer(keys[5], D, D, w0=1.0, is_first=False))
    params.append(siren_layer(keys[6], D, D, w0=1.0, is_first=False))
    params.append(siren_layer(keys[7], D, D, w0=1.0, is_first=False))
    # fc_feature
    params.append(plain_linear(keys[8], D, D))
    # img_layers
    params.append(siren_layer(keys[9], D, D // 2, w0=1.0, is_first=False))
    # fc_img (bias forced to 0.02, like the PyTorch module)
    W_img, _ = plain_linear(keys[10], D // 2, 1)
    params.append((W_img, jnp.full((1,), 0.02, dtype=jnp.float32)))
    return params


def pack_siren_params(params, pos_in_dims, D):
    """Repack the 11 (W, b) pairs into kernel-friendly arrays:
       * w0=30 folded into the first layer,
       * layers1[0] split into its hidden / skip(pos_enc) halves,
       * all weights stay (out_dim, in_dim) so the kernel computes W @ h."""
    (W0, b0), (W1, b1), (W2, b2), (W3, b3), (W4, b4), (W5, b5), (W6, b6), \
        (W7, b7), (W8, b8), (W9, b9), (W10, b10) = params
    W4h, W4x = W4[:, :D], W4[:, D:]
    w_in = jnp.stack([30.0 * W0, W4x]).astype(jnp.float32)               # (2,D,Cin)
    w_sq = jnp.stack([W1, W2, W3, W4h, W5, W6, W7, W8]).astype(jnp.float32)  # (8,D,D)
    w_img = W9.astype(jnp.float32)                                        # (D//2, D)
    w_out = W10.T.astype(jnp.float32)                                     # (D//2, 1)
    b_main = jnp.stack([30.0 * b0, b1, b2, b3, b4, b5, b6, b7, b8],
                       axis=1).astype(jnp.float32)                        # (D, 9)
    b_img = b9[:, None].astype(jnp.float32)                               # (D//2, 1)
    b_out = b10[:, None].astype(jnp.float32)                              # (1, 1)
    return (w_in, w_sq, w_img, w_out, b_main, b_img, b_out)


def siren_forward(pos_enc, packed_params, *, tm=2048):
    """pos_enc: (H, W, N_sample, pos_in_dims) float32 -> (H, W, N_sample, 1)."""
    assert tm % 128 == 0, "row tile must be a multiple of 128 lanes"
    H, Wd, N, Cin = pos_enc.shape
    M = H * Wd * N

    # Channels-first for the kernel: rows land on the 128-lane axis.
    x = pos_enc.reshape(M, Cin).astype(jnp.float32).T            # (Cin, M)

    # Largest tile <= tm that covers M; pad rows to a tile multiple (padded
    # rows compute garbage-free zeros and are sliced off below).
    tm_eff = min(tm, _round_up(M, 128))
    m_pad = _round_up(M, tm_eff)
    if m_pad != M:
        x = jnp.pad(x, ((0, 0), (0, m_pad - M)))
    grid = (m_pad // tm_eff,)

    w_in, w_sq, w_img, w_out, b_main, b_img, b_out = packed_params

    def full_spec(a):
        nd = a.ndim
        return pl.BlockSpec(a.shape, lambda i, _nd=nd: (0,) * _nd)

    out = pl.pallas_call(
        _siren_kernel,
        out_shape=jax.ShapeDtypeStruct((1, m_pad), jnp.float32),
        grid_spec=pltpu.PrefetchScalarGridSpec(
            num_scalar_prefetch=0,
            grid=grid,
            in_specs=[
                pl.BlockSpec((Cin, tm_eff), lambda i: (0, i)),
                full_spec(w_in), full_spec(w_sq), full_spec(w_img),
                full_spec(w_out), full_spec(b_main), full_spec(b_img),
                full_spec(b_out),
            ],
            out_specs=pl.BlockSpec((1, tm_eff), lambda i: (0, i)),
        ),
        compiler_params=pltpu.CompilerParams(
            dimension_semantics=("parallel",),
            vmem_limit_bytes=32 * 1024 * 1024,
        ),
    )(x, w_in, w_sq, w_img, w_out, b_main, b_img, b_out)

    return out[0, :M].reshape(H, Wd, N, 1)


def siren_reference(pos_enc, params):
    """Pure-JAX transcription of the PyTorch forward (unpacked params)."""
    H, Wd, N, Cin = pos_enc.shape
    x0 = pos_enc.reshape(-1, Cin).astype(jnp.float32)

    def lin(h, idx):
        W, b = params[idx]
        return h @ W.T + b

    h = jnp.sin(30.0 * lin(x0, 0))
    for i in (1, 2, 3):
        h = jnp.sin(lin(h, i))
    h = jnp.concatenate([h, x0], axis=-1)
    for i in (4, 5, 6, 7):
        h = jnp.sin(lin(h, i))
    feat = lin(h, 8)
    h = jnp.sin(lin(feat, 9))
    img = lin(h, 10)
    return img.reshape(H, Wd, N, 1)


if __name__ == "__main__":
    # Small shapes: H=4, W=4, N_sample=8 -> 128 flattened rows,
    # pos_in_dims=4, D=32.
    H, Wd, N, POS_IN, D = 4, 4, 8, 4, 32

    key = jax.random.PRNGKey(0)
    k_in, k_par = jax.random.split(key)

    pos_enc = jax.random.normal(k_in, (H, Wd, N, POS_IN), dtype=jnp.float32)
    params = init_siren_params(k_par, POS_IN, D)
    packed = pack_siren_params(params, POS_IN, D)

    out = siren_forward(pos_enc, packed, tm=2048)
    out = jax.block_until_ready(out)

    ref = siren_reference(pos_enc, params)
    assert out.shape == (H, Wd, N, 1)
    assert jnp.allclose(out, ref, atol=1e-4, rtol=1e-4), \
        float(jnp.max(jnp.abs(out - ref)))

    print("KERNEL_OK")
</pallas_src>

<mosaic_0001>
module attributes {stable_mosaic.version = 11 : i64} {
  func.func @_siren_kernel(%arg0: i32, %arg1: memref<4x128xf32, #tpu.memory_space<vmem>>, %arg2: memref<2x32x4xf32, #tpu.memory_space<vmem>>, %arg3: memref<8x32x32xf32, #tpu.memory_space<vmem>>, %arg4: memref<16x32xf32, #tpu.memory_space<vmem>>, %arg5: memref<16x1xf32, #tpu.memory_space<vmem>>, %arg6: memref<32x9xf32, #tpu.memory_space<vmem>>, %arg7: memref<16x1xf32, #tpu.memory_space<vmem>>, %arg8: memref<1x1xf32, #tpu.memory_space<vmem>>, %arg9: memref<1x128xf32, #tpu.memory_space<vmem>>) attributes {dimension_semantics = [#tpu.dimension_semantics<parallel>], iteration_bounds = array<i64: 1>, scalar_prefetch = 0 : i64, scratch_operands = 0 : i64, tpu.core_type = #tpu.core_type<tc>, window_params = [{transform_indices = @transform_0, window_bounds = array<i64: 4, 128>}, {pipeline_mode = #tpu.pipeline_mode<synchronous>, transform_indices = @transform_1, window_bounds = array<i64: 2, 32, 4>}, {pipeline_mode = #tpu.pipeline_mode<synchronous>, transform_indices = @transform_2, window_bounds = array<i64: 8, 32, 32>}, {pipeline_mode = #tpu.pipeline_mode<synchronous>, transform_indices = @transform_3, window_bounds = array<i64: 16, 32>}, {pipeline_mode = #tpu.pipeline_mode<synchronous>, transform_indices = @transform_4, window_bounds = array<i64: 16, 1>}, {pipeline_mode = #tpu.pipeline_mode<synchronous>, transform_indices = @transform_5, window_bounds = array<i64: 32, 9>}, {pipeline_mode = #tpu.pipeline_mode<synchronous>, transform_indices = @transform_6, window_bounds = array<i64: 16, 1>}, {pipeline_mode = #tpu.pipeline_mode<synchronous>, transform_indices = @transform_7, window_bounds = array<i64: 1, 1>}, {transform_indices = @transform_8, window_bounds = array<i64: 1, 128>}]} {
    %c0 = arith.constant 0 : index
    %c0_0 = arith.constant 0 : index
    %0 = vector.load %arg1[%c0, %c0_0] : memref<4x128xf32, #tpu.memory_space<vmem>>, vector<4x128xf32>
    %c0_1 = arith.constant 0 : index
    %c0_2 = arith.constant 0 : index
    %c0_3 = arith.constant 0 : index
    %1 = vector.load %arg2[%c0_1, %c0_2, %c0_3] : memref<2x32x4xf32, #tpu.memory_space<vmem>>, vector<1x32x4xf32>
    %2 = vector.shape_cast %1 : vector<1x32x4xf32> to vector<32x4xf32>
    %cst = arith.constant dense<0.000000e+00> : vector<32x128xf32>
    %3 = tpu.matmul %2, %0, %cst {dimension_numbers = #tpu.dot_dimension_numbers<[1], [0], [0], [1], [0, 0, 1, 1], [], []>} : vector<32x4xf32>, vector<4x128xf32>, vector<32x128xf32> -> vector<32x128xf32>
    %c0_4 = arith.constant 0 : index
    %c0_5 = arith.constant 0 : index
    %4 = vector.load %arg6[%c0_4, %c0_5] : memref<32x9xf32, #tpu.memory_space<vmem>>, vector<32x1xf32>
    %5 = vector.broadcast %4 : vector<32x1xf32> to vector<32x128xf32>
    %6 = arith.addf %3, %5 : vector<32x128xf32>
    %7 = math.sin %6 : vector<32x128xf32>
    %c0_6 = arith.constant 0 : index
    %c0_7 = arith.constant 0 : index
    %c0_8 = arith.constant 0 : index
    %8 = vector.load %arg3[%c0_6, %c0_7, %c0_8] : memref<8x32x32xf32, #tpu.memory_space<vmem>>, vector<1x32x32xf32>
    %9 = vector.shape_cast %8 : vector<1x32x32xf32> to vector<32x32xf32>
    %cst_9 = arith.constant dense<0.000000e+00> : vector<32x128xf32>
    %10 = tpu.matmul %9, %7, %cst_9 {dimension_numbers = #tpu.dot_dimension_numbers<[1], [0], [0], [1], [0, 0, 1, 1], [], []>} : vector<32x32xf32>, vector<32x128xf32>, vector<32x128xf32> -> vector<32x128xf32>
    %c0_10 = arith.constant 0 : index
    %c1 = arith.constant 1 : index
    %11 = vector.load %arg6[%c0_10, %c1] : memref<32x9xf32, #tpu.memory_space<vmem>>, vector<32x1xf32>
    %12 = vector.broadcast %11 : vector<32x1xf32> to vector<32x128xf32>
    %13 = arith.addf %10, %12 : vector<32x128xf32>
    %14 = math.sin %13 : vector<32x128xf32>
    %c1_11 = arith.constant 1 : index
    %c0_12 = arith.constant 0 : index
    %c0_13 = arith.constant 0 : index
    %15 = vector.load %arg3[%c1_11, %c0_12, %c0_13] : memref<8x32x32xf32, #tpu.memory_space<vmem>>, vector<1x32x32xf32>
    %16 = vector.shape_cast %15 : vector<1x32x32xf32> to vector<32x32xf32>
    %cst_14 = arith.constant dense<0.000000e+00> : vector<32x128xf32>
    %17 = tpu.matmul %16, %14, %cst_14 {dimension_numbers = #tpu.dot_dimension_numbers<[1], [0], [0], [1], [0, 0, 1, 1], [], []>} : vector<32x32xf32>, vector<32x128xf32>, vector<32x128xf32> -> vector<32x128xf32>
    %c0_15 = arith.constant 0 : index
    %c2 = arith.constant 2 : index
    %18 = vector.load %arg6[%c0_15, %c2] : memref<32x9xf32, #tpu.memory_space<vmem>>, vector<32x1xf32>
    %19 = vector.broadcast %18 : vector<32x1xf32> to vector<32x128xf32>
    %20 = arith.addf %17, %19 : vector<32x128xf32>
    %21 = math.sin %20 : vector<32x128xf32>
    %c2_16 = arith.constant 2 : index
    %c0_17 = arith.constant 0 : index
    %c0_18 = arith.constant 0 : index
    %22 = vector.load %arg3[%c2_16, %c0_17, %c0_18] : memref<8x32x32xf32, #tpu.memory_space<vmem>>, vector<1x32x32xf32>
    %23 = vector.shape_cast %22 : vector<1x32x32xf32> to vector<32x32xf32>
    %cst_19 = arith.constant dense<0.000000e+00> : vector<32x128xf32>
    %24 = tpu.matmul %23, %21, %cst_19 {dimension_numbers = #tpu.dot_dimension_numbers<[1], [0], [0], [1], [0, 0, 1, 1], [], []>} : vector<32x32xf32>, vector<32x128xf32>, vector<32x128xf32> -> vector<32x128xf32>
    %c0_20 = arith.constant 0 : index
    %c3 = arith.constant 3 : index
    %25 = vector.load %arg6[%c0_20, %c3] : memref<32x9xf32, #tpu.memory_space<vmem>>, vector<32x1xf32>
    %26 = vector.broadcast %25 : vector<32x1xf32> to vector<32x128xf32>
    %27 = arith.addf %24, %26 : vector<32x128xf32>
    %28 = math.sin %27 : vector<32x128xf32>
    %c3_21 = arith.constant 3 : index
    %c0_22 = arith.constant 0 : index
    %c0_23 = arith.constant 0 : index
    %29 = vector.load %arg3[%c3_21, %c0_22, %c0_23] : memref<8x32x32xf32, #tpu.memory_space<vmem>>, vector<1x32x32xf32>
    %30 = vector.shape_cast %29 : vector<1x32x32xf32> to vector<32x32xf32>
    %cst_24 = arith.constant dense<0.000000e+00> : vector<32x128xf32>
    %31 = tpu.matmul %30, %28, %cst_24 {dimension_numbers = #tpu.dot_dimension_numbers<[1], [0], [0], [1], [0, 0, 1, 1], [], []>} : vector<32x32xf32>, vector<32x128xf32>, vector<32x128xf32> -> vector<32x128xf32>
    %c1_25 = arith.constant 1 : index
    %c0_26 = arith.constant 0 : index
    %c0_27 = arith.constant 0 : index
    %32 = vector.load %arg2[%c1_25, %c0_26, %c0_27] : memref<2x32x4xf32, #tpu.memory_space<vmem>>, vector<1x32x4xf32>
    %33 = vector.shape_cast %32 : vector<1x32x4xf32> to vector<32x4xf32>
    %cst_28 = arith.constant dense<0.000000e+00> : vector<32x128xf32>
    %34 = tpu.matmul %33, %0, %cst_28 {dimension_numbers = #tpu.dot_dimension_numbers<[1], [0], [0], [1], [0, 0, 1, 1], [], []>} : vector<32x4xf32>, vector<4x128xf32>, vector<32x128xf32> -> vector<32x128xf32>
    %35 = arith.addf %31, %34 : vector<32x128xf32>
    %c0_29 = arith.constant 0 : index
    %c4 = arith.constant 4 : index
    %36 = vector.load %arg6[%c0_29, %c4] : memref<32x9xf32, #tpu.memory_space<vmem>>, vector<32x1xf32>
    %37 = vector.broadcast %36 : vector<32x1xf32> to vector<32x128xf32>
    %38 = arith.addf %35, %37 : vector<32x128xf32>
    %39 = math.sin %38 : vector<32x128xf32>
    %c4_30 = arith.constant 4 : index
    %c0_31 = arith.constant 0 : index
    %c0_32 = arith.constant 0 : index
    %40 = vector.load %arg3[%c4_30, %c0_31, %c0_32] : memref<8x32x32xf32, #tpu.memory_space<vmem>>, vector<1x32x32xf32>
    %41 = vector.shape_cast %40 : vector<1x32x32xf32> to vector<32x32xf32>
    %cst_33 = arith.constant dense<0.000000e+00> : vector<32x128xf32>
    %42 = tpu.matmul %41, %39, %cst_33 {dimension_numbers = #tpu.dot_dimension_numbers<[1], [0], [0], [1], [0, 0, 1, 1], [], []>} : vector<32x32xf32>, vector<32x128xf32>, vector<32x128xf32> -> vector<32x128xf32>
    %c0_34 = arith.constant 0 : index
    %c5 = arith.constant 5 : index
    %43 = vector.load %arg6[%c0_34, %c5] : memref<32x9xf32, #tpu.memory_space<vmem>>, vector<32x1xf32>
    %44 = vector.broadcast %43 : vector<32x1xf32> to vector<32x128xf32>
    %45 = arith.addf %42, %44 : vector<32x128xf32>
    %46 = math.sin %45 : vector<32x128xf32>
    %c5_35 = arith.constant 5 : index
    %c0_36 = arith.constant 0 : index
    %c0_37 = arith.constant 0 : index
    %47 = vector.load %arg3[%c5_35, %c0_36, %c0_37] : memref<8x32x32xf32, #tpu.memory_space<vmem>>, vector<1x32x32xf32>
    %48 = vector.shape_cast %47 : vector<1x32x32xf32> to vector<32x32xf32>
    %cst_38 = arith.constant dense<0.000000e+00> : vector<32x128xf32>
    %49 = tpu.matmul %48, %46, %cst_38 {dimension_numbers = #tpu.dot_dimension_numbers<[1], [0], [0], [1], [0, 0, 1, 1], [], []>} : vector<32x32xf32>, vector<32x128xf32>, vector<32x128xf32> -> vector<32x128xf32>
    %c0_39 = arith.constant 0 : index
    %c6 = arith.constant 6 : index
    %50 = vector.load %arg6[%c0_39, %c6] : memref<32x9xf32, #tpu.memory_space<vmem>>, vector<32x1xf32>
    %51 = vector.broadcast %50 : vector<32x1xf32> to vector<32x128xf32>
    %52 = arith.addf %49, %51 : vector<32x128xf32>
    %53 = math.sin %52 : vector<32x128xf32>
    %c6_40 = arith.constant 6 : index
    %c0_41 = arith.constant 0 : index
    %c0_42 = arith.constant 0 : index
    %54 = vector.load %arg3[%c6_40, %c0_41, %c0_42] : memref<8x32x32xf32, #tpu.memory_space<vmem>>, vector<1x32x32xf32>
    %55 = vector.shape_cast %54 : vector<1x32x32xf32> to vector<32x32xf32>
    %cst_43 = arith.constant dense<0.000000e+00> : vector<32x128xf32>
    %56 = tpu.matmul %55, %53, %cst_43 {dimension_numbers = #tpu.dot_dimension_numbers<[1], [0], [0], [1], [0, 0, 1, 1], [], []>} : vector<32x32xf32>, vector<32x128xf32>, vector<32x128xf32> -> vector<32x128xf32>
    %c0_44 = arith.constant 0 : index
    %c7 = arith.constant 7 : index
    %57 = vector.load %arg6[%c0_44, %c7] : memref<32x9xf32, #tpu.memory_space<vmem>>, vector<32x1xf32>
    %58 = vector.broadcast %57 : vector<32x1xf32> to vector<32x128xf32>
    %59 = arith.addf %56, %58 : vector<32x128xf32>
    %60 = math.sin %59 : vector<32x128xf32>
    %c7_45 = arith.constant 7 : index
    %c0_46 = arith.constant 0 : index
    %c0_47 = arith.constant 0 : index
    %61 = vector.load %arg3[%c7_45, %c0_46, %c0_47] : memref<8x32x32xf32, #tpu.memory_space<vmem>>, vector<1x32x32xf32>
    %62 = vector.shape_cast %61 : vector<1x32x32xf32> to vector<32x32xf32>
    %cst_48 = arith.constant dense<0.000000e+00> : vector<32x128xf32>
    %63 = tpu.matmul %62, %60, %cst_48 {dimension_numbers = #tpu.dot_dimension_numbers<[1], [0], [0], [1], [0, 0, 1, 1], [], []>} : vector<32x32xf32>, vector<32x128xf32>, vector<32x128xf32> -> vector<32x128xf32>
    %c0_49 = arith.constant 0 : index
    %c8 = arith.constant 8 : index
    %64 = vector.load %arg6[%c0_49, %c8] : memref<32x9xf32, #tpu.memory_space<vmem>>, vector<32x1xf32>
    %65 = vector.broadcast %64 : vector<32x1xf32> to vector<32x128xf32>
    %66 = arith.addf %63, %65 : vector<32x128xf32>
    %c0_50 = arith.constant 0 : index
    %c0_51 = arith.constant 0 : index
    %67 = vector.load %arg4[%c0_50, %c0_51] : memref<16x32xf32, #tpu.memory_space<vmem>>, vector<16x32xf32>
    %cst_52 = arith.constant dense<0.000000e+00> : vector<16x128xf32>
    %68 = tpu.matmul %67, %66, %cst_52 {dimension_numbers = #tpu.dot_dimension_numbers<[1], [0], [0], [1], [0, 0, 1, 1], [], []>} : vector<16x32xf32>, vector<32x128xf32>, vector<16x128xf32> -> vector<16x128xf32>
    %c0_53 = arith.constant 0 : index
    %c0_54 = arith.constant 0 : index
    %69 = vector.load %arg7[%c0_53, %c0_54] : memref<16x1xf32, #tpu.memory_space<vmem>>, vector<16x1xf32>
    %70 = vector.broadcast %69 : vector<16x1xf32> to vector<16x128xf32>
    %71 = arith.addf %68, %70 : vector<16x128xf32>
    %72 = math.sin %71 : vector<16x128xf32>
    %c0_55 = arith.constant 0 : index
    %c0_56 = arith.constant 0 : index
    %73 = vector.load %arg5[%c0_55, %c0_56] : memref<16x1xf32, #tpu.memory_space<vmem>>, vector<16x1xf32>
    %74 = vector.broadcast %73 : vector<16x1xf32> to vector<16x128xf32>
    %75 = arith.mulf %74, %72 : vector<16x128xf32>
    %cst_57 = arith.constant dense<0.000000e+00> : vector<128xf32>
    %76 = vector.multi_reduction <add>, %75, %cst_57 [0] : vector<16x128xf32> to vector<128xf32>
    %77 = vector.shape_cast %76 : vector<128xf32> to vector<1x128xf32>
    %c0_58 = arith.constant 0 : index
    %c0_59 = arith.constant 0 : index
    %78 = vector.load %arg8[%c0_58, %c0_59] : memref<1x1xf32, #tpu.memory_space<vmem>>, vector<1x1xf32>
    %79 = vector.broadcast %78 : vector<1x1xf32> to vector<1x128xf32>
    %80 = arith.addf %77, %79 : vector<1x128xf32>
    %c0_60 = arith.constant 0 : index
    %c0_61 = arith.constant 0 : index
    %81 = vector.load %arg9[%c0_60, %c0_61] : memref<1x128xf32, #tpu.memory_space<vmem>>, vector<1x128xf32>
    tpu.vector_store %arg9[%c0_60, %c0_61], %80 {strides = array<i32>} : memref<1x128xf32, #tpu.memory_space<vmem>>, vector<1x128xf32>,
    return
  }
  func.func @transform_0(%arg0: i32) -> (i32, i32) {
    %c0_i32 = arith.constant 0 : i32
    %c0_i32_0 = arith.constant 0 : i32
    return %c0_i32, %arg0 : i32, i32
  }
  func.func @transform_1(%arg0: i32) -> (i32, i32, i32) {
    %c0_i32 = arith.constant 0 : i32
    %c0_i32_0 = arith.constant 0 : i32
    %c0_i32_1 = arith.constant 0 : i32
    %c0_i32_2 = arith.constant 0 : i32
    return %c0_i32, %c0_i32_0, %c0_i32_1 : i32, i32, i32
  }
  func.func @transform_2(%arg0: i32) -> (i32, i32, i32) {
    %c0_i32 = arith.constant 0 : i32
    %c0_i32_0 = arith.constant 0 : i32
    %c0_i32_1 = arith.constant 0 : i32
    %c0_i32_2 = arith.constant 0 : i32
    return %c0_i32, %c0_i32_0, %c0_i32_1 : i32, i32, i32
  }
  func.func @transform_3(%arg0: i32) -> (i32, i32) {
    %c0_i32 = arith.constant 0 : i32
    %c0_i32_0 = arith.constant 0 : i32
    %c0_i32_1 = arith.constant 0 : i32
    return %c0_i32, %c0_i32_0 : i32, i32
  }
  func.func @transform_4(%arg0: i32) -> (i32, i32) {
    %c0_i32 = arith.constant 0 : i32
    %c0_i32_0 = arith.constant 0 : i32
    %c0_i32_1 = arith.constant 0 : i32
    return %c0_i32, %c0_i32_0 : i32, i32
  }
  func.func @transform_5(%arg0: i32) -> (i32, i32) {
    %c0_i32 = arith.constant 0 : i32
    %c0_i32_0 = arith.constant 0 : i32
    %c0_i32_1 = arith.constant 0 : i32
    return %c0_i32, %c0_i32_0 : i32, i32
  }
  func.func @transform_6(%arg0: i32) -> (i32, i32) {
    %c0_i32 = arith.constant 0 : i32
    %c0_i32_0 = arith.constant 0 : i32
    %c0_i32_1 = arith.constant 0 : i32
    return %c0_i32, %c0_i32_0 : i32, i32
  }
  func.func @transform_7(%arg0: i32) -> (i32, i32) {
    %c0_i32 = arith.constant 0 : i32
    %c0_i32_0 = arith.constant 0 : i32
    %c0_i32_1 = arith.constant 0 : i32
    return %c0_i32, %c0_i32_0 : i32, i32
  }
  func.func @transform_8(%arg0: i32) -> (i32, i32) {
    %c0_i32 = arith.constant 0 : i32
    %c0_i32_0 = arith.constant 0 : i32
    return %c0_i32, %arg0 : i32, i32
  }
}

</mosaic_0001>

<llo_original>
// kernel: tpu_custom_call.1
$region0: #{tpu_custom_call.1}
  #allocation0 [shape = 'u32[]', space=smem, size = 0x4, offset = 0x4, fixed_abs, tag = 'smem constant byte address 0x4 - core index']
  #allocation1 [shape = 'u32[144,128]{1,0:T(1,128)}', space=vmem, size = 0x12000, scoped, tag = 'internal scratch']
  #allocation2 [shape = 'f32[1,1]{1,0:T(1,128)S(1)}', space=vmem, size = 0x200, scoped, tag = 'scoped memory for tpu_custom_call.1']
  %s0 = inlined_call_operand.vmem [shape: f32[4,128], index: 0, kind: input, shape index: {}]
  %s1 = inlined_call_operand.vmem [shape: f32[2,32,4], index: 1, kind: input, shape index: {}]
  %s2 = inlined_call_operand.hbm [shape: f32[8,32,32], index: 2, kind: input, shape index: {}]
  %s3 = inlined_call_operand.vmem [shape: f32[16,32], index: 3, kind: input, shape index: {}]
  %s4 = inlined_call_operand.vmem [shape: f32[16,1], index: 4, kind: input, shape index: {}]
  %s5 = inlined_call_operand.vmem [shape: f32[32,9], index: 5, kind: input, shape index: {}]
  %s6 = inlined_call_operand.vmem [shape: f32[16,1], index: 6, kind: input, shape index: {}]
  %s7 = inlined_call_operand.<no memory space> [shape: f32[1,1], index: 7, kind: input, shape index: {}]
  %s8 = inlined_call_operand.hbm [shape: f32[1,128], index: 8, kind: output, shape index: {}]
  %s9 = sld [smem:[#allocation0]]
  $region46: #{tpu_custom_call.1} parent=0
    _
  %s11 = ssub.s32 1, %s9
  %s12 = scalar_select 0, %s11, %s9
  %v13 = vstv %s7
  %14 = vst [vmem:[#allocation2] sm:$0x1] %v13
  $region1: #{tpu_custom_call.1} parent=0
    #allocation3 [shape = 'u8[131072]{0}', space=vmem, size = 0x20000, scoped, tag = 'input window, operand 2, single buffered']
    #allocation4 [shape = 's32[1]{0}', space=sflag, size = 0x4, scoped, tag = 'scoped memory for tpu_custom_call.1']
    #allocation5 [shape = 's32[1]{0}', space=sflag, size = 0x4, scoped, tag = 'scoped memory for tpu_custom_call.1']
    #allocation6 [shape = 'u8[512]{0}', space=vmem, size = 0x400, scoped, tag = 'output window, operand 0, single buffered']
    %15 = vsyncpa [#allocation4], 0
    %16 = vsyncpa [#allocation5], 0
    // Predicated region
    $region2: #{tpu_custom_call.1} parent=1 // pred_check
      _
    $region3: #{tpu_custom_call.1} parent=1 // pred_check_branch
      %18 = sbr.rel (0) target = $region5
    $region4: #{tpu_custom_call.1} parent=1 // pred_region
      _
    $region5: #{tpu_custom_call.1} parent=1 // pred_fallthru
      _
    // Predicated region
    $region6: #{tpu_custom_call.1} parent=1 // pred_check
      _
    $region7: #{tpu_custom_call.1} parent=1 // pred_check_branch
      %20 = sbr.rel (0) target = $region9
    $region8: #{tpu_custom_call.1} parent=1 // pred_region
      _
    $region9: #{tpu_custom_call.1} parent=1 // pred_fallthru
      _
    // Predicated region
    $region10: #{tpu_custom_call.1} parent=1 // pred_check
      _
    $region11: #{tpu_custom_call.1} parent=1 // pred_check_branch
      %22 = sbr.rel (0) target = $region13
    $region12: #{tpu_custom_call.1} parent=1 // pred_region
      %s24 = ssub.s32 4096, 4096
      %25 = vsyncadd [#allocation4], %s24
      %s26 = sshll.u32 [#allocation3], 4
      %s27 = int_to_ptr.vmem [resolvable:$true] %s26
      %32 = dma.hbm_to_vmem [thread:$0]  %s2, 4096, %s27, [#allocation4], 128, 128, 8
    $region13: #{tpu_custom_call.1} parent=1 // pred_fallthru
      _
    // Predicated region
    $region14: #{tpu_custom_call.1} parent=1 // pred_check
      _
    $region15: #{tpu_custom_call.1} parent=1 // pred_check_branch
      %34 = sbr.rel (0) target = $region17
    $region16: #{tpu_custom_call.1} parent=1 // pred_region
      _
    $region17: #{tpu_custom_call.1} parent=1 // pred_fallthru
      _
    // Predicated region
    $region18: #{tpu_custom_call.1} parent=1 // pred_check
      _
    $region19: #{tpu_custom_call.1} parent=1 // pred_check_branch
      %36 = sbr.rel (0) target = $region21
    $region20: #{tpu_custom_call.1} parent=1 // pred_region
      _
    $region21: #{tpu_custom_call.1} parent=1 // pred_fallthru
      _
    // Predicated region
    $region22: #{tpu_custom_call.1} parent=1 // pred_check
      _
    $region23: #{tpu_custom_call.1} parent=1 // pred_check_branch
      %38 = sbr.rel (0) target = $region25
    $region24: #{tpu_custom_call.1} parent=1 // pred_region
      _
    $region25: #{tpu_custom_call.1} parent=1 // pred_fallthru
      _
    // Predicated region
    $region26: #{tpu_custom_call.1} parent=1 // pred_check
      _
    $region27: #{tpu_custom_call.1} parent=1 // pred_check_branch
      %40 = sbr.rel (0) target = $region29
    $region28: #{tpu_custom_call.1} parent=1 // pred_region
      _
    $region29: #{tpu_custom_call.1} parent=1 // pred_fallthru
      _
    // Predicated region
    $region30: #{tpu_custom_call.1} parent=1 // pred_check
      _
    $region31: #{tpu_custom_call.1} parent=1 // pred_check_branch
      %42 = sbr.rel (0) target = $region33
    $region32: #{tpu_custom_call.1} parent=1 // pred_region
      _
    $region33: #{tpu_custom_call.1} parent=1 // pred_fallthru
      _
    // Predicated region
    $region34: #{tpu_custom_call.1} parent=1 // pred_check
      _
    $region35: #{tpu_custom_call.1} parent=1 // pred_check_branch
      %44 = sbr.rel (0) target = $region37
    $region36: #{tpu_custom_call.1} parent=1 // pred_region
      %45 = dma.done [#allocation4], 4096
    $region37: #{tpu_custom_call.1} parent=1 // pred_fallthru
      _
    %v46 = vld [vmem:[%s0] sm:$0xf]
    %v47 = vld [vmem:[%s1] sm:$0xff]
    %v48 = vld [vmem:[%s1 + $0x8] sm:$0xff]
    %v49 = vld [vmem:[%s1 + $0x10] sm:$0xff]
    %v50 = vld [vmem:[%s1 + $0x18] sm:$0xff]
    %v51 = vld [vmem:[%s5] sm:$0xff]
    %v52 = vld [vmem:[%s5 + $0x8] sm:$0xff]
    %v53 = vld [vmem:[%s5 + $0x10] sm:$0xff]
    %v54 = vld [vmem:[%s5 + $0x18] sm:$0xff]
    %56 = vset.pattern.permute.xlu0 0
    %57 = vperm.xlu0 %56, %v51
    %v58 = vpop.permute.xlu0 %57
    %61 = vset.pattern.permute.xlu0 0
    %62 = vperm.xlu0 %61, %v52
    %v63 = vpop.permute.xlu0 %62
    %66 = vset.pattern.permute.xlu0 0
    %67 = vperm.xlu0 %66, %v53
    %v68 = vpop.permute.xlu0 %67
    %71 = vset.pattern.permute.xlu0 0
    %72 = vperm.xlu0 %71, %v54
    %v73 = vpop.permute.xlu0 %72
    %vm75 = vcmask 31744
    %v77 = vsel %vm75, %v47, 0
    %v80 = vsel %vm75, %v48, 0
    %v83 = vsel %vm75, %v49, 0
    %v86 = vsel %vm75, %v50, 0
    %vm88 = vcmask 1043456
    %v90 = vsel %vm88, %v46, 0
    %92 = vmatprep.subr.mxu0 0.0
    %93 = vmatpush1.msra.mxu0 %v90
    %94 = vmatprep.subr.mxu0 0.0
    %95 = vmatpush1.msra.mxu0 0.0
    %96 = vmatprep.subr.mxu0 0.0
    %97 = vmatpush1.msra.mxu0 0.0
    %98 = vmatprep.subr.mxu0 0.0
    %99 = vmatpush1.msra.mxu0 0.0
    %100 = vmatprep.subr.mxu0 0.0
    %101 = vmatpush1.msra.mxu0 0.0
    %102 = vmatprep.subr.mxu0 0.0
    %103 = vmatpush1.msra.mxu0 0.0
    %104 = vmatprep.subr.mxu0 0.0
    %105 = vmatpush1.msra.mxu0 0.0
    %106 = vmatprep.subr.mxu0 0.0
    %107 = vmatpush1.msra.mxu0 0.0
    %108 = vmatprep.subr.mxu0 0.0
    %109 = vmatpush1.msra.mxu0 0.0
    %110 = vmatprep.subr.mxu0 0.0
    %111 = vmatpush1.msra.mxu0 0.0
    %112 = vmatprep.subr.mxu0 0.0
    %113 = vmatpush1.msra.mxu0 0.0
    %114 = vmatprep.subr.mxu0 0.0
    %115 = vmatpush1.msra.mxu0 0.0
    %116 = vmatprep.subr.mxu0 0.0
    %117 = vmatpush1.msra.mxu0 0.0
    %118 = vmatprep.subr.mxu0 0.0
    %119 = vmatpush1.msra.mxu0 0.0
    %120 = vmatprep.subr.mxu0 0.0
    %121 = vmatpush1.msra.mxu0 0.0
    %122 = vmatprep.subr.mxu0 0.0
    %123 = vmatpush1.msra.mxu0 0.0
    %124 = vmatprep.subr.mxu0 0.0
    %125 = vmatpush1.msra.mxu0 0.0
    %126 = vmatprep.subr.mxu0 0.0
    %127 = vmatpush1.msra.mxu0 0.0
    %128 = vmatprep.subr.mxu0 0.0
    %129 = vmatpush1.msra.mxu0 0.0
    %130 = vmatprep.subr.mxu0 0.0
    %131 = vmatpush1.msra.mxu0 0.0
    %132 = vmatprep.subr.mxu0 0.0
    %133 = vmatpush1.msra.mxu0 0.0
    %134 = vmatprep.subr.mxu0 0.0
    %135 = vmatpush1.msra.mxu0 0.0
    %136 = vmatprep.subr.mxu0 0.0
    %137 = vmatpush1.msra.mxu0 0.0
    %138 = vmatprep.subr.mxu0 0.0
    %139 = vmatpush1.msra.mxu0 0.0
    %140 = vmatprep.subr.mxu0 0.0
    %141 = vmatpush1.msra.mxu0 0.0
    %142 = vmatprep.subr.mxu0 0.0
    %143 = vmatpush1.msra.mxu0 0.0
    %144 = vmatprep.subr.mxu0 0.0
    %145 = vmatpush1.msra.mxu0 0.0
    %146 = vmatprep.subr.mxu0 0.0
    %147 = vmatpush1.msra.mxu0 0.0
    %148 = vmatprep.subr.mxu0 0.0
    %149 = vmatpush1.msra.mxu0 0.0
    %150 = vmatprep.subr.mxu0 0.0
    %151 = vmatpush1.msra.mxu0 0.0
    %152 = vmatprep.subr.mxu0 0.0
    %153 = vmatpush1.msra.mxu0 0.0
    %154 = vmatprep.subr.mxu0 0.0
    %155 = vmatpush1.msra.mxu0 0.0
    %156 = vmatprep.mubr.f32.mxu0 0.0
    %157 = vmatmul.mubr.f32.gmra.mrb[0].mxu0 %v77
    %v158 = vpop.f32.mrb[0].mxu0
    %v159 = vadd.f32 %v58, %v158
    %v160 = vpop.f32.mrb[0].mxu0
    %161 = vmatprep.mubr.f32.mxu0 0.0
    %162 = vmatmul.mubr.f32.gmra.mrb[0].mxu0 %v80
    %v163 = vpop.f32.mrb[0].mxu0
    %v164 = vadd.f32 %v63, %v163
    %v165 = vpop.f32.mrb[0].mxu0
    %166 = vmatprep.mubr.f32.mxu0 0.0
    %167 = vmatmul.mubr.f32.gmra.mrb[0].mxu0 %v83
    %v168 = vpop.f32.mrb[0].mxu0
    %v169 = vadd.f32 %v68, %v168
    %v170 = vpop.f32.mrb[0].mxu0
    %171 = vmatprep.mubr.f32.mxu0 0.0
    %172 = vmatmul.mubr.f32.gmra.mrb[0].mxu0 %v86
    %v173 = vpop.f32.mrb[0].mxu0
    %v174 = vadd.f32 %v73, %v173
    %v175 = vpop.f32.mrb[0].mxu0
    %176 = vdwg.mxu0
    %v177 = vand.u32 2147483647, %v159
    %vm178 = vcmp.le.f32.partialorder %v177, 0.7853982
    %vm179 = vcmp.lt.s32.totalorder %v159, 0
    %v180 = vand.u32 %v159, 2139095040
    %v181 = vshrl.u32 %v180, 23
    %v182 = vsub.s32 %v181, 127
    %v183 = vand.u32 2147483647, %v159
    %v184 = vand.u32 %v183, 8388607
    %v185 = vor.u32 %v184, 8388608
    %v186 = vsub.s32 0, %v185
    %v187 = vadd.s32 %v182, 1
    %vm188 = vcmp.gt.s32.totalorder %v187, 0
    %v189 = vsel %vm188, %v187, 0
    %v190 = vshrl.u32 %v189, 5
    %v191 = vand.u32 %v189, 31
    %v192 = vsub.s32 32, %v191
    %v193 = vshrl.u32 683565275, %v192
    %v194 = vshll.u32 683565275, %v191
    %v195 = vshrl.u32 2475754826, %v192
    %v196 = vor.u32 %v194, %v195
    %v197 = vshll.u32 2475754826, %v191
    %v198 = vshrl.u32 2131351028, %v192
    %v199 = vor.u32 %v197, %v198
    %v200 = vshll.u32 2131351028, %v191
    %v201 = vshrl.u32 2102212464, %v192
    %v202 = vor.u32 %v200, %v201
    %v203 = vshll.u32 2102212464, %v191
    %v204 = vshrl.u32 920167782, %v192
    %v205 = vor.u32 %v203, %v204
    %v206 = vshll.u32 920167782, %v191
    %v207 = vshrl.u32 1326507024, %v192
    %v208 = vor.u32 %v206, %v207
    %vm209 = vcmp.lt.s32.totalorder %v190, 1
    %vm210 = vcmp.lt.s32.totalorder %v190, 2
    %vm211 = vcmp.lt.s32.totalorder %v190, 3
    %vm212 = vcmp.lt.s32.totalorder %v190, 4
    %v213 = vsel %vm209, %v193, %v196
    %v214 = vsel %vm212, %v202, 2102212464
    %v215 = vsel %vm211, %v199, %v214
    %v216 = vsel %vm210, %v213, %v215
    %v217 = vsel %vm209, %v196, %v199
    %v218 = vsel %vm212, %v205, 920167782
    %v219 = vsel %vm211, %v202, %v218
    %v220 = vsel %vm210, %v217, %v219
    %v221 = vsel %vm209, %v199, %v202
    %v222 = vsel %vm212, %v208, 1326507024
    %v223 = vsel %vm211, %v205, %v222
    %v224 = vsel %vm210, %v221, %v223
    %v225 = vshll.u32 %v185, 8
    %v226 = vmul.u32.u64.compose %v225, %v224
    %v227 = vextract.low.u32 %v226
    %v228 = vextract.high.u32 %v226
    %v229 = vmul.u32.u64.compose %v225, %v220
    %v230 = vextract.low.u32 %v229
    %v231 = vextract.high.u32 %v229
    %v232 = vmul.u32 %v225, %v216
    %v233 = vadd.s32 %v228, %v230
    %vm234 = vc.u32 %v228, %v230
    %v235 = vadd.s32 %v231, 1
    %v236 = vsel %vm234, %v235, %v231
    %v237 = vadd.s32 %v232, %v236
    %v238 = vadd.s32 %v237, 536870912
    %v239 = vshrl.u32 %v238, 30
    %v240 = vshll.u32 %v239, 30
    %v241 = vsub.s32 %v237, %v240
    %vm242 = vcmp.lt.s32.totalorder %v241, 0
    %v243 = vsub.s32 0, %v241
    %v244 = vsel %vm242, %v243, %v241
    %v245 = vclz %v244
    %v246 = vsub.s32 %v245, 2
    %vm247 = vcmp.gt.s32.totalorder 0, %v246
    %v248 = vsel %vm247, 0, %v246
    %v249 = vsub.s32 32, %v248
    %v250 = vshll.u32 %v241, %v248
    %v251 = vshrl.u32 %v233, %v249
    %v252 = vor.u32 %v250, %v251
    %v253 = vsub.s32 4294967266, %v248
    %v254 = vadd.s32 %v253, 127
    %v255 = vshll.u32 %v254, 23
    %v256 = vor.u32 4788187, %v255
    %v257 = vand.u32 2147483647, %v256
    %v259 = vcvt.s32.f32 %v252
    %v260 = vmul.f32 %v259, %v257
    %v261 = vxor.u32 %v260, 2147483648
    %v262 = vsel %vm179, %v261, %v260
    %v263 = vsub.s32 4, %v239
    %v264 = vsel %vm179, %v263, %v239
    %v265 = vsel %vm178, %v159, %v262
    %v266 = vsel %vm178, 0, %v264
    %v267 = vcosq.f32.pop %v265
    %v268 = vsinq.f32.pop %v265
    %vm269 = vweird.f32 %v159
    %v270 = vadd.s32 %v266, 3
    %v271 = vand.u32 %v270, 3
    %vm272 = vcmp.lt.s32.totalorder %v271, 2
    %vm273 = vcmp.eq.s32.totalorder %v271, 0
    %v274 = vxor.u32 %v268, 2147483648
    %v275 = vsel %vm273, %v267, %v274
    %vm276 = vcmp.eq.s32.totalorder %v271, 2
    %v277 = vxor.u32 %v267, 2147483648
    %v278 = vsel %vm276, %v277, %v268
    %v279 = vsel %vm272, %v275, %v278
    %v280 = vsel %vm269, nan, %v279
    %v281 = vand.u32 2147483647, %v164
    %vm282 = vcmp.le.f32.partialorder %v281, 0.7853982
    %vm283 = vcmp.lt.s32.totalorder %v164, 0
    %v284 = vand.u32 %v164, 2139095040
    %v285 = vshrl.u32 %v284, 23
    %v286 = vsub.s32 %v285, 127
    %v287 = vand.u32 2147483647, %v164
    %v288 = vand.u32 %v287, 8388607
    %v289 = vor.u32 %v288, 8388608
    %v290 = vsub.s32 0, %v289
    %v291 = vadd.s32 %v286, 1
    %vm292 = vcmp.gt.s32.totalorder %v291, 0
    %v293 = vsel %vm292, %v291, 0
    %v294 = vshrl.u32 %v293, 5
    %v295 = vand.u32 %v293, 31
    %v296 = vsub.s32 32, %v295
    %v297 = vshrl.u32 683565275, %v296
    %v298 = vshll.u32 683565275, %v295
    %v299 = vshrl.u32 2475754826, %v296
    %v300 = vor.u32 %v298, %v299
    %v301 = vshll.u32 2475754826, %v295
    %v302 = vshrl.u32 2131351028, %v296
    %v303 = vor.u32 %v301, %v302
    %v304 = vshll.u32 2131351028, %v295
    %v305 = vshrl.u32 2102212464, %v296
    %v306 = vor.u32 %v304, %v305
    %v307 = vshll.u32 2102212464, %v295
    %v308 = vshrl.u32 920167782, %v296
    %v309 = vor.u32 %v307, %v308
    %v310 = vshll.u32 920167782, %v295
    %v311 = vshrl.u32 1326507024, %v296
    %v312 = vor.u32 %v310, %v311
    %vm313 = vcmp.lt.s32.totalorder %v294, 1
    %vm314 = vcmp.lt.s32.totalorder %v294, 2
    %vm315 = vcmp.lt.s32.totalorder %v294, 3
    %vm316 = vcmp.lt.s32.totalorder %v294, 4
    %v317 = vsel %vm313, %v297, %v300
    %v318 = vsel %vm316, %v306, 2102212464
    %v319 = vsel %vm315, %v303, %v318
    %v320 = vsel %vm314, %v317, %v319
    %v321 = vsel %vm313, %v300, %v303
    %v322 = vsel %vm316, %v309, 920167782
    %v323 = vsel %vm315, %v306, %v322
    %v324 = vsel %vm314, %v321, %v323
    %v325 = vsel %vm313, %v303, %v306
    %v326 = vsel %vm316, %v312, 1326507024
    %v327 = vsel %vm315, %v309, %v326
    %v328 = vsel %vm314, %v325, %v327
    %v329 = vshll.u32 %v289, 8
    %v330 = vmul.u32.u64.compose %v329, %v328
    %v331 = vextract.low.u32 %v330
    %v332 = vextract.high.u32 %v330
    %v333 = vmul.u32.u64.compose %v329, %v324
    %v334 = vextract.low.u32 %v333
    %v335 = vextract.high.u32 %v333
    %v336 = vmul.u32 %v329, %v320
    %v337 = vadd.s32 %v332, %v334
    %vm338 = vc.u32 %v332, %v334
    %v339 = vadd.s32 %v335, 1
    %v340 = vsel %vm338, %v339, %v335
    %v341 = vadd.s32 %v336, %v340
    %v342 = vadd.s32 %v341, 536870912
    %v343 = vshrl.u32 %v342, 30
    %v344 = vshll.u32 %v343, 30
    %v345 = vsub.s32 %v341, %v344
    %vm346 = vcmp.lt.s32.totalorder %v345, 0
    %v347 = vsub.s32 0, %v345
    %v348 = vsel %vm346, %v347, %v345
    %v349 = vclz %v348
    %v350 = vsub.s32 %v349, 2
    %vm351 = vcmp.gt.s32.totalorder 0, %v350
    %v352 = vsel %vm351, 0, %v350
    %v353 = vsub.s32 32, %v352
    %v354 = vshll.u32 %v345, %v352
    %v355 = vshrl.u32 %v337, %v353
    %v356 = vor.u32 %v354, %v355
    %v357 = vsub.s32 4294967266, %v352
    %v358 = vadd.s32 %v357, 127
    %v359 = vshll.u32 %v358, 23
    %v360 = vor.u32 4788187, %v359
    %v361 = vand.u32 2147483647, %v360
    %v363 = vcvt.s32.f32 %v356
    %v364 = vmul.f32 %v363, %v361
    %v365 = vxor.u32 %v364, 2147483648
    %v366 = vsel %vm283, %v365, %v364
    %v367 = vsub.s32 4, %v343
    %v368 = vsel %vm283, %v367, %v343
    %v369 = vsel %vm282, %v164, %v366
    %v370 = vsel %vm282, 0, %v368
    %v371 = vcosq.f32.pop %v369
    %v372 = vsinq.f32.pop %v369
    %vm373 = vweird.f32 %v164
    %v374 = vadd.s32 %v370, 3
    %v375 = vand.u32 %v374, 3
    %vm376 = vcmp.lt.s32.totalorder %v375, 2
    %vm377 = vcmp.eq.s32.totalorder %v375, 0
    %v378 = vxor.u32 %v372, 2147483648
    %v379 = vsel %vm377, %v371, %v378
    %vm380 = vcmp.eq.s32.totalorder %v375, 2
    %v381 = vxor.u32 %v371, 2147483648
    %v382 = vsel %vm380, %v381, %v372
    %v383 = vsel %vm376, %v379, %v382
    %v384 = vsel %vm373, nan, %v383
    %v385 = vand.u32 2147483647, %v169
    %vm386 = vcmp.le.f32.partialorder %v385, 0.7853982
    %vm387 = vcmp.lt.s32.totalorder %v169, 0
    %v388 = vand.u32 %v169, 2139095040
    %v389 = vshrl.u32 %v388, 23
    %v390 = vsub.s32 %v389, 127
    %v391 = vand.u32 2147483647, %v169
    %v392 = vand.u32 %v391, 8388607
    %v393 = vor.u32 %v392, 8388608
    %v394 = vsub.s32 0, %v393
    %v395 = vadd.s32 %v390, 1
    %vm396 = vcmp.gt.s32.totalorder %v395, 0
    %v397 = vsel %vm396, %v395, 0
    %v398 = vshrl.u32 %v397, 5
    %v399 = vand.u32 %v397, 31
    %v400 = vsub.s32 32, %v399
    %v401 = vshrl.u32 683565275, %v400
    %v402 = vshll.u32 683565275, %v399
    %v403 = vshrl.u32 2475754826, %v400
    %v404 = vor.u32 %v402, %v403
    %v405 = vshll.u32 2475754826, %v399
    %v406 = vshrl.u32 2131351028, %v400
    %v407 = vor.u32 %v405, %v406
    %v408 = vshll.u32 2131351028, %v399
    %v409 = vshrl.u32 2102212464, %v400
    %v410 = vor.u32 %v408, %v409
    %v411 = vshll.u32 2102212464, %v399
    %v412 = vshrl.u32 920167782, %v400
    %v413 = vor.u32 %v411, %v412
    %v414 = vshll.u32 920167782, %v399
    %v415 = vshrl.u32 1326507024, %v400
    %v416 = vor.u32 %v414, %v415
    %vm417 = vcmp.lt.s32.totalorder %v398, 1
    %vm418 = vcmp.lt.s32.totalorder %v398, 2
    %vm419 = vcmp.lt.s32.totalorder %v398, 3
    %vm420 = vcmp.lt.s32.totalorder %v398, 4
    %v421 = vsel %vm417, %v401, %v404
    %v422 = vsel %vm420, %v410, 2102212464
    %v423 = vsel %vm419, %v407, %v422
    %v424 = vsel %vm418, %v421, %v423
    %v425 = vsel %vm417, %v404, %v407
    %v426 = vsel %vm420, %v413, 920167782
    %v427 = vsel %vm419, %v410, %v426
    %v428 = vsel %vm418, %v425, %v427
    %v429 = vsel %vm417, %v407, %v410
    %v430 = vsel %vm420, %v416, 1326507024
    %v431 = vsel %vm419, %v413, %v430
    %v432 = vsel %vm418, %v429, %v431
    %v433 = vshll.u32 %v393, 8
    %v434 = vmul.u32.u64.compose %v433, %v432
    %v435 = vextract.low.u32 %v434
    %v436 = vextract.high.u32 %v434
    %v437 = vmul.u32.u64.compose %v433, %v428
    %v438 = vextract.low.u32 %v437
    %v439 = vextract.high.u32 %v437
    %v440 = vmul.u32 %v433, %v424
    %v441 = vadd.s32 %v436, %v438
    %vm442 = vc.u32 %v436, %v438
    %v443 = vadd.s32 %v439, 1
    %v444 = vsel %vm442, %v443, %v439
    %v445 = vadd.s32 %v440, %v444
    %v446 = vadd.s32 %v445, 536870912
    %v447 = vshrl.u32 %v446, 30
    %v448 = vshll.u32 %v447, 30
    %v449 = vsub.s32 %v445, %v448
    %vm450 = vcmp.lt.s32.totalorder %v449, 0
    %v451 = vsub.s32 0, %v449
    %v452 = vsel %vm450, %v451, %v449
    %v453 = vclz %v452
    %v454 = vsub.s32 %v453, 2
    %vm455 = vcmp.gt.s32.totalorder 0, %v454
    %v456 = vsel %vm455, 0, %v454
    %v457 = vsub.s32 32, %v456
    %v458 = vshll.u32 %v449, %v456
    %v459 = vshrl.u32 %v441, %v457
    %v460 = vor.u32 %v458, %v459
    %v461 = vsub.s32 4294967266, %v456
    %v462 = vadd.s32 %v461, 127
    %v463 = vshll.u32 %v462, 23
    %v464 = vor.u32 4788187, %v463
    %v465 = vand.u32 2147483647, %v464
    %v467 = vcvt.s32.f32 %v460
    %v468 = vmul.f32 %v467, %v465
    %v469 = vxor.u32 %v468, 2147483648
    %v470 = vsel %vm387, %v469, %v468
    %v471 = vsub.s32 4, %v447
    %v472 = vsel %vm387, %v471, %v447
    %v473 = vsel %vm386, %v169, %v470
    %v474 = vsel %vm386, 0, %v472
    %v475 = vcosq.f32.pop %v473
    %v476 = vsinq.f32.pop %v473
    %vm477 = vweird.f32 %v169
    %v478 = vadd.s32 %v474, 3
    %v479 = vand.u32 %v478, 3
    %vm480 = vcmp.lt.s32.totalorder %v479, 2
    %vm481 = vcmp.eq.s32.totalorder %v479, 0
    %v482 = vxor.u32 %v476, 2147483648
    %v483 = vsel %vm481, %v475, %v482
    %vm484 = vcmp.eq.s32.totalorder %v479, 2
    %v485 = vxor.u32 %v475, 2147483648
    %v486 = vsel %vm484, %v485, %v476
    %v487 = vsel %vm480, %v483, %v486
    %v488 = vsel %vm477, nan, %v487
    %v489 = vand.u32 2147483647, %v174
    %vm490 = vcmp.le.f32.partialorder %v489, 0.7853982
    %vm491 = vcmp.lt.s32.totalorder %v174, 0
    %v492 = vand.u32 %v174, 2139095040
    %v493 = vshrl.u32 %v492, 23
    %v494 = vsub.s32 %v493, 127
    %v495 = vand.u32 2147483647, %v174
    %v496 = vand.u32 %v495, 8388607
    %v497 = vor.u32 %v496, 8388608
    %v498 = vsub.s32 0, %v497
    %v499 = vadd.s32 %v494, 1
    %vm500 = vcmp.gt.s32.totalorder %v499, 0
    %v501 = vsel %vm500, %v499, 0
    %v502 = vshrl.u32 %v501, 5
    %v503 = vand.u32 %v501, 31
    %v504 = vsub.s32 32, %v503
    %v505 = vshrl.u32 683565275, %v504
    %v506 = vshll.u32 683565275, %v503
    %v507 = vshrl.u32 2475754826, %v504
    %v508 = vor.u32 %v506, %v507
    %v509 = vshll.u32 2475754826, %v503
    %v510 = vshrl.u32 2131351028, %v504
    %v511 = vor.u32 %v509, %v510
    %v512 = vshll.u32 2131351028, %v503
    %v513 = vshrl.u32 2102212464, %v504
    %v514 = vor.u32 %v512, %v513
    %v515 = vshll.u32 2102212464, %v503
    %v516 = vshrl.u32 920167782, %v504
    %v517 = vor.u32 %v515, %v516
    %v518 = vshll.u32 920167782, %v503
    %v519 = vshrl.u32 1326507024, %v504
    %v520 = vor.u32 %v518, %v519
    %vm521 = vcmp.lt.s32.totalorder %v502, 1
    %vm522 = vcmp.lt.s32.totalorder %v502, 2
    %vm523 = vcmp.lt.s32.totalorder %v502, 3
    %vm524 = vcmp.lt.s32.totalorder %v502, 4
    %v525 = vsel %vm521, %v505, %v508
    %v526 = vsel %vm524, %v514, 2102212464
    %v527 = vsel %vm523, %v511, %v526
    %v528 = vsel %vm522, %v525, %v527
    %v529 = vsel %vm521, %v508, %v511
    %v530 = vsel %vm524, %v517, 920167782
    %v531 = vsel %vm523, %v514, %v530
    %v532 = vsel %vm522, %v529, %v531
    %v533 = vsel %vm521, %v511, %v514
    %v534 = vsel %vm524, %v520, 1326507024
    %v535 = vsel %vm523, %v517, %v534
    %v536 = vsel %vm522, %v533, %v535
    %v537 = vshll.u32 %v497, 8
    %v538 = vmul.u32.u64.compose %v537, %v536
    %v539 = vextract.low.u32 %v538
    %v540 = vextract.high.u32 %v538
    %v541 = vmul.u32.u64.compose %v537, %v532
    %v542 = vextract.low.u32 %v541
    %v543 = vextract.high.u32 %v541
    %v544 = vmul.u32 %v537, %v528
    %v545 = vadd.s32 %v540, %v542
    %vm546 = vc.u32 %v540, %v542
    %v547 = vadd.s32 %v543, 1
    %v548 = vsel %vm546, %v547, %v543
    %v549 = vadd.s32 %v544, %v548
    %v550 = vadd.s32 %v549, 536870912
    %v551 = vshrl.u32 %v550, 30
    %v552 = vshll.u32 %v551, 30
    %v553 = vsub.s32 %v549, %v552
    %vm554 = vcmp.lt.s32.totalorder %v553, 0
    %v555 = vsub.s32 0, %v553
    %v556 = vsel %vm554, %v555, %v553
    %v557 = vclz %v556
    %v558 = vsub.s32 %v557, 2
    %vm559 = vcmp.gt.s32.totalorder 0, %v558
    %v560 = vsel %vm559, 0, %v558
    %v561 = vsub.s32 32, %v560
    %v562 = vshll.u32 %v553, %v560
    %v563 = vshrl.u32 %v545, %v561
    %v564 = vor.u32 %v562, %v563
    %v565 = vsub.s32 4294967266, %v560
    %v566 = vadd.s32 %v565, 127
    %v567 = vshll.u32 %v566, 23
    %v568 = vor.u32 4788187, %v567
    %v569 = vand.u32 2147483647, %v568
    %v571 = vcvt.s32.f32 %v564
    %v572 = vmul.f32 %v571, %v569
    %v573 = vxor.u32 %v572, 2147483648
    %v574 = vsel %vm491, %v573, %v572
    %v575 = vsub.s32 4, %v551
    %v576 = vsel %vm491, %v575, %v551
    %v577 = vsel %vm490, %v174, %v574
    %v578 = vsel %vm490, 0, %v576
    %v579 = vcosq.f32.pop %v577
    %v580 = vsinq.f32.pop %v577
    %vm581 = vweird.f32 %v174
    %v582 = vadd.s32 %v578, 3
    %v583 = vand.u32 %v582, 3
    %vm584 = vcmp.lt.s32.totalorder %v583, 2
    %vm585 = vcmp.eq.s32.totalorder %v583, 0
    %v586 = vxor.u32 %v580, 2147483648
    %v587 = vsel %vm585, %v579, %v586
    %vm588 = vcmp.eq.s32.totalorder %v583, 2
    %v589 = vxor.u32 %v579, 2147483648
    %v590 = vsel %vm588, %v589, %v580
    %v591 = vsel %vm584, %v587, %v590
    %v592 = vsel %vm581, nan, %v591
    %v593 = vld [vmem:[#allocation3] sm:$0xff]
    %v594 = vld [vmem:[#allocation3 + $0x8] sm:$0xff]
    %v595 = vld [vmem:[#allocation3 + $0x10] sm:$0xff]
    %v596 = vld [vmem:[#allocation3 + $0x18] sm:$0xff]
    %597 = vset.pattern.permute.xlu0 1
    %598 = vperm.xlu0 %597, %v51
    %v599 = vpop.permute.xlu0 %598
    %601 = vset.pattern.permute.xlu0 1
    %602 = vperm.xlu0 %601, %v52
    %v603 = vpop.permute.xlu0 %602
    %605 = vset.pattern.permute.xlu0 1
    %606 = vperm.xlu0 %605, %v53
    %v607 = vpop.permute.xlu0 %606
    %609 = vset.pattern.permute.xlu0 1
    %610 = vperm.xlu0 %609, %v54
    %v611 = vpop.permute.xlu0 %610
    %vm613 = vcmask 261120
    %v615 = vsel %vm613, %v593, 0
    %v618 = vsel %vm613, %v594, 0
    %v621 = vsel %vm613, %v595, 0
    %v624 = vsel %vm613, %v596, 0
    %626 = vmatprep.subr.mxu0 0.0
    %627 = vmatpush1.msra.mxu0 %v280
    %628 = vmatprep.subr.mxu0 0.0
    %629 = vmatpush1.msra.mxu0 %v384
    %630 = vmatprep.subr.mxu0 0.0
    %631 = vmatpush1.msra.mxu0 %v488
    %632 = vmatprep.subr.mxu0 0.0
    %633 = vmatpush1.msra.mxu0 %v592
    %634 = vmatprep.subr.mxu0 0.0
    %635 = vmatpush1.msra.mxu0 0.0
    %636 = vmatprep.subr.mxu0 0.0
    %637 = vmatpush1.msra.mxu0 0.0
    %638 = vmatprep.subr.mxu0 0.0
    %639 = vmatpush1.msra.mxu0 0.0
    %640 = vmatprep.subr.mxu0 0.0
    %641 = vmatpush1.msra.mxu0 0.0
    %642 = vmatprep.subr.mxu0 0.0
    %643 = vmatpush1.msra.mxu0 0.0
    %644 = vmatprep.subr.mxu0 0.0
    %645 = vmatpush1.msra.mxu0 0.0
    %646 = vmatprep.subr.mxu0 0.0
    %647 = vmatpush1.msra.mxu0 0.0
    %648 = vmatprep.subr.mxu0 0.0
    %649 = vmatpush1.msra.mxu0 0.0
    %650 = vmatprep.subr.mxu0 0.0
    %651 = vmatpush1.msra.mxu0 0.0
    %652 = vmatprep.subr.mxu0 0.0
    %653 = vmatpush1.msra.mxu0 0.0
    %654 = vmatprep.subr.mxu0 0.0
    %655 = vmatpush1.msra.mxu0 0.0
    %656 = vmatprep.subr.mxu0 0.0
    %657 = vmatpush1.msra.mxu0 0.0
    %658 = vmatprep.subr.mxu0 0.0
    %659 = vmatpush1.msra.mxu0 0.0
    %660 = vmatprep.subr.mxu0 0.0
    %661 = vmatpush1.msra.mxu0 0.0
    %662 = vmatprep.subr.mxu0 0.0
    %663 = vmatpush1.msra.mxu0 0.0
    %664 = vmatprep.subr.mxu0 0.0
    %665 = vmatpush1.msra.mxu0 0.0
    %666 = vmatprep.subr.mxu0 0.0
    %667 = vmatpush1.msra.mxu0 0.0
    %668 = vmatprep.subr.mxu0 0.0
    %669 = vmatpush1.msra.mxu0 0.0
    %670 = vmatprep.subr.mxu0 0.0
    %671 = vmatpush1.msra.mxu0 0.0
    %672 = vmatprep.subr.mxu0 0.0
    %673 = vmatpush1.msra.mxu0 0.0
    %674 = vmatprep.subr.mxu0 0.0
    %675 = vmatpush1.msra.mxu0 0.0
    %676 = vmatprep.subr.mxu0 0.0
    %677 = vmatpush1.msra.mxu0 0.0
    %678 = vmatprep.subr.mxu0 0.0
    %679 = vmatpush1.msra.mxu0 0.0
    %680 = vmatprep.subr.mxu0 0.0
    %681 = vmatpush1.msra.mxu0 0.0
    %682 = vmatprep.subr.mxu0 0.0
    %683 = vmatpush1.msra.mxu0 0.0
    %684 = vmatprep.subr.mxu0 0.0
    %685 = vmatpush1.msra.mxu0 0.0
    %686 = vmatprep.subr.mxu0 0.0
    %687 = vmatpush1.msra.mxu0 0.0
    %688 = vmatprep.subr.mxu0 0.0
    %689 = vmatpush1.msra.mxu0 0.0
    %690 = vmatprep.mubr.f32.mxu0 0.0
    %691 = vmatmul.mubr.f32.gmra.mrb[0].mxu0 %v615
    %v692 = vpop.f32.mrb[0].mxu0
    %v693 = vadd.f32 %v599, %v692
    %v694 = vpop.f32.mrb[0].mxu0
    %695 = vmatprep.mubr.f32.mxu0 0.0
    %696 = vmatmul.mubr.f32.gmra.mrb[0].mxu0 %v618
    %v697 = vpop.f32.mrb[0].mxu0
    %v698 = vadd.f32 %v603, %v697
    %v699 = vpop.f32.mrb[0].mxu0
    %700 = vmatprep.mubr.f32.mxu0 0.0
    %701 = vmatmul.mubr.f32.gmra.mrb[0].mxu0 %v621
    %v702 = vpop.f32.mrb[0].mxu0
    %v703 = vadd.f32 %v607, %v702
    %v704 = vpop.f32.mrb[0].mxu0
    %705 = vmatprep.mubr.f32.mxu0 0.0
    %706 = vmatmul.mubr.f32.gmra.mrb[0].mxu0 %v624
    %v707 = vpop.f32.mrb[0].mxu0
    %v708 = vadd.f32 %v611, %v707
    %v709 = vpop.f32.mrb[0].mxu0
    %710 = vdwg.mxu0
    %v711 = vand.u32 2147483647, %v693
    %vm712 = vcmp.le.f32.partialorder %v711, 0.7853982
    %vm713 = vcmp.lt.s32.totalorder %v693, 0
    %v714 = vand.u32 %v693, 2139095040
    %v715 = vshrl.u32 %v714, 23
    %v716 = vsub.s32 %v715, 127
    %v717 = vand.u32 2147483647, %v693
    %v718 = vand.u32 %v717, 8388607
    %v719 = vor.u32 %v718, 8388608
    %v720 = vsub.s32 0, %v719
    %v721 = vadd.s32 %v716, 1
    %vm722 = vcmp.gt.s32.totalorder %v721, 0
    %v723 = vsel %vm722, %v721, 0
    %v724 = vshrl.u32 %v723, 5
    %v725 = vand.u32 %v723, 31
    %v726 = vsub.s32 32, %v725
    %v727 = vshrl.u32 683565275, %v726
    %v728 = vshll.u32 683565275, %v725
    %v729 = vshrl.u32 2475754826, %v726
    %v730 = vor.u32 %v728, %v729
    %v731 = vshll.u32 2475754826, %v725
    %v732 = vshrl.u32 2131351028, %v726
    %v733 = vor.u32 %v731, %v732
    %v734 = vshll.u32 2131351028, %v725
    %v735 = vshrl.u32 2102212464, %v726
    %v736 = vor.u32 %v734, %v735
    %v737 = vshll.u32 2102212464, %v725
    %v738 = vshrl.u32 920167782, %v726
    %v739 = vor.u32 %v737, %v738
    %v740 = vshll.u32 920167782, %v725
    %v741 = vshrl.u32 1326507024, %v726
    %v742 = vor.u32 %v740, %v741
    %vm743 = vcmp.lt.s32.totalorder %v724, 1
    %vm744 = vcmp.lt.s32.totalorder %v724, 2
    %vm745 = vcmp.lt.s32.totalorder %v724, 3
    %vm746 = vcmp.lt.s32.totalorder %v724, 4
    %v747 = vsel %vm743, %v727, %v730
    %v748 = vsel %vm746, %v736, 2102212464
    %v749 = vsel %vm745, %v733, %v748
    %v750 = vsel %vm744, %v747, %v749
    %v751 = vsel %vm743, %v730, %v733
    %v752 = vsel %vm746, %v739, 920167782
    %v753 = vsel %vm745, %v736, %v752
    %v754 = vsel %vm744, %v751, %v753
    %v755 = vsel %vm743, %v733, %v736
    %v756 = vsel %vm746, %v742, 1326507024
    %v757 = vsel %vm745, %v739, %v756
    %v758 = vsel %vm744, %v755, %v757
    %v759 = vshll.u32 %v719, 8
    %v760 = vmul.u32.u64.compose %v759, %v758
    %v761 = vextract.low.u32 %v760
    %v762 = vextract.high.u32 %v760
    %v763 = vmul.u32.u64.compose %v759, %v754
    %v764 = vextract.low.u32 %v763
    %v765 = vextract.high.u32 %v763
    %v766 = vmul.u32 %v759, %v750
    %v767 = vadd.s32 %v762, %v764
    %vm768 = vc.u32 %v762, %v764
    %v769 = vadd.s32 %v765, 1
    %v770 = vsel %vm768, %v769, %v765
    %v771 = vadd.s32 %v766, %v770
    %v772 = vadd.s32 %v771, 536870912
    %v773 = vshrl.u32 %v772, 30
    %v774 = vshll.u32 %v773, 30
    %v775 = vsub.s32 %v771, %v774
    %vm776 = vcmp.lt.s32.totalorder %v775, 0
    %v777 = vsub.s32 0, %v775
    %v778 = vsel %vm776, %v777, %v775
    %v779 = vclz %v778
    %v780 = vsub.s32 %v779, 2
    %vm781 = vcmp.gt.s32.totalorder 0, %v780
    %v782 = vsel %vm781, 0, %v780
    %v783 = vsub.s32 32, %v782
    %v784 = vshll.u32 %v775, %v782
    %v785 = vshrl.u32 %v767, %v783
    %v786 = vor.u32 %v784, %v785
    %v787 = vsub.s32 4294967266, %v782
    %v788 = vadd.s32 %v787, 127
    %v789 = vshll.u32 %v788, 23
    %v790 = vor.u32 4788187, %v789
    %v791 = vand.u32 2147483647, %v790
    %v793 = vcvt.s32.f32 %v786
    %v794 = vmul.f32 %v793, %v791
    %v795 = vxor.u32 %v794, 2147483648
    %v796 = vsel %vm713, %v795, %v794
    %v797 = vsub.s32 4, %v773
    %v798 = vsel %vm713, %v797, %v773
    %v799 = vsel %vm712, %v693, %v796
    %v800 = vsel %vm712, 0, %v798
    %v801 = vcosq.f32.pop %v799
    %v802 = vsinq.f32.pop %v799
    %vm803 = vweird.f32 %v693
    %v804 = vadd.s32 %v800, 3
    %v805 = vand.u32 %v804, 3
    %vm806 = vcmp.lt.s32.totalorder %v805, 2
    %vm807 = vcmp.eq.s32.totalorder %v805, 0
    %v808 = vxor.u32 %v802, 2147483648
    %v809 = vsel %vm807, %v801, %v808
    %vm810 = vcmp.eq.s32.totalorder %v805, 2
    %v811 = vxor.u32 %v801, 2147483648
    %v812 = vsel %vm810, %v811, %v802
    %v813 = vsel %vm806, %v809, %v812
    %v814 = vsel %vm803, nan, %v813
    %v815 = vand.u32 2147483647, %v698
    %vm816 = vcmp.le.f32.partialorder %v815, 0.7853982
    %vm817 = vcmp.lt.s32.totalorder %v698, 0
    %v818 = vand.u32 %v698, 2139095040
    %v819 = vshrl.u32 %v818, 23
    %v820 = vsub.s32 %v819, 127
    %v821 = vand.u32 2147483647, %v698
    %v822 = vand.u32 %v821, 8388607
    %v823 = vor.u32 %v822, 8388608
    %v824 = vsub.s32 0, %v823
    %v825 = vadd.s32 %v820, 1
    %vm826 = vcmp.gt.s32.totalorder %v825, 0
    %v827 = vsel %vm826, %v825, 0
    %v828 = vshrl.u32 %v827, 5
    %v829 = vand.u32 %v827, 31
    %v830 = vsub.s32 32, %v829
    %v831 = vshrl.u32 683565275, %v830
    %v832 = vshll.u32 683565275, %v829
    %v833 = vshrl.u32 2475754826, %v830
    %v834 = vor.u32 %v832, %v833
    %v835 = vshll.u32 2475754826, %v829
    %v836 = vshrl.u32 2131351028, %v830
    %v837 = vor.u32 %v835, %v836
    %v838 = vshll.u32 2131351028, %v829
    %v839 = vshrl.u32 2102212464, %v830
    %v840 = vor.u32 %v838, %v839
    %v841 = vshll.u32 2102212464, %v829
    %v842 = vshrl.u32 920167782, %v830
    %v843 = vor.u32 %v841, %v842
    %v844 = vshll.u32 920167782, %v829
    %v845 = vshrl.u32 1326507024, %v830
    %v846 = vor.u32 %v844, %v845
    %vm847 = vcmp.lt.s32.totalorder %v828, 1
    %vm848 = vcmp.lt.s32.totalorder %v828, 2
    %vm849 = vcmp.lt.s32.totalorder %v828, 3
    %vm850 = vcmp.lt.s32.totalorder %v828, 4
    %v851 = vsel %vm847, %v831, %v834
    %v852 = vsel %vm850, %v840, 2102212464
    %v853 = vsel %vm849, %v837, %v852
    %v854 = vsel %vm848, %v851, %v853
    %v855 = vsel %vm847, %v834, %v837
    %v856 = vsel %vm850, %v843, 920167782
    %v857 = vsel %vm849, %v840, %v856
    %v858 = vsel %vm848, %v855, %v857
    %v859 = vsel %vm847, %v837, %v840
    %v860 = vsel %vm850, %v846, 1326507024
    %v861 = vsel %vm849, %v843, %v860
    %v862 = vsel %vm848, %v859, %v861
    %v863 = vshll.u32 %v823, 8
    %v864 = vmul.u32.u64.compose %v863, %v862
    %v865 = vextract.low.u32 %v864
    %v866 = vextract.high.u32 %v864
    %v867 = vmul.u32.u64.compose %v863, %v858
    %v868 = vextract.low.u32 %v867
    %v869 = vextract.high.u32 %v867
    %v870 = vmul.u32 %v863, %v854
    %v871 = vadd.s32 %v866, %v868
    %vm872 = vc.u32 %v866, %v868
    %v873 = vadd.s32 %v869, 1
    %v874 = vsel %vm872, %v873, %v869
    %v875 = vadd.s32 %v870, %v874
    %v876 = vadd.s32 %v875, 536870912
    %v877 = vshrl.u32 %v876, 30
    %v878 = vshll.u32 %v877, 30
    %v879 = vsub.s32 %v875, %v878
    %vm880 = vcmp.lt.s32.totalorder %v879, 0
    %v881 = vsub.s32 0, %v879
    %v882 = vsel %vm880, %v881, %v879
    %v883 = vclz %v882
    %v884 = vsub.s32 %v883, 2
    %vm885 = vcmp.gt.s32.totalorder 0, %v884
    %v886 = vsel %vm885, 0, %v884
    %v887 = vsub.s32 32, %v886
    %v888 = vshll.u32 %v879, %v886
    %v889 = vshrl.u32 %v871, %v887
    %v890 = vor.u32 %v888, %v889
    %v891 = vsub.s32 4294967266, %v886
    %v892 = vadd.s32 %v891, 127
    %v893 = vshll.u32 %v892, 23
    %v894 = vor.u32 4788187, %v893
    %v895 = vand.u32 2147483647, %v894
    %v897 = vcvt.s32.f32 %v890
    %v898 = vmul.f32 %v897, %v895
    %v899 = vxor.u32 %v898, 2147483648
    %v900 = vsel %vm817, %v899, %v898
    %v901 = vsub.s32 4, %v877
    %v902 = vsel %vm817, %v901, %v877
    %v903 = vsel %vm816, %v698, %v900
    %v904 = vsel %vm816, 0, %v902
    %v905 = vcosq.f32.pop %v903
    %v906 = vsinq.f32.pop %v903
    %vm907 = vweird.f32 %v698
    %v908 = vadd.s32 %v904, 3
    %v909 = vand.u32 %v908, 3
    %vm910 = vcmp.lt.s32.totalorder %v909, 2
    %vm911 = vcmp.eq.s32.totalorder %v909, 0
    %v912 = vxor.u32 %v906, 2147483648
    %v913 = vsel %vm911, %v905, %v912
    %vm914 = vcmp.eq.s32.totalorder %v909, 2
    %v915 = vxor.u32 %v905, 2147483648
    %v916 = vsel %vm914, %v915, %v906
    %v917 = vsel %vm910, %v913, %v916
    %v918 = vsel %vm907, nan, %v917
    %v919 = vand.u32 2147483647, %v703
    %vm920 = vcmp.le.f32.partialorder %v919, 0.7853982
    %vm921 = vcmp.lt.s32.totalorder %v703, 0
    %v922 = vand.u32 %v703, 2139095040
    %v923 = vshrl.u32 %v922, 23
    %v924 = vsub.s32 %v923, 127
    %v925 = vand.u32 2147483647, %v703
    %v926 = vand.u32 %v925, 8388607
    %v927 = vor.u32 %v926, 8388608
    %v928 = vsub.s32 0, %v927
    %v929 = vadd.s32 %v924, 1
    %vm930 = vcmp.gt.s32.totalorder %v929, 0
    %v931 = vsel %vm930, %v929, 0
    %v932 = vshrl.u32 %v931, 5
    %v933 = vand.u32 %v931, 31
    %v934 = vsub.s32 32, %v933
    %v935 = vshrl.u32 683565275, %v934
    %v936 = vshll.u32 683565275, %v933
    %v937 = vshrl.u32 2475754826, %v934
    %v938 = vor.u32 %v936, %v937
    %v939 = vshll.u32 2475754826, %v933
    %v940 = vshrl.u32 2131351028, %v934
    %v941 = vor.u32 %v939, %v940
    %v942 = vshll.u32 2131351028, %v933
    %v943 = vshrl.u32 2102212464, %v934
    %v944 = vor.u32 %v942, %v943
    %v945 = vshll.u32 2102212464, %v933
    %v946 = vshrl.u32 920167782, %v934
    %v947 = vor.u32 %v945, %v946
    %v948 = vshll.u32 920167782, %v933
    %v949 = vshrl.u32 1326507024, %v934
    %v950 = vor.u32 %v948, %v949
    %vm951 = vcmp.lt.s32.totalorder %v932, 1
    %vm952 = vcmp.lt.s32.totalorder %v932, 2
    %vm953 = vcmp.lt.s32.totalorder %v932, 3
    %vm954 = vcmp.lt.s32.totalorder %v932, 4
    %v955 = vsel %vm951, %v935, %v938
    %v956 = vsel %vm954, %v944, 2102212464
    %v957 = vsel %vm953, %v941, %v956
    %v958 = vsel %vm952, %v955, %v957
    %v959 = vsel %vm951, %v938, %v941
    %v960 = vsel %vm954, %v947, 920167782
    %v961 = vsel %vm953, %v944, %v960
    %v962 = vsel %vm952, %v959, %v961
    %v963 = vsel %vm951, %v941, %v944
    %v964 = vsel %vm954, %v950, 1326507024
    %v965 = vsel %vm953, %v947, %v964
    %v966 = vsel %vm952, %v963, %v965
    %v967 = vshll.u32 %v927, 8
    %v968 = vmul.u32.u64.compose %v967, %v966
    %v969 = vextract.low.u32 %v968
    %v970 = vextract.high.u32 %v968
    %v971 = vmul.u32.u64.compose %v967, %v962
    %v972 = vextract.low.u32 %v971
    %v973 = vextract.high.u32 %v971
    %v974 = vmul.u32 %v967, %v958
    %v975 = vadd.s32 %v970, %v972
    %vm976 = vc.u32 %v970, %v972
    %v977 = vadd.s32 %v973, 1
    %v978 = vsel %vm976, %v977, %v973
    %v979 = vadd.s32 %v974, %v978
    %v980 = vadd.s32 %v979, 536870912
    %v981 = vshrl.u32 %v980, 30
    %v982 = vshll.u32 %v981, 30
    %v983 = vsub.s32 %v979, %v982
    %vm984 = vcmp.lt.s32.totalorder %v983, 0
    %v985 = vsub.s32 0, %v983
    %v986 = vsel %vm984, %v985, %v983
    %v987 = vclz %v986
    %v988 = vsub.s32 %v987, 2
    %vm989 = vcmp.gt.s32.totalorder 0, %v988
    %v990 = vsel %vm989, 0, %v988
    %v991 = vsub.s32 32, %v990
    %v992 = vshll.u32 %v983, %v990
    %v993 = vshrl.u32 %v975, %v991
    %v994 = vor.u32 %v992, %v993
    %v995 = vsub.s32 4294967266, %v990
    %v996 = vadd.s32 %v995, 127
    %v997 = vshll.u32 %v996, 23
    %v998 = vor.u32 4788187, %v997
    %v999 = vand.u32 2147483647, %v998
    %v1001 = vcvt.s32.f32 %v994
    %v1002 = vmul.f32 %v1001, %v999
    %v1003 = vxor.u32 %v1002, 2147483648
    %v1004 = vsel %vm921, %v1003, %v1002
    %v1005 = vsub.s32 4, %v981
    %v1006 = vsel %vm921, %v1005, %v981
    %v1007 = vsel %vm920, %v703, %v1004
    %v1008 = vsel %vm920, 0, %v1006
    %v1009 = vcosq.f32.pop %v1007
    %v1010 = vsinq.f32.pop %v1007
    %vm1011 = vweird.f32 %v703
    %v1012 = vadd.s32 %v1008, 3
    %v1013 = vand.u32 %v1012, 3
    %vm1014 = vcmp.lt.s32.totalorder %v1013, 2
    %vm1015 = vcmp.eq.s32.totalorder %v1013, 0
    %v1016 = vxor.u32 %v1010, 2147483648
    %v1017 = vsel %vm1015, %v1009, %v1016
    %vm1018 = vcmp.eq.s32.totalorder %v1013, 2
    %v1019 = vxor.u32 %v1009, 2147483648
    %v1020 = vsel %vm1018, %v1019, %v1010
    %v1021 = vsel %vm1014, %v1017, %v1020
    %v1022 = vsel %vm1011, nan, %v1021
    %v1023 = vand.u32 2147483647, %v708
    %vm1024 = vcmp.le.f32.partialorder %v1023, 0.7853982
    %vm1025 = vcmp.lt.s32.totalorder %v708, 0
    %v1026 = vand.u32 %v708, 2139095040
    %v1027 = vshrl.u32 %v1026, 23
    %v1028 = vsub.s32 %v1027, 127
    %v1029 = vand.u32 2147483647, %v708
    %v1030 = vand.u32 %v1029, 8388607
    %v1031 = vor.u32 %v1030, 8388608
    %v1032 = vsub.s32 0, %v1031
    %v1033 = vadd.s32 %v1028, 1
    %vm1034 = vcmp.gt.s32.totalorder %v1033, 0
    %v1035 = vsel %vm1034, %v1033, 0
    %v1036 = vshrl.u32 %v1035, 5
    %v1037 = vand.u32 %v1035, 31
    %v1038 = vsub.s32 32, %v1037
    %v1039 = vshrl.u32 683565275, %v1038
    %v1040 = vshll.u32 683565275, %v1037
    %v1041 = vshrl.u32 2475754826, %v1038
    %v1042 = vor.u32 %v1040, %v1041
    %v1043 = vshll.u32 2475754826, %v1037
    %v1044 = vshrl.u32 2131351028, %v1038
    %v1045 = vor.u32 %v1043, %v1044
    %v1046 = vshll.u32 2131351028, %v1037
    %v1047 = vshrl.u32 2102212464, %v1038
    %v1048 = vor.u32 %v1046, %v1047
    %v1049 = vshll.u32 2102212464, %v1037
    %v1050 = vshrl.u32 920167782, %v1038
    %v1051 = vor.u32 %v1049, %v1050
    %v1052 = vshll.u32 920167782, %v1037
    %v1053 = vshrl.u32 1326507024, %v1038
    %v1054 = vor.u32 %v1052, %v1053
    %vm1055 = vcmp.lt.s32.totalorder %v1036, 1
    %vm1056 = vcmp.lt.s32.totalorder %v1036, 2
    %vm1057 = vcmp.lt.s32.totalorder %v1036, 3
    %vm1058 = vcmp.lt.s32.totalorder %v1036, 4
    %v1059 = vsel %vm1055, %v1039, %v1042
    %v1060 = vsel %vm1058, %v1048, 2102212464
    %v1061 = vsel %vm1057, %v1045, %v1060
    %v1062 = vsel %vm1056, %v1059, %v1061
    %v1063 = vsel %vm1055, %v1042, %v1045
    %v1064 = vsel %vm1058, %v1051, 920167782
    %v1065 = vsel %vm1057, %v1048, %v1064
    %v1066 = vsel %vm1056, %v1063, %v1065
    %v1067 = vsel %vm1055, %v1045, %v1048
    %v1068 = vsel %vm1058, %v1054, 1326507024
    %v1069 = vsel %vm1057, %v1051, %v1068
    %v1070 = vsel %vm1056, %v1067, %v1069
    %v1071 = vshll.u32 %v1031, 8
    %v1072 = vmul.u32.u64.compose %v1071, %v1070
    %v1073 = vextract.low.u32 %v1072
    %v1074 = vextract.high.u32 %v1072
    %v1075 = vmul.u32.u64.compose %v1071, %v1066
    %v1076 = vextract.low.u32 %v1075
    %v1077 = vextract.high.u32 %v1075
    %v1078 = vmul.u32 %v1071, %v1062
    %v1079 = vadd.s32 %v1074, %v1076
    %vm1080 = vc.u32 %v1074, %v1076
    %v1081 = vadd.s32 %v1077, 1
    %v1082 = vsel %vm1080, %v1081, %v1077
    %v1083 = vadd.s32 %v1078, %v1082
    %v1084 = vadd.s32 %v1083, 536870912
    %v1085 = vshrl.u32 %v1084, 30
    %v1086 = vshll.u32 %v1085, 30
    %v1087 = vsub.s32 %v1083, %v1086
    %vm1088 = vcmp.lt.s32.totalorder %v1087, 0
    %v1089 = vsub.s32 0, %v1087
    %v1090 = vsel %vm1088, %v1089, %v1087
    %v1091 = vclz %v1090
    %v1092 = vsub.s32 %v1091, 2
    %vm1093 = vcmp.gt.s32.totalorder 0, %v1092
    %v1094 = vsel %vm1093, 0, %v1092
    %v1095 = vsub.s32 32, %v1094
    %v1096 = vshll.u32 %v1087, %v1094
    %v1097 = vshrl.u32 %v1079, %v1095
    %v1098 = vor.u32 %v1096, %v1097
    %v1099 = vsub.s32 4294967266, %v1094
    %v1100 = vadd.s32 %v1099, 127
    %v1101 = vshll.u32 %v1100, 23
    %v1102 = vor.u32 4788187, %v1101
    %v1103 = vand.u32 2147483647, %v1102
    %v1105 = vcvt.s32.f32 %v1098
    %v1106 = vmul.f32 %v1105, %v1103
    %v1107 = vxor.u32 %v1106, 2147483648
    %v1108 = vsel %vm1025, %v1107, %v1106
    %v1109 = vsub.s32 4, %v1085
    %v1110 = vsel %vm1025, %v1109, %v1085
    %v1111 = vsel %vm1024, %v708, %v1108
    %v1112 = vsel %vm1024, 0, %v1110
    %v1113 = vcosq.f32.pop %v1111
    %v1114 = vsinq.f32.pop %v1111
    %vm1115 = vweird.f32 %v708
    %v1116 = vadd.s32 %v1112, 3
    %v1117 = vand.u32 %v1116, 3
    %vm1118 = vcmp.lt.s32.totalorder %v1117, 2
    %vm1119 = vcmp.eq.s32.totalorder %v1117, 0
    %v1120 = vxor.u32 %v1114, 2147483648
    %v1121 = vsel %vm1119, %v1113, %v1120
    %vm1122 = vcmp.eq.s32.totalorder %v1117, 2
    %v1123 = vxor.u32 %v1113, 2147483648
    %v1124 = vsel %vm1122, %v1123, %v1114
    %v1125 = vsel %vm1118, %v1121, %v1124
    %v1126 = vsel %vm1115, nan, %v1125
    %s1127 = scalar_lea.vmem [#allocation3], 32
    %v1128 = vld [vmem:[%s1127] sm:$0xff]
    %v1129 = vld [vmem:[%s1127 + $0x8] sm:$0xff]
    %v1130 = vld [vmem:[%s1127 + $0x10] sm:$0xff]
    %v1131 = vld [vmem:[%s1127 + $0x18] sm:$0xff]
    %1132 = vset.pattern.permute.xlu0 2
    %1133 = vperm.xlu0 %1132, %v51
    %v1134 = vpop.permute.xlu0 %1133
    %1136 = vset.pattern.permute.xlu0 2
    %1137 = vperm.xlu0 %1136, %v52
    %v1138 = vpop.permute.xlu0 %1137
    %1140 = vset.pattern.permute.xlu0 2
    %1141 = vperm.xlu0 %1140, %v53
    %v1142 = vpop.permute.xlu0 %1141
    %1144 = vset.pattern.permute.xlu0 2
    %1145 = vperm.xlu0 %1144, %v54
    %v1146 = vpop.permute.xlu0 %1145
    %v1149 = vsel %vm613, %v1128, 0
    %v1152 = vsel %vm613, %v1129, 0
    %v1155 = vsel %vm613, %v1130, 0
    %v1158 = vsel %vm613, %v1131, 0
    %1160 = vmatprep.subr.mxu0 0.0
    %1161 = vmatpush1.msra.mxu0 %v814
    %1162 = vmatprep.subr.mxu0 0.0
    %1163 = vmatpush1.msra.mxu0 %v918
    %1164 = vmatprep.subr.mxu0 0.0
    %1165 = vmatpush1.msra.mxu0 %v1022
    %1166 = vmatprep.subr.mxu0 0.0
    %1167 = vmatpush1.msra.mxu0 %v1126
    %1168 = vmatprep.subr.mxu0 0.0
    %1169 = vmatpush1.msra.mxu0 0.0
    %1170 = vmatprep.subr.mxu0 0.0
    %1171 = vmatpush1.msra.mxu0 0.0
    %1172 = vmatprep.subr.mxu0 0.0
    %1173 = vmatpush1.msra.mxu0 0.0
    %1174 = vmatprep.subr.mxu0 0.0
    %1175 = vmatpush1.msra.mxu0 0.0
    %1176 = vmatprep.subr.mxu0 0.0
    %1177 = vmatpush1.msra.mxu0 0.0
    %1178 = vmatprep.subr.mxu0 0.0
    %1179 = vmatpush1.msra.mxu0 0.0
    %1180 = vmatprep.subr.mxu0 0.0
    %1181 = vmatpush1.msra.mxu0 0.0
    %1182 = vmatprep.subr.mxu0 0.0
    %1183 = vmatpush1.msra.mxu0 0.0
    %1184 = vmatprep.subr.mxu0 0.0
    %1185 = vmatpush1.msra.mxu0 0.0
    %1186 = vmatprep.subr.mxu0 0.0
    %1187 = vmatpush1.msra.mxu0 0.0
    %1188 = vmatprep.subr.mxu0 0.0
    %1189 = vmatpush1.msra.mxu0 0.0
    %1190 = vmatprep.subr.mxu0 0.0
    %1191 = vmatpush1.msra.mxu0 0.0
    %1192 = vmatprep.subr.mxu0 0.0
    %1193 = vmatpush1.msra.mxu0 0.0
    %1194 = vmatprep.subr.mxu0 0.0
    %1195 = vmatpush1.msra.mxu0 0.0
    %1196 = vmatprep.subr.mxu0 0.0
    %1197 = vmatpush1.msra.mxu0 0.0
    %1198 = vmatprep.subr.mxu0 0.0
    %1199 = vmatpush1.msra.mxu0 0.0
    %1200 = vmatprep.subr.mxu0 0.0
    %1201 = vmatpush1.msra.mxu0 0.0
    %1202 = vmatprep.subr.mxu0 0.0
    %1203 = vmatpush1.msra.mxu0 0.0
    %1204 = vmatprep.subr.mxu0 0.0
    %1205 = vmatpush1.msra.mxu0 0.0
    %1206 = vmatprep.subr.mxu0 0.0
    %1207 = vmatpush1.msra.mxu0 0.0
    %1208 = vmatprep.subr.mxu0 0.0
    %1209 = vmatpush1.msra.mxu0 0.0
    %1210 = vmatprep.subr.mxu0 0.0
    %1211 = vmatpush1.msra.mxu0 0.0
    %1212 = vmatprep.subr.mxu0 0.0
    %1213 = vmatpush1.msra.mxu0 0.0
    %1214 = vmatprep.subr.mxu0 0.0
    %1215 = vmatpush1.msra.mxu0 0.0
    %1216 = vmatprep.subr.mxu0 0.0
    %1217 = vmatpush1.msra.mxu0 0.0
    %1218 = vmatprep.subr.mxu0 0.0
    %1219 = vmatpush1.msra.mxu0 0.0
    %1220 = vmatprep.subr.mxu0 0.0
    %1221 = vmatpush1.msra.mxu0 0.0
    %1222 = vmatprep.subr.mxu0 0.0
    %1223 = vmatpush1.msra.mxu0 0.0
    %1224 = vmatprep.mubr.f32.mxu0 0.0
    %1225 = vmatmul.mubr.f32.gmra.mrb[0].mxu0 %v1149
    %v1226 = vpop.f32.mrb[0].mxu0
    %v1227 = vadd.f32 %v1134, %v1226
    %v1228 = vpop.f32.mrb[0].mxu0
    %1229 = vmatprep.mubr.f32.mxu0 0.0
    %1230 = vmatmul.mubr.f32.gmra.mrb[0].mxu0 %v1152
    %v1231 = vpop.f32.mrb[0].mxu0
    %v1232 = vadd.f32 %v1138, %v1231
    %v1233 = vpop.f32.mrb[0].mxu0
    %1234 = vmatprep.mubr.f32.mxu0 0.0
    %1235 = vmatmul.mubr.f32.gmra.mrb[0].mxu0 %v1155
    %v1236 = vpop.f32.mrb[0].mxu0
    %v1237 = vadd.f32 %v1142, %v1236
    %v1238 = vpop.f32.mrb[0].mxu0
    %1239 = vmatprep.mubr.f32.mxu0 0.0
    %1240 = vmatmul.mubr.f32.gmra.mrb[0].mxu0 %v1158
    %v1241 = vpop.f32.mrb[0].mxu0
    %v1242 = vadd.f32 %v1146, %v1241
    %v1243 = vpop.f32.mrb[0].mxu0
    %1244 = vdwg.mxu0
    %v1245 = vand.u32 2147483647, %v1227
    %vm1246 = vcmp.le.f32.partialorder %v1245, 0.7853982
    %vm1247 = vcmp.lt.s32.totalorder %v1227, 0
    %v1248 = vand.u32 %v1227, 2139095040
    %v1249 = vshrl.u32 %v1248, 23
    %v1250 = vsub.s32 %v1249, 127
    %v1251 = vand.u32 2147483647, %v1227
    %v1252 = vand.u32 %v1251, 8388607
    %v1253 = vor.u32 %v1252, 8388608
    %v1254 = vsub.s32 0, %v1253
    %v1255 = vadd.s32 %v1250, 1
    %vm1256 = vcmp.gt.s32.totalorder %v1255, 0
    %v1257 = vsel %vm1256, %v1255, 0
    %v1258 = vshrl.u32 %v1257, 5
    %v1259 = vand.u32 %v1257, 31
    %v1260 = vsub.s32 32, %v1259
    %v1261 = vshrl.u32 683565275, %v1260
    %v1262 = vshll.u32 683565275, %v1259
    %v1263 = vshrl.u32 2475754826, %v1260
    %v1264 = vor.u32 %v1262, %v1263
    %v1265 = vshll.u32 2475754826, %v1259
    %v1266 = vshrl.u32 2131351028, %v1260
    %v1267 = vor.u32 %v1265, %v1266
    %v1268 = vshll.u32 2131351028, %v1259
    %v1269 = vshrl.u32 2102212464, %v1260
    %v1270 = vor.u32 %v1268, %v1269
    %v1271 = vshll.u32 2102212464, %v1259
    %v1272 = vshrl.u32 920167782, %v1260
    %v1273 = vor.u32 %v1271, %v1272
    %v1274 = vshll.u32 920167782, %v1259
    %v1275 = vshrl.u32 1326507024, %v1260
    %v1276 = vor.u32 %v1274, %v1275
    %vm1277 = vcmp.lt.s32.totalorder %v1258, 1
    %vm1278 = vcmp.lt.s32.totalorder %v1258, 2
    %vm1279 = vcmp.lt.s32.totalorder %v1258, 3
    %vm1280 = vcmp.lt.s32.totalorder %v1258, 4
    %v1281 = vsel %vm1277, %v1261, %v1264
    %v1282 = vsel %vm1280, %v1270, 2102212464
    %v1283 = vsel %vm1279, %v1267, %v1282
    %v1284 = vsel %vm1278, %v1281, %v1283
    %v1285 = vsel %vm1277, %v1264, %v1267
    %v1286 = vsel %vm1280, %v1273, 920167782
    %v1287 = vsel %vm1279, %v1270, %v1286
    %v1288 = vsel %vm1278, %v1285, %v1287
    %v1289 = vsel %vm1277, %v1267, %v1270
    %v1290 = vsel %vm1280, %v1276, 1326507024
    %v1291 = vsel %vm1279, %v1273, %v1290
    %v1292 = vsel %vm1278, %v1289, %v1291
    %v1293 = vshll.u32 %v1253, 8
    %v1294 = vmul.u32.u64.compose %v1293, %v1292
    %v1295 = vextract.low.u32 %v1294
    %v1296 = vextract.high.u32 %v1294
    %v1297 = vmul.u32.u64.compose %v1293, %v1288
    %v1298 = vextract.low.u32 %v1297
    %v1299 = vextract.high.u32 %v1297
    %v1300 = vmul.u32 %v1293, %v1284
    %v1301 = vadd.s32 %v1296, %v1298
    %vm1302 = vc.u32 %v1296, %v1298
    %v1303 = vadd.s32 %v1299, 1
    %v1304 = vsel %vm1302, %v1303, %v1299
    %v1305 = vadd.s32 %v1300, %v1304
    %v1306 = vadd.s32 %v1305, 536870912
    %v1307 = vshrl.u32 %v1306, 30
    %v1308 = vshll.u32 %v1307, 30
    %v1309 = vsub.s32 %v1305, %v1308
    %vm1310 = vcmp.lt.s32.totalorder %v1309, 0
    %v1311 = vsub.s32 0, %v1309
    %v1312 = vsel %vm1310, %v1311, %v1309
    %v1313 = vclz %v1312
    %v1314 = vsub.s32 %v1313, 2
    %vm1315 = vcmp.gt.s32.totalorder 0, %v1314
    %v1316 = vsel %vm1315, 0, %v1314
    %v1317 = vsub.s32 32, %v1316
    %v1318 = vshll.u32 %v1309, %v1316
    %v1319 = vshrl.u32 %v1301, %v1317
    %v1320 = vor.u32 %v1318, %v1319
    %v1321 = vsub.s32 4294967266, %v1316
    %v1322 = vadd.s32 %v1321, 127
    %v1323 = vshll.u32 %v1322, 23
    %v1324 = vor.u32 4788187, %v1323
    %v1325 = vand.u32 2147483647, %v1324
    %v1327 = vcvt.s32.f32 %v1320
    %v1328 = vmul.f32 %v1327, %v1325
    %v1329 = vxor.u32 %v1328, 2147483648
    %v1330 = vsel %vm1247, %v1329, %v1328
    %v1331 = vsub.s32 4, %v1307
    %v1332 = vsel %vm1247, %v1331, %v1307
    %v1333 = vsel %vm1246, %v1227, %v1330
    %v1334 = vsel %vm1246, 0, %v1332
    %v1335 = vcosq.f32.pop %v1333
    %v1336 = vsinq.f32.pop %v1333
    %vm1337 = vweird.f32 %v1227
    %v1338 = vadd.s32 %v1334, 3
    %v1339 = vand.u32 %v1338, 3
    %vm1340 = vcmp.lt.s32.totalorder %v1339, 2
    %vm1341 = vcmp.eq.s32.totalorder %v1339, 0
    %v1342 = vxor.u32 %v1336, 2147483648
    %v1343 = vsel %vm1341, %v1335, %v1342
    %vm1344 = vcmp.eq.s32.totalorder %v1339, 2
    %v1345 = vxor.u32 %v1335, 2147483648
    %v1346 = vsel %vm1344, %v1345, %v1336
    %v1347 = vsel %vm1340, %v1343, %v1346
    %v1348 = vsel %vm1337, nan, %v1347
    %v1349 = vand.u32 2147483647, %v1232
    %vm1350 = vcmp.le.f32.partialorder %v1349, 0.7853982
    %vm1351 = vcmp.lt.s32.totalorder %v1232, 0
    %v1352 = vand.u32 %v1232, 2139095040
    %v1353 = vshrl.u32 %v1352, 23
    %v1354 = vsub.s32 %v1353, 127
    %v1355 = vand.u32 2147483647, %v1232
    %v1356 = vand.u32 %v1355, 8388607
    %v1357 = vor.u32 %v1356, 8388608
    %v1358 = vsub.s32 0, %v1357
    %v1359 = vadd.s32 %v1354, 1
    %vm1360 = vcmp.gt.s32.totalorder %v1359, 0
    %v1361 = vsel %vm1360, %v1359, 0
    %v1362 = vshrl.u32 %v1361, 5
    %v1363 = vand.u32 %v1361, 31
    %v1364 = vsub.s32 32, %v1363
    %v1365 = vshrl.u32 683565275, %v1364
    %v1366 = vshll.u32 683565275, %v1363
    %v1367 = vshrl.u32 2475754826, %v1364
    %v1368 = vor.u32 %v1366, %v1367
    %v1369 = vshll.u32 2475754826, %v1363
    %v1370 = vshrl.u32 2131351028, %v1364
    %v1371 = vor.u32 %v1369, %v1370
    %v1372 = vshll.u32 2131351028, %v1363
    %v1373 = vshrl.u32 2102212464, %v1364
    %v1374 = vor.u32 %v1372, %v1373
    %v1375 = vshll.u32 2102212464, %v1363
    %v1376 = vshrl.u32 920167782, %v1364
    %v1377 = vor.u32 %v1375, %v1376
    %v1378 = vshll.u32 920167782, %v1363
    %v1379 = vshrl.u32 1326507024, %v1364
    %v1380 = vor.u32 %v1378, %v1379
    %vm1381 = vcmp.lt.s32.totalorder %v1362, 1
    %vm1382 = vcmp.lt.s32.totalorder %v1362, 2
    %vm1383 = vcmp.lt.s32.totalorder %v1362, 3
    %vm1384 = vcmp.lt.s32.totalorder %v1362, 4
    %v1385 = vsel %vm1381, %v1365, %v1368
    %v1386 = vsel %vm1384, %v1374, 2102212464
    %v1387 = vsel %vm1383, %v1371, %v1386
    %v1388 = vsel %vm1382, %v1385, %v1387
    %v1389 = vsel %vm1381, %v1368, %v1371
    %v1390 = vsel %vm1384, %v1377, 920167782
    %v1391 = vsel %vm1383, %v1374, %v1390
    %v1392 = vsel %vm1382, %v1389, %v1391
    %v1393 = vsel %vm1381, %v1371, %v1374
    %v1394 = vsel %vm1384, %v1380, 1326507024
    %v1395 = vsel %vm1383, %v1377, %v1394
    %v1396 = vsel %vm1382, %v1393, %v1395
    %v1397 = vshll.u32 %v1357, 8
    %v1398 = vmul.u32.u64.compose %v1397, %v1396
    %v1399 = vextract.low.u32 %v1398
    %v1400 = vextract.high.u32 %v1398
    %v1401 = vmul.u32.u64.compose %v1397, %v1392
    %v1402 = vextract.low.u32 %v1401
    %v1403 = vextract.high.u32 %v1401
    %v1404 = vmul.u32 %v1397, %v1388
    %v1405 = vadd.s32 %v1400, %v1402
    %vm1406 = vc.u32 %v1400, %v1402
    %v1407 = vadd.s32 %v1403, 1
    %v1408 = vsel %vm1406, %v1407, %v1403
    %v1409 = vadd.s32 %v1404, %v1408
    %v1410 = vadd.s32 %v1409, 536870912
    %v1411 = vshrl.u32 %v1410, 30
    %v1412 = vshll.u32 %v1411, 30
    %v1413 = vsub.s32 %v1409, %v1412
    %vm1414 = vcmp.lt.s32.totalorder %v1413, 0
    %v1415 = vsub.s32 0, %v1413
    %v1416 = vsel %vm1414, %v1415, %v1413
    %v1417 = vclz %v1416
    %v1418 = vsub.s32 %v1417, 2
    %vm1419 = vcmp.gt.s32.totalorder 0, %v1418
    %v1420 = vsel %vm1419, 0, %v1418
    %v1421 = vsub.s32 32, %v1420
    %v1422 = vshll.u32 %v1413, %v1420
    %v1423 = vshrl.u32 %v1405, %v1421
    %v1424 = vor.u32 %v1422, %v1423
    %v1425 = vsub.s32 4294967266, %v1420
    %v1426 = vadd.s32 %v1425, 127
    %v1427 = vshll.u32 %v1426, 23
    %v1428 = vor.u32 4788187, %v1427
    %v1429 = vand.u32 2147483647, %v1428
    %v1431 = vcvt.s32.f32 %v1424
    %v1432 = vmul.f32 %v1431, %v1429
    %v1433 = vxor.u32 %v1432, 2147483648
    %v1434 = vsel %vm1351, %v1433, %v1432
    %v1435 = vsub.s32 4, %v1411
    %v1436 = vsel %vm1351, %v1435, %v1411
    %v1437 = vsel %vm1350, %v1232, %v1434
    %v1438 = vsel %vm1350, 0, %v1436
    %v1439 = vcosq.f32.pop %v1437
    %v1440 = vsinq.f32.pop %v1437
    %vm1441 = vweird.f32 %v1232
    %v1442 = vadd.s32 %v1438, 3
    %v1443 = vand.u32 %v1442, 3
    %vm1444 = vcmp.lt.s32.totalorder %v1443, 2
    %vm1445 = vcmp.eq.s32.totalorder %v1443, 0
    %v1446 = vxor.u32 %v1440, 2147483648
    %v1447 = vsel %vm1445, %v1439, %v1446
    %vm1448 = vcmp.eq.s32.totalorder %v1443, 2
    %v1449 = vxor.u32 %v1439, 2147483648
    %v1450 = vsel %vm1448, %v1449, %v1440
    %v1451 = vsel %vm1444, %v1447, %v1450
    %v1452 = vsel %vm1441, nan, %v1451
    %v1453 = vand.u32 2147483647, %v1237
    %vm1454 = vcmp.le.f32.partialorder %v1453, 0.7853982
    %vm1455 = vcmp.lt.s32.totalorder %v1237, 0
    %v1456 = vand.u32 %v1237, 2139095040
    %v1457 = vshrl.u32 %v1456, 23
    %v1458 = vsub.s32 %v1457, 127
    %v1459 = vand.u32 2147483647, %v1237
    %v1460 = vand.u32 %v1459, 8388607
    %v1461 = vor.u32 %v1460, 8388608
    %v1462 = vsub.s32 0, %v1461
    %v1463 = vadd.s32 %v1458, 1
    %vm1464 = vcmp.gt.s32.totalorder %v1463, 0
    %v1465 = vsel %vm1464, %v1463, 0
    %v1466 = vshrl.u32 %v1465, 5
    %v1467 = vand.u32 %v1465, 31
    %v1468 = vsub.s32 32, %v1467
    %v1469 = vshrl.u32 683565275, %v1468
    %v1470 = vshll.u32 683565275, %v1467
    %v1471 = vshrl.u32 2475754826, %v1468
    %v1472 = vor.u32 %v1470, %v1471
    %v1473 = vshll.u32 2475754826, %v1467
    %v1474 = vshrl.u32 2131351028, %v1468
    %v1475 = vor.u32 %v1473, %v1474
    %v1476 = vshll.u32 2131351028, %v1467
    %v1477 = vshrl.u32 2102212464, %v1468
    %v1478 = vor.u32 %v1476, %v1477
    %v1479 = vshll.u32 2102212464, %v1467
    %v1480 = vshrl.u32 920167782, %v1468
    %v1481 = vor.u32 %v1479, %v1480
    %v1482 = vshll.u32 920167782, %v1467
    %v1483 = vshrl.u32 1326507024, %v1468
    %v1484 = vor.u32 %v1482, %v1483
    %vm1485 = vcmp.lt.s32.totalorder %v1466, 1
    %vm1486 = vcmp.lt.s32.totalorder %v1466, 2
    %vm1487 = vcmp.lt.s32.totalorder %v1466, 3
    %vm1488 = vcmp.lt.s32.totalorder %v1466, 4
    %v1489 = vsel %vm1485, %v1469, %v1472
    %v1490 = vsel %vm1488, %v1478, 2102212464
    %v1491 = vsel %vm1487, %v1475, %v1490
    %v1492 = vsel %vm1486, %v1489, %v1491
    %v1493 = vsel %vm1485, %v1472, %v1475
    %v1494 = vsel %vm1488, %v1481, 920167782
    %v1495 = vsel %vm1487, %v1478, %v1494
    %v1496 = vsel %vm1486, %v1493, %v1495
    %v1497 = vsel %vm1485, %v1475, %v1478
    %v1498 = vsel %vm1488, %v1484, 1326507024
    %v1499 = vsel %vm1487, %v1481, %v1498
    %v1500 = vsel %vm1486, %v1497, %v1499
    %v1501 = vshll.u32 %v1461, 8
    %v1502 = vmul.u32.u64.compose %v1501, %v1500
    %v1503 = vextract.low.u32 %v1502
    %v1504 = vextract.high.u32 %v1502
    %v1505 = vmul.u32.u64.compose %v1501, %v1496
    %v1506 = vextract.low.u32 %v1505
    %v1507 = vextract.high.u32 %v1505
    %v1508 = vmul.u32 %v1501, %v1492
    %v1509 = vadd.s32 %v1504, %v1506
    %vm1510 = vc.u32 %v1504, %v1506
    %v1511 = vadd.s32 %v1507, 1
    %v1512 = vsel %vm1510, %v1511, %v1507
    %v1513 = vadd.s32 %v1508, %v1512
    %v1514 = vadd.s32 %v1513, 536870912
    %v1515 = vshrl.u32 %v1514, 30
    %v1516 = vshll.u32 %v1515, 30
    %v1517 = vsub.s32 %v1513, %v1516
    %vm1518 = vcmp.lt.s32.totalorder %v1517, 0
    %v1519 = vsub.s32 0, %v1517
    %v1520 = vsel %vm1518, %v1519, %v1517
    %v1521 = vclz %v1520
    %v1522 = vsub.s32 %v1521, 2
    %vm1523 = vcmp.gt.s32.totalorder 0, %v1522
    %v1524 = vsel %vm1523, 0, %v1522
    %v1525 = vsub.s32 32, %v1524
    %v1526 = vshll.u32 %v1517, %v1524
    %v1527 = vshrl.u32 %v1509, %v1525
    %v1528 = vor.u32 %v1526, %v1527
    %v1529 = vsub.s32 4294967266, %v1524
    %v1530 = vadd.s32 %v1529, 127
    %v1531 = vshll.u32 %v1530, 23
    %v1532 = vor.u32 4788187, %v1531
    %v1533 = vand.u32 2147483647, %v1532
    %v1535 = vcvt.s32.f32 %v1528
    %v1536 = vmul.f32 %v1535, %v1533
    %v1537 = vxor.u32 %v1536, 2147483648
    %v1538 = vsel %vm1455, %v1537, %v1536
    %v1539 = vsub.s32 4, %v1515
    %v1540 = vsel %vm1455, %v1539, %v1515
    %v1541 = vsel %vm1454, %v1237, %v1538
    %v1542 = vsel %vm1454, 0, %v1540
    %v1543 = vcosq.f32.pop %v1541
    %v1544 = vsinq.f32.pop %v1541
    %vm1545 = vweird.f32 %v1237
    %v1546 = vadd.s32 %v1542, 3
    %v1547 = vand.u32 %v1546, 3
    %vm1548 = vcmp.lt.s32.totalorder %v1547, 2
    %vm1549 = vcmp.eq.s32.totalorder %v1547, 0
    %v1550 = vxor.u32 %v1544, 2147483648
    %v1551 = vsel %vm1549, %v1543, %v1550
    %vm1552 = vcmp.eq.s32.totalorder %v1547, 2
    %v1553 = vxor.u32 %v1543, 2147483648
    %v1554 = vsel %vm1552, %v1553, %v1544
    %v1555 = vsel %vm1548, %v1551, %v1554
    %v1556 = vsel %vm1545, nan, %v1555
    %v1557 = vand.u32 2147483647, %v1242
    %vm1558 = vcmp.le.f32.partialorder %v1557, 0.7853982
    %vm1559 = vcmp.lt.s32.totalorder %v1242, 0
    %v1560 = vand.u32 %v1242, 2139095040
    %v1561 = vshrl.u32 %v1560, 23
    %v1562 = vsub.s32 %v1561, 127
    %v1563 = vand.u32 2147483647, %v1242
    %v1564 = vand.u32 %v1563, 8388607
    %v1565 = vor.u32 %v1564, 8388608
    %v1566 = vsub.s32 0, %v1565
    %v1567 = vadd.s32 %v1562, 1
    %vm1568 = vcmp.gt.s32.totalorder %v1567, 0
    %v1569 = vsel %vm1568, %v1567, 0
    %v1570 = vshrl.u32 %v1569, 5
    %v1571 = vand.u32 %v1569, 31
    %v1572 = vsub.s32 32, %v1571
    %v1573 = vshrl.u32 683565275, %v1572
    %v1574 = vshll.u32 683565275, %v1571
    %v1575 = vshrl.u32 2475754826, %v1572
    %v1576 = vor.u32 %v1574, %v1575
    %v1577 = vshll.u32 2475754826, %v1571
    %v1578 = vshrl.u32 2131351028, %v1572
    %v1579 = vor.u32 %v1577, %v1578
    %v1580 = vshll.u32 2131351028, %v1571
    %v1581 = vshrl.u32 2102212464, %v1572
    %v1582 = vor.u32 %v1580, %v1581
    %v1583 = vshll.u32 2102212464, %v1571
    %v1584 = vshrl.u32 920167782, %v1572
    %v1585 = vor.u32 %v1583, %v1584
    %v1586 = vshll.u32 920167782, %v1571
    %v1587 = vshrl.u32 1326507024, %v1572
    %v1588 = vor.u32 %v1586, %v1587
    %vm1589 = vcmp.lt.s32.totalorder %v1570, 1
    %vm1590 = vcmp.lt.s32.totalorder %v1570, 2
    %vm1591 = vcmp.lt.s32.totalorder %v1570, 3
    %vm1592 = vcmp.lt.s32.totalorder %v1570, 4
    %v1593 = vsel %vm1589, %v1573, %v1576
    %v1594 = vsel %vm1592, %v1582, 2102212464
    %v1595 = vsel %vm1591, %v1579, %v1594
    %v1596 = vsel %vm1590, %v1593, %v1595
    %v1597 = vsel %vm1589, %v1576, %v1579
    %v1598 = vsel %vm1592, %v1585, 920167782
    %v1599 = vsel %vm1591, %v1582, %v1598
    %v1600 = vsel %vm1590, %v1597, %v1599
    %v1601 = vsel %vm1589, %v1579, %v1582
    %v1602 = vsel %vm1592, %v1588, 1326507024
    %v1603 = vsel %vm1591, %v1585, %v1602
    %v1604 = vsel %vm1590, %v1601, %v1603
    %v1605 = vshll.u32 %v1565, 8
    %v1606 = vmul.u32.u64.compose %v1605, %v1604
    %v1607 = vextract.low.u32 %v1606
    %v1608 = vextract.high.u32 %v1606
    %v1609 = vmul.u32.u64.compose %v1605, %v1600
    %v1610 = vextract.low.u32 %v1609
    %v1611 = vextract.high.u32 %v1609
    %v1612 = vmul.u32 %v1605, %v1596
    %v1613 = vadd.s32 %v1608, %v1610
    %vm1614 = vc.u32 %v1608, %v1610
    %v1615 = vadd.s32 %v1611, 1
    %v1616 = vsel %vm1614, %v1615, %v1611
    %v1617 = vadd.s32 %v1612, %v1616
    %v1618 = vadd.s32 %v1617, 536870912
    %v1619 = vshrl.u32 %v1618, 30
    %v1620 = vshll.u32 %v1619, 30
    %v1621 = vsub.s32 %v1617, %v1620
    %vm1622 = vcmp.lt.s32.totalorder %v1621, 0
    %v1623 = vsub.s32 0, %v1621
    %v1624 = vsel %vm1622, %v1623, %v1621
    %v1625 = vclz %v1624
    %v1626 = vsub.s32 %v1625, 2
    %vm1627 = vcmp.gt.s32.totalorder 0, %v1626
    %v1628 = vsel %vm1627, 0, %v1626
    %v1629 = vsub.s32 32, %v1628
    %v1630 = vshll.u32 %v1621, %v1628
    %v1631 = vshrl.u32 %v1613, %v1629
    %v1632 = vor.u32 %v1630, %v1631
    %v1633 = vsub.s32 4294967266, %v1628
    %v1634 = vadd.s32 %v1633, 127
    %v1635 = vshll.u32 %v1634, 23
    %v1636 = vor.u32 4788187, %v1635
    %v1637 = vand.u32 2147483647, %v1636
    %v1639 = vcvt.s32.f32 %v1632
    %v1640 = vmul.f32 %v1639, %v1637
    %v1641 = vxor.u32 %v1640, 2147483648
    %v1642 = vsel %vm1559, %v1641, %v1640
    %v1643 = vsub.s32 4, %v1619
    %v1644 = vsel %vm1559, %v1643, %v1619
    %v1645 = vsel %vm1558, %v1242, %v1642
    %v1646 = vsel %vm1558, 0, %v1644
    %v1647 = vcosq.f32.pop %v1645
    %v1648 = vsinq.f32.pop %v1645
    %vm1649 = vweird.f32 %v1242
    %v1650 = vadd.s32 %v1646, 3
    %v1651 = vand.u32 %v1650, 3
    %vm1652 = vcmp.lt.s32.totalorder %v1651, 2
    %vm1653 = vcmp.eq.s32.totalorder %v1651, 0
    %v1654 = vxor.u32 %v1648, 2147483648
    %v1655 = vsel %vm1653, %v1647, %v1654
    %vm1656 = vcmp.eq.s32.totalorder %v1651, 2
    %v1657 = vxor.u32 %v1647, 2147483648
    %v1658 = vsel %vm1656, %v1657, %v1648
    %v1659 = vsel %vm1652, %v1655, %v1658
    %v1660 = vsel %vm1649, nan, %v1659
    %s1661 = scalar_lea.vmem [#allocation3], 64
    %v1662 = vld [vmem:[%s1661] sm:$0xff]
    %v1663 = vld [vmem:[%s1661 + $0x8] sm:$0xff]
    %v1664 = vld [vmem:[%s1661 + $0x10] sm:$0xff]
    %v1665 = vld [vmem:[%s1661 + $0x18] sm:$0xff]
    %1666 = vset.pattern.permute.xlu0 3
    %1667 = vperm.xlu0 %1666, %v51
    %v1668 = vpop.permute.xlu0 %1667
    %1670 = vset.pattern.permute.xlu0 3
    %1671 = vperm.xlu0 %1670, %v52
    %v1672 = vpop.permute.xlu0 %1671
    %1674 = vset.pattern.permute.xlu0 3
    %1675 = vperm.xlu0 %1674, %v53
    %v1676 = vpop.permute.xlu0 %1675
    %1678 = vset.pattern.permute.xlu0 3
    %1679 = vperm.xlu0 %1678, %v54
    %v1680 = vpop.permute.xlu0 %1679
    %v1683 = vsel %vm613, %v1662, 0
    %v1686 = vsel %vm613, %v1663, 0
    %v1689 = vsel %vm613, %v1664, 0
    %v1692 = vsel %vm613, %v1665, 0
    %1694 = vmatprep.subr.mxu0 0.0
    %1695 = vmatpush1.msra.mxu0 %v1348
    %1696 = vmatprep.subr.mxu0 0.0
    %1697 = vmatpush1.msra.mxu0 %v1452
    %1698 = vmatprep.subr.mxu0 0.0
    %1699 = vmatpush1.msra.mxu0 %v1556
    %1700 = vmatprep.subr.mxu0 0.0
    %1701 = vmatpush1.msra.mxu0 %v1660
    %1702 = vmatprep.subr.mxu0 0.0
    %1703 = vmatpush1.msra.mxu0 0.0
    %1704 = vmatprep.subr.mxu0 0.0
    %1705 = vmatpush1.msra.mxu0 0.0
    %1706 = vmatprep.subr.mxu0 0.0
    %1707 = vmatpush1.msra.mxu0 0.0
    %1708 = vmatprep.subr.mxu0 0.0
    %1709 = vmatpush1.msra.mxu0 0.0
    %1710 = vmatprep.subr.mxu0 0.0
    %1711 = vmatpush1.msra.mxu0 0.0
    %1712 = vmatprep.subr.mxu0 0.0
    %1713 = vmatpush1.msra.mxu0 0.0
    %1714 = vmatprep.subr.mxu0 0.0
    %1715 = vmatpush1.msra.mxu0 0.0
    %1716 = vmatprep.subr.mxu0 0.0
    %1717 = vmatpush1.msra.mxu0 0.0
    %1718 = vmatprep.subr.mxu0 0.0
    %1719 = vmatpush1.msra.mxu0 0.0
    %1720 = vmatprep.subr.mxu0 0.0
    %1721 = vmatpush1.msra.mxu0 0.0
    %1722 = vmatprep.subr.mxu0 0.0
    %1723 = vmatpush1.msra.mxu0 0.0
    %1724 = vmatprep.subr.mxu0 0.0
    %1725 = vmatpush1.msra.mxu0 0.0
    %1726 = vmatprep.subr.mxu0 0.0
    %1727 = vmatpush1.msra.mxu0 0.0
    %1728 = vmatprep.subr.mxu0 0.0
    %1729 = vmatpush1.msra.mxu0 0.0
    %1730 = vmatprep.subr.mxu0 0.0
    %1731 = vmatpush1.msra.mxu0 0.0
    %1732 = vmatprep.subr.mxu0 0.0
    %1733 = vmatpush1.msra.mxu0 0.0
    %1734 = vmatprep.subr.mxu0 0.0
    %1735 = vmatpush1.msra.mxu0 0.0
    %1736 = vmatprep.subr.mxu0 0.0
    %1737 = vmatpush1.msra.mxu0 0.0
    %1738 = vmatprep.subr.mxu0 0.0
    %1739 = vmatpush1.msra.mxu0 0.0
    %1740 = vmatprep.subr.mxu0 0.0
    %1741 = vmatpush1.msra.mxu0 0.0
    %1742 = vmatprep.subr.mxu0 0.0
    %1743 = vmatpush1.msra.mxu0 0.0
    %1744 = vmatprep.subr.mxu0 0.0
    %1745 = vmatpush1.msra.mxu0 0.0
    %1746 = vmatprep.subr.mxu0 0.0
    %1747 = vmatpush1.msra.mxu0 0.0
    %1748 = vmatprep.subr.mxu0 0.0
    %1749 = vmatpush1.msra.mxu0 0.0
    %1750 = vmatprep.subr.mxu0 0.0
    %1751 = vmatpush1.msra.mxu0 0.0
    %1752 = vmatprep.subr.mxu0 0.0
    %1753 = vmatpush1.msra.mxu0 0.0
    %1754 = vmatprep.subr.mxu0 0.0
    %1755 = vmatpush1.msra.mxu0 0.0
    %1756 = vmatprep.subr.mxu0 0.0
    %1757 = vmatpush1.msra.mxu0 0.0
    %1758 = vmatprep.mubr.f32.mxu0 0.0
    %1759 = vmatmul.mubr.f32.gmra.mrb[0].mxu0 %v1683
    %v1760 = vpop.f32.mrb[0].mxu0
    %v1761 = vadd.f32 %v1668, %v1760
    %v1762 = vpop.f32.mrb[0].mxu0
    %1763 = vmatprep.mubr.f32.mxu0 0.0
    %1764 = vmatmul.mubr.f32.gmra.mrb[0].mxu0 %v1686
    %v1765 = vpop.f32.mrb[0].mxu0
    %v1766 = vadd.f32 %v1672, %v1765
    %v1767 = vpop.f32.mrb[0].mxu0
    %1768 = vmatprep.mubr.f32.mxu0 0.0
    %1769 = vmatmul.mubr.f32.gmra.mrb[0].mxu0 %v1689
    %v1770 = vpop.f32.mrb[0].mxu0
    %v1771 = vadd.f32 %v1676, %v1770
    %v1772 = vpop.f32.mrb[0].mxu0
    %1773 = vmatprep.mubr.f32.mxu0 0.0
    %1774 = vmatmul.mubr.f32.gmra.mrb[0].mxu0 %v1692
    %v1775 = vpop.f32.mrb[0].mxu0
    %v1776 = vadd.f32 %v1680, %v1775
    %v1777 = vpop.f32.mrb[0].mxu0
    %1778 = vdwg.mxu0
    %v1779 = vand.u32 2147483647, %v1761
    %vm1780 = vcmp.le.f32.partialorder %v1779, 0.7853982
    %vm1781 = vcmp.lt.s32.totalorder %v1761, 0
    %v1782 = vand.u32 %v1761, 2139095040
    %v1783 = vshrl.u32 %v1782, 23
    %v1784 = vsub.s32 %v1783, 127
    %v1785 = vand.u32 2147483647, %v1761
    %v1786 = vand.u32 %v1785, 8388607
    %v1787 = vor.u32 %v1786, 8388608
    %v1788 = vsub.s32 0, %v1787
    %v1789 = vadd.s32 %v1784, 1
    %vm1790 = vcmp.gt.s32.totalorder %v1789, 0
    %v1791 = vsel %vm1790, %v1789, 0
    %v1792 = vshrl.u32 %v1791, 5
    %v1793 = vand.u32 %v1791, 31
    %v1794 = vsub.s32 32, %v1793
    %v1795 = vshrl.u32 683565275, %v1794
    %v1796 = vshll.u32 683565275, %v1793
    %v1797 = vshrl.u32 2475754826, %v1794
    %v1798 = vor.u32 %v1796, %v1797
    %v1799 = vshll.u32 2475754826, %v1793
    %v1800 = vshrl.u32 2131351028, %v1794
    %v1801 = vor.u32 %v1799, %v1800
    %v1802 = vshll.u32 2131351028, %v1793
    %v1803 = vshrl.u32 2102212464, %v1794
    %v1804 = vor.u32 %v1802, %v1803
    %v1805 = vshll.u32 2102212464, %v1793
    %v1806 = vshrl.u32 920167782, %v1794
    %v1807 = vor.u32 %v1805, %v1806
    %v1808 = vshll.u32 920167782, %v1793
    %v1809 = vshrl.u32 1326507024, %v1794
    %v1810 = vor.u32 %v1808, %v1809
    %vm1811 = vcmp.lt.s32.totalorder %v1792, 1
    %vm1812 = vcmp.lt.s32.totalorder %v1792, 2
    %vm1813 = vcmp.lt.s32.totalorder %v1792, 3
    %vm1814 = vcmp.lt.s32.totalorder %v1792, 4
    %v1815 = vsel %vm1811, %v1795, %v1798
    %v1816 = vsel %vm1814, %v1804, 2102212464
    %v1817 = vsel %vm1813, %v1801, %v1816
    %v1818 = vsel %vm1812, %v1815, %v1817
    %v1819 = vsel %vm1811, %v1798, %v1801
    %v1820 = vsel %vm1814, %v1807, 920167782
    %v1821 = vsel %vm1813, %v1804, %v1820
    %v1822 = vsel %vm1812, %v1819, %v1821
    %v1823 = vsel %vm1811, %v1801, %v1804
    %v1824 = vsel %vm1814, %v1810, 1326507024
    %v1825 = vsel %vm1813, %v1807, %v1824
    %v1826 = vsel %vm1812, %v1823, %v1825
    %v1827 = vshll.u32 %v1787, 8
    %v1828 = vmul.u32.u64.compose %v1827, %v1826
    %v1829 = vextract.low.u32 %v1828
    %v1830 = vextract.high.u32 %v1828
    %v1831 = vmul.u32.u64.compose %v1827, %v1822
    %v1832 = vextract.low.u32 %v1831
    %v1833 = vextract.high.u32 %v1831
    %v1834 = vmul.u32 %v1827, %v1818
    %v1835 = vadd.s32 %v1830, %v1832
    %vm1836 = vc.u32 %v1830, %v1832
    %v1837 = vadd.s32 %v1833, 1
    %v1838 = vsel %vm1836, %v1837, %v1833
    %v1839 = vadd.s32 %v1834, %v1838
    %v1840 = vadd.s32 %v1839, 536870912
    %v1841 = vshrl.u32 %v1840, 30
    %v1842 = vshll.u32 %v1841, 30
    %v1843 = vsub.s32 %v1839, %v1842
    %vm1844 = vcmp.lt.s32.totalorder %v1843, 0
    %v1845 = vsub.s32 0, %v1843
    %v1846 = vsel %vm1844, %v1845, %v1843
    %v1847 = vclz %v1846
    %v1848 = vsub.s32 %v1847, 2
    %vm1849 = vcmp.gt.s32.totalorder 0, %v1848
    %v1850 = vsel %vm1849, 0, %v1848
    %v1851 = vsub.s32 32, %v1850
    %v1852 = vshll.u32 %v1843, %v1850
    %v1853 = vshrl.u32 %v1835, %v1851
    %v1854 = vor.u32 %v1852, %v1853
    %v1855 = vsub.s32 4294967266, %v1850
    %v1856 = vadd.s32 %v1855, 127
    %v1857 = vshll.u32 %v1856, 23
    %v1858 = vor.u32 4788187, %v1857
    %v1859 = vand.u32 2147483647, %v1858
    %v1861 = vcvt.s32.f32 %v1854
    %v1862 = vmul.f32 %v1861, %v1859
    %v1863 = vxor.u32 %v1862, 2147483648
    %v1864 = vsel %vm1781, %v1863, %v1862
    %v1865 = vsub.s32 4, %v1841
    %v1866 = vsel %vm1781, %v1865, %v1841
    %v1867 = vsel %vm1780, %v1761, %v1864
    %v1868 = vsel %vm1780, 0, %v1866
    %v1869 = vcosq.f32.pop %v1867
    %v1870 = vsinq.f32.pop %v1867
    %vm1871 = vweird.f32 %v1761
    %v1872 = vadd.s32 %v1868, 3
    %v1873 = vand.u32 %v1872, 3
    %vm1874 = vcmp.lt.s32.totalorder %v1873, 2
    %vm1875 = vcmp.eq.s32.totalorder %v1873, 0
    %v1876 = vxor.u32 %v1870, 2147483648
    %v1877 = vsel %vm1875, %v1869, %v1876
    %vm1878 = vcmp.eq.s32.totalorder %v1873, 2
    %v1879 = vxor.u32 %v1869, 2147483648
    %v1880 = vsel %vm1878, %v1879, %v1870
    %v1881 = vsel %vm1874, %v1877, %v1880
    %v1882 = vsel %vm1871, nan, %v1881
    %v1883 = vand.u32 2147483647, %v1766
    %vm1884 = vcmp.le.f32.partialorder %v1883, 0.7853982
    %vm1885 = vcmp.lt.s32.totalorder %v1766, 0
    %v1886 = vand.u32 %v1766, 2139095040
    %v1887 = vshrl.u32 %v1886, 23
    %v1888 = vsub.s32 %v1887, 127
    %v1889 = vand.u32 2147483647, %v1766
    %v1890 = vand.u32 %v1889, 8388607
    %v1891 = vor.u32 %v1890, 8388608
    %v1892 = vsub.s32 0, %v1891
    %v1893 = vadd.s32 %v1888, 1
    %vm1894 = vcmp.gt.s32.totalorder %v1893, 0
    %v1895 = vsel %vm1894, %v1893, 0
    %v1896 = vshrl.u32 %v1895, 5
    %v1897 = vand.u32 %v1895, 31
    %v1898 = vsub.s32 32, %v1897
    %v1899 = vshrl.u32 683565275, %v1898
    %v1900 = vshll.u32 683565275, %v1897
    %v1901 = vshrl.u32 2475754826, %v1898
    %v1902 = vor.u32 %v1900, %v1901
    %v1903 = vshll.u32 2475754826, %v1897
    %v1904 = vshrl.u32 2131351028, %v1898
    %v1905 = vor.u32 %v1903, %v1904
    %v1906 = vshll.u32 2131351028, %v1897
    %v1907 = vshrl.u32 2102212464, %v1898
    %v1908 = vor.u32 %v1906, %v1907
    %v1909 = vshll.u32 2102212464, %v1897
    %v1910 = vshrl.u32 920167782, %v1898
    %v1911 = vor.u32 %v1909, %v1910
    %v1912 = vshll.u32 920167782, %v1897
    %v1913 = vshrl.u32 1326507024, %v1898
    %v1914 = vor.u32 %v1912, %v1913
    %vm1915 = vcmp.lt.s32.totalorder %v1896, 1
    %vm1916 = vcmp.lt.s32.totalorder %v1896, 2
    %vm1917 = vcmp.lt.s32.totalorder %v1896, 3
    %vm1918 = vcmp.lt.s32.totalorder %v1896, 4
    %v1919 = vsel %vm1915, %v1899, %v1902
    %v1920 = vsel %vm1918, %v1908, 2102212464
    %v1921 = vsel %vm1917, %v1905, %v1920
    %v1922 = vsel %vm1916, %v1919, %v1921
    %v1923 = vsel %vm1915, %v1902, %v1905
    %v1924 = vsel %vm1918, %v1911, 920167782
    %v1925 = vsel %vm1917, %v1908, %v1924
    %v1926 = vsel %vm1916, %v1923, %v1925
    %v1927 = vsel %vm1915, %v1905, %v1908
    %v1928 = vsel %vm1918, %v1914, 1326507024
    %v1929 = vsel %vm1917, %v1911, %v1928
    %v1930 = vsel %vm1916, %v1927, %v1929
    %v1931 = vshll.u32 %v1891, 8
    %v1932 = vmul.u32.u64.compose %v1931, %v1930
    %v1933 = vextract.low.u32 %v1932
    %v1934 = vextract.high.u32 %v1932
    %v1935 = vmul.u32.u64.compose %v1931, %v1926
    %v1936 = vextract.low.u32 %v1935
    %v1937 = vextract.high.u32 %v1935
    %v1938 = vmul.u32 %v1931, %v1922
    %v1939 = vadd.s32 %v1934, %v1936
    %vm1940 = vc.u32 %v1934, %v1936
    %v1941 = vadd.s32 %v1937, 1
    %v1942 = vsel %vm1940, %v1941, %v1937
    %v1943 = vadd.s32 %v1938, %v1942
    %v1944 = vadd.s32 %v1943, 536870912
    %v1945 = vshrl.u32 %v1944, 30
    %v1946 = vshll.u32 %v1945, 30
    %v1947 = vsub.s32 %v1943, %v1946
    %vm1948 = vcmp.lt.s32.totalorder %v1947, 0
    %v1949 = vsub.s32 0, %v1947
    %v1950 = vsel %vm1948, %v1949, %v1947
    %v1951 = vclz %v1950
    %v1952 = vsub.s32 %v1951, 2
    %vm1953 = vcmp.gt.s32.totalorder 0, %v1952
    %v1954 = vsel %vm1953, 0, %v1952
    %v1955 = vsub.s32 32, %v1954
    %v1956 = vshll.u32 %v1947, %v1954
    %v1957 = vshrl.u32 %v1939, %v1955
    %v1958 = vor.u32 %v1956, %v1957
    %v1959 = vsub.s32 4294967266, %v1954
    %v1960 = vadd.s32 %v1959, 127
    %v1961 = vshll.u32 %v1960, 23
    %v1962 = vor.u32 4788187, %v1961
    %v1963 = vand.u32 2147483647, %v1962
    %v1965 = vcvt.s32.f32 %v1958
    %v1966 = vmul.f32 %v1965, %v1963
    %v1967 = vxor.u32 %v1966, 2147483648
    %v1968 = vsel %vm1885, %v1967, %v1966
    %v1969 = vsub.s32 4, %v1945
    %v1970 = vsel %vm1885, %v1969, %v1945
    %v1971 = vsel %vm1884, %v1766, %v1968
    %v1972 = vsel %vm1884, 0, %v1970
    %v1973 = vcosq.f32.pop %v1971
    %v1974 = vsinq.f32.pop %v1971
    %vm1975 = vweird.f32 %v1766
    %v1976 = vadd.s32 %v1972, 3
    %v1977 = vand.u32 %v1976, 3
    %vm1978 = vcmp.lt.s32.totalorder %v1977, 2
    %vm1979 = vcmp.eq.s32.totalorder %v1977, 0
    %v1980 = vxor.u32 %v1974, 2147483648
    %v1981 = vsel %vm1979, %v1973, %v1980
    %vm1982 = vcmp.eq.s32.totalorder %v1977, 2
    %v1983 = vxor.u32 %v1973, 2147483648
    %v1984 = vsel %vm1982, %v1983, %v1974
    %v1985 = vsel %vm1978, %v1981, %v1984
    %v1986 = vsel %vm1975, nan, %v1985
    %v1987 = vand.u32 2147483647, %v1771
    %vm1988 = vcmp.le.f32.partialorder %v1987, 0.7853982
    %vm1989 = vcmp.lt.s32.totalorder %v1771, 0
    %v1990 = vand.u32 %v1771, 2139095040
    %v1991 = vshrl.u32 %v1990, 23
    %v1992 = vsub.s32 %v1991, 127
    %v1993 = vand.u32 2147483647, %v1771
    %v1994 = vand.u32 %v1993, 8388607
    %v1995 = vor.u32 %v1994, 8388608
    %v1996 = vsub.s32 0, %v1995
    %v1997 = vadd.s32 %v1992, 1
    %vm1998 = vcmp.gt.s32.totalorder %v1997, 0
    %v1999 = vsel %vm1998, %v1997, 0
    %v2000 = vshrl.u32 %v1999, 5
    %v2001 = vand.u32 %v1999, 31
    %v2002 = vsub.s32 32, %v2001
    %v2003 = vshrl.u32 683565275, %v2002
    %v2004 = vshll.u32 683565275, %v2001
    %v2005 = vshrl.u32 2475754826, %v2002
    %v2006 = vor.u32 %v2004, %v2005
    %v2007 = vshll.u32 2475754826, %v2001
    %v2008 = vshrl.u32 2131351028, %v2002
    %v2009 = vor.u32 %v2007, %v2008
    %v2010 = vshll.u32 2131351028, %v2001
    %v2011 = vshrl.u32 2102212464, %v2002
    %v2012 = vor.u32 %v2010, %v2011
    %v2013 = vshll.u32 2102212464, %v2001
    %v2014 = vshrl.u32 920167782, %v2002
    %v2015 = vor.u32 %v2013, %v2014
    %v2016 = vshll.u32 920167782, %v2001
    %v2017 = vshrl.u32 1326507024, %v2002
    %v2018 = vor.u32 %v2016, %v2017
    %vm2019 = vcmp.lt.s32.totalorder %v2000, 1
    %vm2020 = vcmp.lt.s32.totalorder %v2000, 2
    %vm2021 = vcmp.lt.s32.totalorder %v2000, 3
    %vm2022 = vcmp.lt.s32.totalorder %v2000, 4
    %v2023 = vsel %vm2019, %v2003, %v2006
    %v2024 = vsel %vm2022, %v2012, 2102212464
    %v2025 = vsel %vm2021, %v2009, %v2024
    %v2026 = vsel %vm2020, %v2023, %v2025
    %v2027 = vsel %vm2019, %v2006, %v2009
    %v2028 = vsel %vm2022, %v2015, 920167782
    %v2029 = vsel %vm2021, %v2012, %v2028
    %v2030 = vsel %vm2020, %v2027, %v2029
    %v2031 = vsel %vm2019, %v2009, %v2012
    %v2032 = vsel %vm2022, %v2018, 1326507024
    %v2033 = vsel %vm2021, %v2015, %v2032
    %v2034 = vsel %vm2020, %v2031, %v2033
    %v2035 = vshll.u32 %v1995, 8
    %v2036 = vmul.u32.u64.compose %v2035, %v2034
    %v2037 = vextract.low.u32 %v2036
    %v2038 = vextract.high.u32 %v2036
    %v2039 = vmul.u32.u64.compose %v2035, %v2030
    %v2040 = vextract.low.u32 %v2039
    %v2041 = vextract.high.u32 %v2039
    %v2042 = vmul.u32 %v2035, %v2026
    %v2043 = vadd.s32 %v2038, %v2040
    %vm2044 = vc.u32 %v2038, %v2040
    %v2045 = vadd.s32 %v2041, 1
    %v2046 = vsel %vm2044, %v2045, %v2041
    %v2047 = vadd.s32 %v2042, %v2046
    %v2048 = vadd.s32 %v2047, 536870912
    %v2049 = vshrl.u32 %v2048, 30
    %v2050 = vshll.u32 %v2049, 30
    %v2051 = vsub.s32 %v2047, %v2050
    %vm2052 = vcmp.lt.s32.totalorder %v2051, 0
    %v2053 = vsub.s32 0, %v2051
    %v2054 = vsel %vm2052, %v2053, %v2051
    %v2055 = vclz %v2054
    %v2056 = vsub.s32 %v2055, 2
    %vm2057 = vcmp.gt.s32.totalorder 0, %v2056
    %v2058 = vsel %vm2057, 0, %v2056
    %v2059 = vsub.s32 32, %v2058
    %v2060 = vshll.u32 %v2051, %v2058
    %v2061 = vshrl.u32 %v2043, %v2059
    %v2062 = vor.u32 %v2060, %v2061
    %v2063 = vsub.s32 4294967266, %v2058
    %v2064 = vadd.s32 %v2063, 127
    %v2065 = vshll.u32 %v2064, 23
    %v2066 = vor.u32 4788187, %v2065
    %v2067 = vand.u32 2147483647, %v2066
    %v2069 = vcvt.s32.f32 %v2062
    %v2070 = vmul.f32 %v2069, %v2067
    %v2071 = vxor.u32 %v2070, 2147483648
    %v2072 = vsel %vm1989, %v2071, %v2070
    %v2073 = vsub.s32 4, %v2049
    %v2074 = vsel %vm1989, %v2073, %v2049
    %v2075 = vsel %vm1988, %v1771, %v2072
    %v2076 = vsel %vm1988, 0, %v2074
    %v2077 = vcosq.f32.pop %v2075
    %v2078 = vsinq.f32.pop %v2075
    %vm2079 = vweird.f32 %v1771
    %v2080 = vadd.s32 %v2076, 3
    %v2081 = vand.u32 %v2080, 3
    %vm2082 = vcmp.lt.s32.totalorder %v2081, 2
    %vm2083 = vcmp.eq.s32.totalorder %v2081, 0
    %v2084 = vxor.u32 %v2078, 2147483648
    %v2085 = vsel %vm2083, %v2077, %v2084
    %vm2086 = vcmp.eq.s32.totalorder %v2081, 2
    %v2087 = vxor.u32 %v2077, 2147483648
    %v2088 = vsel %vm2086, %v2087, %v2078
    %v2089 = vsel %vm2082, %v2085, %v2088
    %v2090 = vsel %vm2079, nan, %v2089
    %v2091 = vand.u32 2147483647, %v1776
    %vm2092 = vcmp.le.f32.partialorder %v2091, 0.7853982
    %vm2093 = vcmp.lt.s32.totalorder %v1776, 0
    %v2094 = vand.u32 %v1776, 2139095040
    %v2095 = vshrl.u32 %v2094, 23
    %v2096 = vsub.s32 %v2095, 127
    %v2097 = vand.u32 2147483647, %v1776
    %v2098 = vand.u32 %v2097, 8388607
    %v2099 = vor.u32 %v2098, 8388608
    %v2100 = vsub.s32 0, %v2099
    %v2101 = vadd.s32 %v2096, 1
    %vm2102 = vcmp.gt.s32.totalorder %v2101, 0
    %v2103 = vsel %vm2102, %v2101, 0
    %v2104 = vshrl.u32 %v2103, 5
    %v2105 = vand.u32 %v2103, 31
    %v2106 = vsub.s32 32, %v2105
    %v2107 = vshrl.u32 683565275, %v2106
    %v2108 = vshll.u32 683565275, %v2105
    %v2109 = vshrl.u32 2475754826, %v2106
    %v2110 = vor.u32 %v2108, %v2109
    %v2111 = vshll.u32 2475754826, %v2105
    %v2112 = vshrl.u32 2131351028, %v2106
    %v2113 = vor.u32 %v2111, %v2112
    %v2114 = vshll.u32 2131351028, %v2105
    %v2115 = vshrl.u32 2102212464, %v2106
    %v2116 = vor.u32 %v2114, %v2115
    %v2117 = vshll.u32 2102212464, %v2105
    %v2118 = vshrl.u32 920167782, %v2106
    %v2119 = vor.u32 %v2117, %v2118
    %v2120 = vshll.u32 920167782, %v2105
    %v2121 = vshrl.u32 1326507024, %v2106
    %v2122 = vor.u32 %v2120, %v2121
    %vm2123 = vcmp.lt.s32.totalorder %v2104, 1
    %vm2124 = vcmp.lt.s32.totalorder %v2104, 2
    %vm2125 = vcmp.lt.s32.totalorder %v2104, 3
    %vm2126 = vcmp.lt.s32.totalorder %v2104, 4
    %v2127 = vsel %vm2123, %v2107, %v2110
    %v2128 = vsel %vm2126, %v2116, 2102212464
    %v2129 = vsel %vm2125, %v2113, %v2128
    %v2130 = vsel %vm2124, %v2127, %v2129
    %v2131 = vsel %vm2123, %v2110, %v2113
    %v2132 = vsel %vm2126, %v2119, 920167782
    %v2133 = vsel %vm2125, %v2116, %v2132
    %v2134 = vsel %vm2124, %v2131, %v2133
    %v2135 = vsel %vm2123, %v2113, %v2116
    %v2136 = vsel %vm2126, %v2122, 1326507024
    %v2137 = vsel %vm2125, %v2119, %v2136
    %v2138 = vsel %vm2124, %v2135, %v2137
    %v2139 = vshll.u32 %v2099, 8
    %v2140 = vmul.u32.u64.compose %v2139, %v2138
    %v2141 = vextract.low.u32 %v2140
    %v2142 = vextract.high.u32 %v2140
    %v2143 = vmul.u32.u64.compose %v2139, %v2134
    %v2144 = vextract.low.u32 %v2143
    %v2145 = vextract.high.u32 %v2143
    %v2146 = vmul.u32 %v2139, %v2130
    %v2147 = vadd.s32 %v2142, %v2144
    %vm2148 = vc.u32 %v2142, %v2144
    %v2149 = vadd.s32 %v2145, 1
    %v2150 = vsel %vm2148, %v2149, %v2145
    %v2151 = vadd.s32 %v2146, %v2150
    %v2152 = vadd.s32 %v2151, 536870912
    %v2153 = vshrl.u32 %v2152, 30
    %v2154 = vshll.u32 %v2153, 30
    %v2155 = vsub.s32 %v2151, %v2154
    %vm2156 = vcmp.lt.s32.totalorder %v2155, 0
    %v2157 = vsub.s32 0, %v2155
    %v2158 = vsel %vm2156, %v2157, %v2155
    %v2159 = vclz %v2158
    %v2160 = vsub.s32 %v2159, 2
    %vm2161 = vcmp.gt.s32.totalorder 0, %v2160
    %v2162 = vsel %vm2161, 0, %v2160
    %v2163 = vsub.s32 32, %v2162
    %v2164 = vshll.u32 %v2155, %v2162
    %v2165 = vshrl.u32 %v2147, %v2163
    %v2166 = vor.u32 %v2164, %v2165
    %v2167 = vsub.s32 4294967266, %v2162
    %v2168 = vadd.s32 %v2167, 127
    %v2169 = vshll.u32 %v2168, 23
    %v2170 = vor.u32 4788187, %v2169
    %v2171 = vand.u32 2147483647, %v2170
    %v2173 = vcvt.s32.f32 %v2166
    %v2174 = vmul.f32 %v2173, %v2171
    %v2175 = vxor.u32 %v2174, 2147483648
    %v2176 = vsel %vm2093, %v2175, %v2174
    %v2177 = vsub.s32 4, %v2153
    %v2178 = vsel %vm2093, %v2177, %v2153
    %v2179 = vsel %vm2092, %v1776, %v2176
    %v2180 = vsel %vm2092, 0, %v2178
    %v2181 = vcosq.f32.pop %v2179
    %v2182 = vsinq.f32.pop %v2179
    %vm2183 = vweird.f32 %v1776
    %v2184 = vadd.s32 %v2180, 3
    %v2185 = vand.u32 %v2184, 3
    %vm2186 = vcmp.lt.s32.totalorder %v2185, 2
    %vm2187 = vcmp.eq.s32.totalorder %v2185, 0
    %v2188 = vxor.u32 %v2182, 2147483648
    %v2189 = vsel %vm2187, %v2181, %v2188
    %vm2190 = vcmp.eq.s32.totalorder %v2185, 2
    %v2191 = vxor.u32 %v2181, 2147483648
    %v2192 = vsel %vm2190, %v2191, %v2182
    %v2193 = vsel %vm2186, %v2189, %v2192
    %v2194 = vsel %vm2183, nan, %v2193
    %s2195 = scalar_lea.vmem [#allocation3], 96
    %v2196 = vld [vmem:[%s2195] sm:$0xff]
    %v2197 = vld [vmem:[%s2195 + $0x8] sm:$0xff]
    %v2198 = vld [vmem:[%s2195 + $0x10] sm:$0xff]
    %v2199 = vld [vmem:[%s2195 + $0x18] sm:$0xff]
    %s2200 = scalar_lea.vmem %s1, 32
    %v2201 = vld [vmem:[%s2200] sm:$0xff]
    %v2202 = vld [vmem:[%s2200 + $0x8] sm:$0xff]
    %v2203 = vld [vmem:[%s2200 + $0x10] sm:$0xff]
    %v2204 = vld [vmem:[%s2200 + $0x18] sm:$0xff]
    %v2206 = vsel %vm75, %v2201, 0
    %v2209 = vsel %vm75, %v2202, 0
    %v2212 = vsel %vm75, %v2203, 0
    %v2215 = vsel %vm75, %v2204, 0
    %2217 = vmatprep.subr.mxu0 0.0
    %2218 = vmatpush1.msra.mxu0 %v90
    %2219 = vmatprep.subr.mxu0 0.0
    %2220 = vmatpush1.msra.mxu0 0.0
    %2221 = vmatprep.subr.mxu0 0.0
    %2222 = vmatpush1.msra.mxu0 0.0
    %2223 = vmatprep.subr.mxu0 0.0
    %2224 = vmatpush1.msra.mxu0 0.0
    %2225 = vmatprep.subr.mxu0 0.0
    %2226 = vmatpush1.msra.mxu0 0.0
    %2227 = vmatprep.subr.mxu0 0.0
    %2228 = vmatpush1.msra.mxu0 0.0
    %2229 = vmatprep.subr.mxu0 0.0
    %2230 = vmatpush1.msra.mxu0 0.0
    %2231 = vmatprep.subr.mxu0 0.0
    %2232 = vmatpush1.msra.mxu0 0.0
    %2233 = vmatprep.subr.mxu0 0.0
    %2234 = vmatpush1.msra.mxu0 0.0
    %2235 = vmatprep.subr.mxu0 0.0
    %2236 = vmatpush1.msra.mxu0 0.0
    %2237 = vmatprep.subr.mxu0 0.0
    %2238 = vmatpush1.msra.mxu0 0.0
    %2239 = vmatprep.subr.mxu0 0.0
    %2240 = vmatpush1.msra.mxu0 0.0
    %2241 = vmatprep.subr.mxu0 0.0
    %2242 = vmatpush1.msra.mxu0 0.0
    %2243 = vmatprep.subr.mxu0 0.0
    %2244 = vmatpush1.msra.mxu0 0.0
    %2245 = vmatprep.subr.mxu0 0.0
    %2246 = vmatpush1.msra.mxu0 0.0
    %2247 = vmatprep.subr.mxu0 0.0
    %2248 = vmatpush1.msra.mxu0 0.0
    %2249 = vmatprep.subr.mxu0 0.0
    %2250 = vmatpush1.msra.mxu0 0.0
    %2251 = vmatprep.subr.mxu0 0.0
    %2252 = vmatpush1.msra.mxu0 0.0
    %2253 = vmatprep.subr.mxu0 0.0
    %2254 = vmatpush1.msra.mxu0 0.0
    %2255 = vmatprep.subr.mxu0 0.0
    %2256 = vmatpush1.msra.mxu0 0.0
    %2257 = vmatprep.subr.mxu0 0.0
    %2258 = vmatpush1.msra.mxu0 0.0
    %2259 = vmatprep.subr.mxu0 0.0
    %2260 = vmatpush1.msra.mxu0 0.0
    %2261 = vmatprep.subr.mxu0 0.0
    %2262 = vmatpush1.msra.mxu0 0.0
    %2263 = vmatprep.subr.mxu0 0.0
    %2264 = vmatpush1.msra.mxu0 0.0
    %2265 = vmatprep.subr.mxu0 0.0
    %2266 = vmatpush1.msra.mxu0 0.0
    %2267 = vmatprep.subr.mxu0 0.0
    %2268 = vmatpush1.msra.mxu0 0.0
    %2269 = vmatprep.subr.mxu0 0.0
    %2270 = vmatpush1.msra.mxu0 0.0
    %2271 = vmatprep.subr.mxu0 0.0
    %2272 = vmatpush1.msra.mxu0 0.0
    %2273 = vmatprep.subr.mxu0 0.0
    %2274 = vmatpush1.msra.mxu0 0.0
    %2275 = vmatprep.subr.mxu0 0.0
    %2276 = vmatpush1.msra.mxu0 0.0
    %2277 = vmatprep.subr.mxu0 0.0
    %2278 = vmatpush1.msra.mxu0 0.0
    %2279 = vmatprep.subr.mxu0 0.0
    %2280 = vmatpush1.msra.mxu0 0.0
    %2281 = vmatprep.mubr.f32.mxu0 0.0
    %2282 = vmatmul.mubr.f32.gmra.mrb[0].mxu0 %v2206
    %v2283 = vpop.f32.mrb[0].mxu0
    %v2284 = vadd.f32 0.0, %v2283
    %v2285 = vpop.f32.mrb[0].mxu0
    %2286 = vmatprep.mubr.f32.mxu0 0.0
    %2287 = vmatmul.mubr.f32.gmra.mrb[0].mxu0 %v2209
    %v2288 = vpop.f32.mrb[0].mxu0
    %v2289 = vadd.f32 0.0, %v2288
    %v2290 = vpop.f32.mrb[0].mxu0
    %2291 = vmatprep.mubr.f32.mxu0 0.0
    %2292 = vmatmul.mubr.f32.gmra.mrb[0].mxu0 %v2212
    %v2293 = vpop.f32.mrb[0].mxu0
    %v2294 = vadd.f32 0.0, %v2293
    %v2295 = vpop.f32.mrb[0].mxu0
    %2296 = vmatprep.mubr.f32.mxu0 0.0
    %2297 = vmatmul.mubr.f32.gmra.mrb[0].mxu0 %v2215
    %v2298 = vpop.f32.mrb[0].mxu0
    %v2299 = vadd.f32 0.0, %v2298
    %v2300 = vpop.f32.mrb[0].mxu0
    %2301 = vdwg.mxu0
    %v2303 = vsel %vm613, %v2196, 0
    %v2306 = vsel %vm613, %v2197, 0
    %v2309 = vsel %vm613, %v2198, 0
    %v2312 = vsel %vm613, %v2199, 0
    %2314 = vmatprep.subr.mxu0 0.0
    %2315 = vmatpush1.msra.mxu0 %v1882
    %2316 = vmatprep.subr.mxu0 0.0
    %2317 = vmatpush1.msra.mxu0 %v1986
    %2318 = vmatprep.subr.mxu0 0.0
    %2319 = vmatpush1.msra.mxu0 %v2090
    %2320 = vmatprep.subr.mxu0 0.0
    %2321 = vmatpush1.msra.mxu0 %v2194
    %2322 = vmatprep.subr.mxu0 0.0
    %2323 = vmatpush1.msra.mxu0 0.0
    %2324 = vmatprep.subr.mxu0 0.0
    %2325 = vmatpush1.msra.mxu0 0.0
    %2326 = vmatprep.subr.mxu0 0.0
    %2327 = vmatpush1.msra.mxu0 0.0
    %2328 = vmatprep.subr.mxu0 0.0
    %2329 = vmatpush1.msra.mxu0 0.0
    %2330 = vmatprep.subr.mxu0 0.0
    %2331 = vmatpush1.msra.mxu0 0.0
    %2332 = vmatprep.subr.mxu0 0.0
    %2333 = vmatpush1.msra.mxu0 0.0
    %2334 = vmatprep.subr.mxu0 0.0
    %2335 = vmatpush1.msra.mxu0 0.0
    %2336 = vmatprep.subr.mxu0 0.0
    %2337 = vmatpush1.msra.mxu0 0.0
    %2338 = vmatprep.subr.mxu0 0.0
    %2339 = vmatpush1.msra.mxu0 0.0
    %2340 = vmatprep.subr.mxu0 0.0
    %2341 = vmatpush1.msra.mxu0 0.0
    %2342 = vmatprep.subr.mxu0 0.0
    %2343 = vmatpush1.msra.mxu0 0.0
    %2344 = vmatprep.subr.mxu0 0.0
    %2345 = vmatpush1.msra.mxu0 0.0
    %2346 = vmatprep.subr.mxu0 0.0
    %2347 = vmatpush1.msra.mxu0 0.0
    %2348 = vmatprep.subr.mxu0 0.0
    %2349 = vmatpush1.msra.mxu0 0.0
    %2350 = vmatprep.subr.mxu0 0.0
    %2351 = vmatpush1.msra.mxu0 0.0
    %2352 = vmatprep.subr.mxu0 0.0
    %2353 = vmatpush1.msra.mxu0 0.0
    %2354 = vmatprep.subr.mxu0 0.0
    %2355 = vmatpush1.msra.mxu0 0.0
    %2356 = vmatprep.subr.mxu0 0.0
    %2357 = vmatpush1.msra.mxu0 0.0
    %2358 = vmatprep.subr.mxu0 0.0
    %2359 = vmatpush1.msra.mxu0 0.0
    %2360 = vmatprep.subr.mxu0 0.0
    %2361 = vmatpush1.msra.mxu0 0.0
    %2362 = vmatprep.subr.mxu0 0.0
    %2363 = vmatpush1.msra.mxu0 0.0
    %2364 = vmatprep.subr.mxu0 0.0
    %2365 = vmatpush1.msra.mxu0 0.0
    %2366 = vmatprep.subr.mxu0 0.0
    %2367 = vmatpush1.msra.mxu0 0.0
    %2368 = vmatprep.subr.mxu0 0.0
    %2369 = vmatpush1.msra.mxu0 0.0
    %2370 = vmatprep.subr.mxu0 0.0
    %2371 = vmatpush1.msra.mxu0 0.0
    %2372 = vmatprep.subr.mxu0 0.0
    %2373 = vmatpush1.msra.mxu0 0.0
    %2374 = vmatprep.subr.mxu0 0.0
    %2375 = vmatpush1.msra.mxu0 0.0
    %2376 = vmatprep.subr.mxu0 0.0
    %2377 = vmatpush1.msra.mxu0 0.0
    %2378 = vmatprep.mubr.f32.mxu0 0.0
    %2379 = vmatmul.mubr.f32.gmra.mrb[0].mxu0 %v2303
    %v2380 = vpop.f32.mrb[0].mxu0
    %v2381 = vadd.f32 %v2284, %v2380
    %v2382 = vpop.f32.mrb[0].mxu0
    %2383 = vmatprep.mubr.f32.mxu0 0.0
    %2384 = vmatmul.mubr.f32.gmra.mrb[0].mxu0 %v2306
    %v2385 = vpop.f32.mrb[0].mxu0
    %v2386 = vadd.f32 %v2289, %v2385
    %v2387 = vpop.f32.mrb[0].mxu0
    %2388 = vmatprep.mubr.f32.mxu0 0.0
    %2389 = vmatmul.mubr.f32.gmra.mrb[0].mxu0 %v2309
    %v2390 = vpop.f32.mrb[0].mxu0
    %v2391 = vadd.f32 %v2294, %v2390
    %v2392 = vpop.f32.mrb[0].mxu0
    %2393 = vmatprep.mubr.f32.mxu0 0.0
    %2394 = vmatmul.mubr.f32.gmra.mrb[0].mxu0 %v2312
    %v2395 = vpop.f32.mrb[0].mxu0
    %v2396 = vadd.f32 %v2299, %v2395
    %v2397 = vpop.f32.mrb[0].mxu0
    %2398 = vdwg.mxu0
    %2399 = vset.pattern.permute.xlu0 4
    %2400 = vperm.xlu0 %2399, %v51
    %v2401 = vpop.permute.xlu0 %2400
    %2403 = vset.pattern.permute.xlu0 4
    %2404 = vperm.xlu0 %2403, %v52
    %v2405 = vpop.permute.xlu0 %2404
    %2407 = vset.pattern.permute.xlu0 4
    %2408 = vperm.xlu0 %2407, %v53
    %v2409 = vpop.permute.xlu0 %2408
    %2411 = vset.pattern.permute.xlu0 4
    %2412 = vperm.xlu0 %2411, %v54
    %v2413 = vpop.permute.xlu0 %2412
    %v2415 = vadd.f32 %v2381, %v2401
    %v2416 = vadd.f32 %v2386, %v2405
    %v2417 = vadd.f32 %v2391, %v2409
    %v2418 = vadd.f32 %v2396, %v2413
    %v2419 = vand.u32 2147483647, %v2415
    %vm2420 = vcmp.le.f32.partialorder %v2419, 0.7853982
    %vm2421 = vcmp.lt.s32.totalorder %v2415, 0
    %v2422 = vand.u32 %v2415, 2139095040
    %v2423 = vshrl.u32 %v2422, 23
    %v2424 = vsub.s32 %v2423, 127
    %v2425 = vand.u32 2147483647, %v2415
    %v2426 = vand.u32 %v2425, 8388607
    %v2427 = vor.u32 %v2426, 8388608
    %v2428 = vsub.s32 0, %v2427
    %v2429 = vadd.s32 %v2424, 1
    %vm2430 = vcmp.gt.s32.totalorder %v2429, 0
    %v2431 = vsel %vm2430, %v2429, 0
    %v2432 = vshrl.u32 %v2431, 5
    %v2433 = vand.u32 %v2431, 31
    %v2434 = vsub.s32 32, %v2433
    %v2435 = vshrl.u32 683565275, %v2434
    %v2436 = vshll.u32 683565275, %v2433
    %v2437 = vshrl.u32 2475754826, %v2434
    %v2438 = vor.u32 %v2436, %v2437
    %v2439 = vshll.u32 2475754826, %v2433
    %v2440 = vshrl.u32 2131351028, %v2434
    %v2441 = vor.u32 %v2439, %v2440
    %v2442 = vshll.u32 2131351028, %v2433
    %v2443 = vshrl.u32 2102212464, %v2434
    %v2444 = vor.u32 %v2442, %v2443
    %v2445 = vshll.u32 2102212464, %v2433
    %v2446 = vshrl.u32 920167782, %v2434
    %v2447 = vor.u32 %v2445, %v2446
    %v2448 = vshll.u32 920167782, %v2433
    %v2449 = vshrl.u32 1326507024, %v2434
    %v2450 = vor.u32 %v2448, %v2449
    %vm2451 = vcmp.lt.s32.totalorder %v2432, 1
    %vm2452 = vcmp.lt.s32.totalorder %v2432, 2
    %vm2453 = vcmp.lt.s32.totalorder %v2432, 3
    %vm2454 = vcmp.lt.s32.totalorder %v2432, 4
    %v2455 = vsel %vm2451, %v2435, %v2438
    %v2456 = vsel %vm2454, %v2444, 2102212464
    %v2457 = vsel %vm2453, %v2441, %v2456
    %v2458 = vsel %vm2452, %v2455, %v2457
    %v2459 = vsel %vm2451, %v2438, %v2441
    %v2460 = vsel %vm2454, %v2447, 920167782
    %v2461 = vsel %vm2453, %v2444, %v2460
    %v2462 = vsel %vm2452, %v2459, %v2461
    %v2463 = vsel %vm2451, %v2441, %v2444
    %v2464 = vsel %vm2454, %v2450, 1326507024
    %v2465 = vsel %vm2453, %v2447, %v2464
    %v2466 = vsel %vm2452, %v2463, %v2465
    %v2467 = vshll.u32 %v2427, 8
    %v2468 = vmul.u32.u64.compose %v2467, %v2466
    %v2469 = vextract.low.u32 %v2468
    %v2470 = vextract.high.u32 %v2468
    %v2471 = vmul.u32.u64.compose %v2467, %v2462
    %v2472 = vextract.low.u32 %v2471
    %v2473 = vextract.high.u32 %v2471
    %v2474 = vmul.u32 %v2467, %v2458
    %v2475 = vadd.s32 %v2470, %v2472
    %vm2476 = vc.u32 %v2470, %v2472
    %v2477 = vadd.s32 %v2473, 1
    %v2478 = vsel %vm2476, %v2477, %v2473
    %v2479 = vadd.s32 %v2474, %v2478
    %v2480 = vadd.s32 %v2479, 536870912
    %v2481 = vshrl.u32 %v2480, 30
    %v2482 = vshll.u32 %v2481, 30
    %v2483 = vsub.s32 %v2479, %v2482
    %vm2484 = vcmp.lt.s32.totalorder %v2483, 0
    %v2485 = vsub.s32 0, %v2483
    %v2486 = vsel %vm2484, %v2485, %v2483
    %v2487 = vclz %v2486
    %v2488 = vsub.s32 %v2487, 2
    %vm2489 = vcmp.gt.s32.totalorder 0, %v2488
    %v2490 = vsel %vm2489, 0, %v2488
    %v2491 = vsub.s32 32, %v2490
    %v2492 = vshll.u32 %v2483, %v2490
    %v2493 = vshrl.u32 %v2475, %v2491
    %v2494 = vor.u32 %v2492, %v2493
    %v2495 = vsub.s32 4294967266, %v2490
    %v2496 = vadd.s32 %v2495, 127
    %v2497 = vshll.u32 %v2496, 23
    %v2498 = vor.u32 4788187, %v2497
    %v2499 = vand.u32 2147483647, %v2498
    %v2501 = vcvt.s32.f32 %v2494
    %v2502 = vmul.f32 %v2501, %v2499
    %v2503 = vxor.u32 %v2502, 2147483648
    %v2504 = vsel %vm2421, %v2503, %v2502
    %v2505 = vsub.s32 4, %v2481
    %v2506 = vsel %vm2421, %v2505, %v2481
    %v2507 = vsel %vm2420, %v2415, %v2504
    %v2508 = vsel %vm2420, 0, %v2506
    %v2509 = vcosq.f32.pop %v2507
    %v2510 = vsinq.f32.pop %v2507
    %vm2511 = vweird.f32 %v2415
    %v2512 = vadd.s32 %v2508, 3
    %v2513 = vand.u32 %v2512, 3
    %vm2514 = vcmp.lt.s32.totalorder %v2513, 2
    %vm2515 = vcmp.eq.s32.totalorder %v2513, 0
    %v2516 = vxor.u32 %v2510, 2147483648
    %v2517 = vsel %vm2515, %v2509, %v2516
    %vm2518 = vcmp.eq.s32.totalorder %v2513, 2
    %v2519 = vxor.u32 %v2509, 2147483648
    %v2520 = vsel %vm2518, %v2519, %v2510
    %v2521 = vsel %vm2514, %v2517, %v2520
    %v2522 = vsel %vm2511, nan, %v2521
    %v2523 = vand.u32 2147483647, %v2416
    %vm2524 = vcmp.le.f32.partialorder %v2523, 0.7853982
    %vm2525 = vcmp.lt.s32.totalorder %v2416, 0
    %v2526 = vand.u32 %v2416, 2139095040
    %v2527 = vshrl.u32 %v2526, 23
    %v2528 = vsub.s32 %v2527, 127
    %v2529 = vand.u32 2147483647, %v2416
    %v2530 = vand.u32 %v2529, 8388607
    %v2531 = vor.u32 %v2530, 8388608
    %v2532 = vsub.s32 0, %v2531
    %v2533 = vadd.s32 %v2528, 1
    %vm2534 = vcmp.gt.s32.totalorder %v2533, 0
    %v2535 = vsel %vm2534, %v2533, 0
    %v2536 = vshrl.u32 %v2535, 5
    %v2537 = vand.u32 %v2535, 31
    %v2538 = vsub.s32 32, %v2537
    %v2539 = vshrl.u32 683565275, %v2538
    %v2540 = vshll.u32 683565275, %v2537
    %v2541 = vshrl.u32 2475754826, %v2538
    %v2542 = vor.u32 %v2540, %v2541
    %v2543 = vshll.u32 2475754826, %v2537
    %v2544 = vshrl.u32 2131351028, %v2538
    %v2545 = vor.u32 %v2543, %v2544
    %v2546 = vshll.u32 2131351028, %v2537
    %v2547 = vshrl.u32 2102212464, %v2538
    %v2548 = vor.u32 %v2546, %v2547
    %v2549 = vshll.u32 2102212464, %v2537
    %v2550 = vshrl.u32 920167782, %v2538
    %v2551 = vor.u32 %v2549, %v2550
    %v2552 = vshll.u32 920167782, %v2537
    %v2553 = vshrl.u32 1326507024, %v2538
    %v2554 = vor.u32 %v2552, %v2553
    %vm2555 = vcmp.lt.s32.totalorder %v2536, 1
    %vm2556 = vcmp.lt.s32.totalorder %v2536, 2
    %vm2557 = vcmp.lt.s32.totalorder %v2536, 3
    %vm2558 = vcmp.lt.s32.totalorder %v2536, 4
    %v2559 = vsel %vm2555, %v2539, %v2542
    %v2560 = vsel %vm2558, %v2548, 2102212464
    %v2561 = vsel %vm2557, %v2545, %v2560
    %v2562 = vsel %vm2556, %v2559, %v2561
    %v2563 = vsel %vm2555, %v2542, %v2545
    %v2564 = vsel %vm2558, %v2551, 920167782
    %v2565 = vsel %vm2557, %v2548, %v2564
    %v2566 = vsel %vm2556, %v2563, %v2565
    %v2567 = vsel %vm2555, %v2545, %v2548
    %v2568 = vsel %vm2558, %v2554, 1326507024
    %v2569 = vsel %vm2557, %v2551, %v2568
    %v2570 = vsel %vm2556, %v2567, %v2569
    %v2571 = vshll.u32 %v2531, 8
    %v2572 = vmul.u32.u64.compose %v2571, %v2570
    %v2573 = vextract.low.u32 %v2572
    %v2574 = vextract.high.u32 %v2572
    %v2575 = vmul.u32.u64.compose %v2571, %v2566
    %v2576 = vextract.low.u32 %v2575
    %v2577 = vextract.high.u32 %v2575
    %v2578 = vmul.u32 %v2571, %v2562
    %v2579 = vadd.s32 %v2574, %v2576
    %vm2580 = vc.u32 %v2574, %v2576
    %v2581 = vadd.s32 %v2577, 1
    %v2582 = vsel %vm2580, %v2581, %v2577
    %v2583 = vadd.s32 %v2578, %v2582
    %v2584 = vadd.s32 %v2583, 536870912
    %v2585 = vshrl.u32 %v2584, 30
    %v2586 = vshll.u32 %v2585, 30
    %v2587 = vsub.s32 %v2583, %v2586
    %vm2588 = vcmp.lt.s32.totalorder %v2587, 0
    %v2589 = vsub.s32 0, %v2587
    %v2590 = vsel %vm2588, %v2589, %v2587
    %v2591 = vclz %v2590
    %v2592 = vsub.s32 %v2591, 2
    %vm2593 = vcmp.gt.s32.totalorder 0, %v2592
    %v2594 = vsel %vm2593, 0, %v2592
    %v2595 = vsub.s32 32, %v2594
    %v2596 = vshll.u32 %v2587, %v2594
    %v2597 = vshrl.u32 %v2579, %v2595
    %v2598 = vor.u32 %v2596, %v2597
    %v2599 = vsub.s32 4294967266, %v2594
    %v2600 = vadd.s32 %v2599, 127
    %v2601 = vshll.u32 %v2600, 23
    %v2602 = vor.u32 4788187, %v2601
    %v2603 = vand.u32 2147483647, %v2602
    %v2605 = vcvt.s32.f32 %v2598
    %v2606 = vmul.f32 %v2605, %v2603
    %v2607 = vxor.u32 %v2606, 2147483648
    %v2608 = vsel %vm2525, %v2607, %v2606
    %v2609 = vsub.s32 4, %v2585
    %v2610 = vsel %vm2525, %v2609, %v2585
    %v2611 = vsel %vm2524, %v2416, %v2608
    %v2612 = vsel %vm2524, 0, %v2610
    %v2613 = vcosq.f32.pop %v2611
    %v2614 = vsinq.f32.pop %v2611
    %vm2615 = vweird.f32 %v2416
    %v2616 = vadd.s32 %v2612, 3
    %v2617 = vand.u32 %v2616, 3
    %vm2618 = vcmp.lt.s32.totalorder %v2617, 2
    %vm2619 = vcmp.eq.s32.totalorder %v2617, 0
    %v2620 = vxor.u32 %v2614, 2147483648
    %v2621 = vsel %vm2619, %v2613, %v2620
    %vm2622 = vcmp.eq.s32.totalorder %v2617, 2
    %v2623 = vxor.u32 %v2613, 2147483648
    %v2624 = vsel %vm2622, %v2623, %v2614
    %v2625 = vsel %vm2618, %v2621, %v2624
    %v2626 = vsel %vm2615, nan, %v2625
    %v2627 = vand.u32 2147483647, %v2417
    %vm2628 = vcmp.le.f32.partialorder %v2627, 0.7853982
    %vm2629 = vcmp.lt.s32.totalorder %v2417, 0
    %v2630 = vand.u32 %v2417, 2139095040
    %v2631 = vshrl.u32 %v2630, 23
    %v2632 = vsub.s32 %v2631, 127
    %v2633 = vand.u32 2147483647, %v2417
    %v2634 = vand.u32 %v2633, 8388607
    %v2635 = vor.u32 %v2634, 8388608
    %v2636 = vsub.s32 0, %v2635
    %v2637 = vadd.s32 %v2632, 1
    %vm2638 = vcmp.gt.s32.totalorder %v2637, 0
    %v2639 = vsel %vm2638, %v2637, 0
    %v2640 = vshrl.u32 %v2639, 5
    %v2641 = vand.u32 %v2639, 31
    %v2642 = vsub.s32 32, %v2641
    %v2643 = vshrl.u32 683565275, %v2642
    %v2644 = vshll.u32 683565275, %v2641
    %v2645 = vshrl.u32 2475754826, %v2642
    %v2646 = vor.u32 %v2644, %v2645
    %v2647 = vshll.u32 2475754826, %v2641
    %v2648 = vshrl.u32 2131351028, %v2642
    %v2649 = vor.u32 %v2647, %v2648
    %v2650 = vshll.u32 2131351028, %v2641
    %v2651 = vshrl.u32 2102212464, %v2642
    %v2652 = vor.u32 %v2650, %v2651
    %v2653 = vshll.u32 2102212464, %v2641
    %v2654 = vshrl.u32 920167782, %v2642
    %v2655 = vor.u32 %v2653, %v2654
    %v2656 = vshll.u32 920167782, %v2641
    %v2657 = vshrl.u32 1326507024, %v2642
    %v2658 = vor.u32 %v2656, %v2657
    %vm2659 = vcmp.lt.s32.totalorder %v2640, 1
    %vm2660 = vcmp.lt.s32.totalorder %v2640, 2
    %vm2661 = vcmp.lt.s32.totalorder %v2640, 3
    %vm2662 = vcmp.lt.s32.totalorder %v2640, 4
    %v2663 = vsel %vm2659, %v2643, %v2646
    %v2664 = vsel %vm2662, %v2652, 2102212464
    %v2665 = vsel %vm2661, %v2649, %v2664
    %v2666 = vsel %vm2660, %v2663, %v2665
    %v2667 = vsel %vm2659, %v2646, %v2649
    %v2668 = vsel %vm2662, %v2655, 920167782
    %v2669 = vsel %vm2661, %v2652, %v2668
    %v2670 = vsel %vm2660, %v2667, %v2669
    %v2671 = vsel %vm2659, %v2649, %v2652
    %v2672 = vsel %vm2662, %v2658, 1326507024
    %v2673 = vsel %vm2661, %v2655, %v2672
    %v2674 = vsel %vm2660, %v2671, %v2673
    %v2675 = vshll.u32 %v2635, 8
    %v2676 = vmul.u32.u64.compose %v2675, %v2674
    %v2677 = vextract.low.u32 %v2676
    %v2678 = vextract.high.u32 %v2676
    %v2679 = vmul.u32.u64.compose %v2675, %v2670
    %v2680 = vextract.low.u32 %v2679
    %v2681 = vextract.high.u32 %v2679
    %v2682 = vmul.u32 %v2675, %v2666
    %v2683 = vadd.s32 %v2678, %v2680
    %vm2684 = vc.u32 %v2678, %v2680
    %v2685 = vadd.s32 %v2681, 1
    %v2686 = vsel %vm2684, %v2685, %v2681
    %v2687 = vadd.s32 %v2682, %v2686
    %v2688 = vadd.s32 %v2687, 536870912
    %v2689 = vshrl.u32 %v2688, 30
    %v2690 = vshll.u32 %v2689, 30
    %v2691 = vsub.s32 %v2687, %v2690
    %vm2692 = vcmp.lt.s32.totalorder %v2691, 0
    %v2693 = vsub.s32 0, %v2691
    %v2694 = vsel %vm2692, %v2693, %v2691
    %v2695 = vclz %v2694
    %v2696 = vsub.s32 %v2695, 2
    %vm2697 = vcmp.gt.s32.totalorder 0, %v2696
    %v2698 = vsel %vm2697, 0, %v2696
    %v2699 = vsub.s32 32, %v2698
    %v2700 = vshll.u32 %v2691, %v2698
    %v2701 = vshrl.u32 %v2683, %v2699
    %v2702 = vor.u32 %v2700, %v2701
    %v2703 = vsub.s32 4294967266, %v2698
    %v2704 = vadd.s32 %v2703, 127
    %v2705 = vshll.u32 %v2704, 23
    %v2706 = vor.u32 4788187, %v2705
    %v2707 = vand.u32 2147483647, %v2706
    %v2709 = vcvt.s32.f32 %v2702
    %v2710 = vmul.f32 %v2709, %v2707
    %v2711 = vxor.u32 %v2710, 2147483648
    %v2712 = vsel %vm2629, %v2711, %v2710
    %v2713 = vsub.s32 4, %v2689
    %v2714 = vsel %vm2629, %v2713, %v2689
    %v2715 = vsel %vm2628, %v2417, %v2712
    %v2716 = vsel %vm2628, 0, %v2714
    %v2717 = vcosq.f32.pop %v2715
    %v2718 = vsinq.f32.pop %v2715
    %vm2719 = vweird.f32 %v2417
    %v2720 = vadd.s32 %v2716, 3
    %v2721 = vand.u32 %v2720, 3
    %vm2722 = vcmp.lt.s32.totalorder %v2721, 2
    %vm2723 = vcmp.eq.s32.totalorder %v2721, 0
    %v2724 = vxor.u32 %v2718, 2147483648
    %v2725 = vsel %vm2723, %v2717, %v2724
    %vm2726 = vcmp.eq.s32.totalorder %v2721, 2
    %v2727 = vxor.u32 %v2717, 2147483648
    %v2728 = vsel %vm2726, %v2727, %v2718
    %v2729 = vsel %vm2722, %v2725, %v2728
    %v2730 = vsel %vm2719, nan, %v2729
    %v2731 = vand.u32 2147483647, %v2418
    %vm2732 = vcmp.le.f32.partialorder %v2731, 0.7853982
    %vm2733 = vcmp.lt.s32.totalorder %v2418, 0
    %v2734 = vand.u32 %v2418, 2139095040
    %v2735 = vshrl.u32 %v2734, 23
    %v2736 = vsub.s32 %v2735, 127
    %v2737 = vand.u32 2147483647, %v2418
    %v2738 = vand.u32 %v2737, 8388607
    %v2739 = vor.u32 %v2738, 8388608
    %v2740 = vsub.s32 0, %v2739
    %v2741 = vadd.s32 %v2736, 1
    %vm2742 = vcmp.gt.s32.totalorder %v2741, 0
    %v2743 = vsel %vm2742, %v2741, 0
    %v2744 = vshrl.u32 %v2743, 5
    %v2745 = vand.u32 %v2743, 31
    %v2746 = vsub.s32 32, %v2745
    %v2747 = vshrl.u32 683565275, %v2746
    %v2748 = vshll.u32 683565275, %v2745
    %v2749 = vshrl.u32 2475754826, %v2746
    %v2750 = vor.u32 %v2748, %v2749
    %v2751 = vshll.u32 2475754826, %v2745
    %v2752 = vshrl.u32 2131351028, %v2746
    %v2753 = vor.u32 %v2751, %v2752
    %v2754 = vshll.u32 2131351028, %v2745
    %v2755 = vshrl.u32 2102212464, %v2746
    %v2756 = vor.u32 %v2754, %v2755
    %v2757 = vshll.u32 2102212464, %v2745
    %v2758 = vshrl.u32 920167782, %v2746
    %v2759 = vor.u32 %v2757, %v2758
    %v2760 = vshll.u32 920167782, %v2745
    %v2761 = vshrl.u32 1326507024, %v2746
    %v2762 = vor.u32 %v2760, %v2761
    %vm2763 = vcmp.lt.s32.totalorder %v2744, 1
    %vm2764 = vcmp.lt.s32.totalorder %v2744, 2
    %vm2765 = vcmp.lt.s32.totalorder %v2744, 3
    %vm2766 = vcmp.lt.s32.totalorder %v2744, 4
    %v2767 = vsel %vm2763, %v2747, %v2750
    %v2768 = vsel %vm2766, %v2756, 2102212464
    %v2769 = vsel %vm2765, %v2753, %v2768
    %v2770 = vsel %vm2764, %v2767, %v2769
    %v2771 = vsel %vm2763, %v2750, %v2753
    %v2772 = vsel %vm2766, %v2759, 920167782
    %v2773 = vsel %vm2765, %v2756, %v2772
    %v2774 = vsel %vm2764, %v2771, %v2773
    %v2775 = vsel %vm2763, %v2753, %v2756
    %v2776 = vsel %vm2766, %v2762, 1326507024
    %v2777 = vsel %vm2765, %v2759, %v2776
    %v2778 = vsel %vm2764, %v2775, %v2777
    %v2779 = vshll.u32 %v2739, 8
    %v2780 = vmul.u32.u64.compose %v2779, %v2778
    %v2781 = vextract.low.u32 %v2780
    %v2782 = vextract.high.u32 %v2780
    %v2783 = vmul.u32.u64.compose %v2779, %v2774
    %v2784 = vextract.low.u32 %v2783
    %v2785 = vextract.high.u32 %v2783
    %v2786 = vmul.u32 %v2779, %v2770
    %v2787 = vadd.s32 %v2782, %v2784
    %vm2788 = vc.u32 %v2782, %v2784
    %v2789 = vadd.s32 %v2785, 1
    %v2790 = vsel %vm2788, %v2789, %v2785
    %v2791 = vadd.s32 %v2786, %v2790
    %v2792 = vadd.s32 %v2791, 536870912
    %v2793 = vshrl.u32 %v2792, 30
    %v2794 = vshll.u32 %v2793, 30
    %v2795 = vsub.s32 %v2791, %v2794
    %vm2796 = vcmp.lt.s32.totalorder %v2795, 0
    %v2797 = vsub.s32 0, %v2795
    %v2798 = vsel %vm2796, %v2797, %v2795
    %v2799 = vclz %v2798
    %v2800 = vsub.s32 %v2799, 2
    %vm2801 = vcmp.gt.s32.totalorder 0, %v2800
    %v2802 = vsel %vm2801, 0, %v2800
    %v2803 = vsub.s32 32, %v2802
    %v2804 = vshll.u32 %v2795, %v2802
    %v2805 = vshrl.u32 %v2787, %v2803
    %v2806 = vor.u32 %v2804, %v2805
    %v2807 = vsub.s32 4294967266, %v2802
    %v2808 = vadd.s32 %v2807, 127
    %v2809 = vshll.u32 %v2808, 23
    %v2810 = vor.u32 4788187, %v2809
    %v2811 = vand.u32 2147483647, %v2810
    %v2813 = vcvt.s32.f32 %v2806
    %v2814 = vmul.f32 %v2813, %v2811
    %v2815 = vxor.u32 %v2814, 2147483648
    %v2816 = vsel %vm2733, %v2815, %v2814
    %v2817 = vsub.s32 4, %v2793
    %v2818 = vsel %vm2733, %v2817, %v2793
    %v2819 = vsel %vm2732, %v2418, %v2816
    %v2820 = vsel %vm2732, 0, %v2818
    %v2821 = vcosq.f32.pop %v2819
    %v2822 = vsinq.f32.pop %v2819
    %vm2823 = vweird.f32 %v2418
    %v2824 = vadd.s32 %v2820, 3
    %v2825 = vand.u32 %v2824, 3
    %vm2826 = vcmp.lt.s32.totalorder %v2825, 2
    %vm2827 = vcmp.eq.s32.totalorder %v2825, 0
    %v2828 = vxor.u32 %v2822, 2147483648
    %v2829 = vsel %vm2827, %v2821, %v2828
    %vm2830 = vcmp.eq.s32.totalorder %v2825, 2
    %v2831 = vxor.u32 %v2821, 2147483648
    %v2832 = vsel %vm2830, %v2831, %v2822
    %v2833 = vsel %vm2826, %v2829, %v2832
    %v2834 = vsel %vm2823, nan, %v2833
    %s2835 = scalar_lea.vmem [#allocation3], 128
    %v2836 = vld [vmem:[%s2835] sm:$0xff]
    %v2837 = vld [vmem:[%s2835 + $0x8] sm:$0xff]
    %v2838 = vld [vmem:[%s2835 + $0x10] sm:$0xff]
    %v2839 = vld [vmem:[%s2835 + $0x18] sm:$0xff]
    %2840 = vset.pattern.permute.xlu0 5
    %2841 = vperm.xlu0 %2840, %v51
    %v2842 = vpop.permute.xlu0 %2841
    %2844 = vset.pattern.permute.xlu0 5
    %2845 = vperm.xlu0 %2844, %v52
    %v2846 = vpop.permute.xlu0 %2845
    %2848 = vset.pattern.permute.xlu0 5
    %2849 = vperm.xlu0 %2848, %v53
    %v2850 = vpop.permute.xlu0 %2849
    %2852 = vset.pattern.permute.xlu0 5
    %2853 = vperm.xlu0 %2852, %v54
    %v2854 = vpop.permute.xlu0 %2853
    %v2857 = vsel %vm613, %v2836, 0
    %v2860 = vsel %vm613, %v2837, 0
    %v2863 = vsel %vm613, %v2838, 0
    %v2866 = vsel %vm613, %v2839, 0
    %2868 = vmatprep.subr.mxu0 0.0
    %2869 = vmatpush1.msra.mxu0 %v2522
    %2870 = vmatprep.subr.mxu0 0.0
    %2871 = vmatpush1.msra.mxu0 %v2626
    %2872 = vmatprep.subr.mxu0 0.0
    %2873 = vmatpush1.msra.mxu0 %v2730
    %2874 = vmatprep.subr.mxu0 0.0
    %2875 = vmatpush1.msra.mxu0 %v2834
    %2876 = vmatprep.subr.mxu0 0.0
    %2877 = vmatpush1.msra.mxu0 0.0
    %2878 = vmatprep.subr.mxu0 0.0
    %2879 = vmatpush1.msra.mxu0 0.0
    %2880 = vmatprep.subr.mxu0 0.0
    %2881 = vmatpush1.msra.mxu0 0.0
    %2882 = vmatprep.subr.mxu0 0.0
    %2883 = vmatpush1.msra.mxu0 0.0
    %2884 = vmatprep.subr.mxu0 0.0
    %2885 = vmatpush1.msra.mxu0 0.0
    %2886 = vmatprep.subr.mxu0 0.0
    %2887 = vmatpush1.msra.mxu0 0.0
    %2888 = vmatprep.subr.mxu0 0.0
    %2889 = vmatpush1.msra.mxu0 0.0
    %2890 = vmatprep.subr.mxu0 0.0
    %2891 = vmatpush1.msra.mxu0 0.0
    %2892 = vmatprep.subr.mxu0 0.0
    %2893 = vmatpush1.msra.mxu0 0.0
    %2894 = vmatprep.subr.mxu0 0.0
    %2895 = vmatpush1.msra.mxu0 0.0
    %2896 = vmatprep.subr.mxu0 0.0
    %2897 = vmatpush1.msra.mxu0 0.0
    %2898 = vmatprep.subr.mxu0 0.0
    %2899 = vmatpush1.msra.mxu0 0.0
    %2900 = vmatprep.subr.mxu0 0.0
    %2901 = vmatpush1.msra.mxu0 0.0
    %2902 = vmatprep.subr.mxu0 0.0
    %2903 = vmatpush1.msra.mxu0 0.0
    %2904 = vmatprep.subr.mxu0 0.0
    %2905 = vmatpush1.msra.mxu0 0.0
    %2906 = vmatprep.subr.mxu0 0.0
    %2907 = vmatpush1.msra.mxu0 0.0
    %2908 = vmatprep.subr.mxu0 0.0
    %2909 = vmatpush1.msra.mxu0 0.0
    %2910 = vmatprep.subr.mxu0 0.0
    %2911 = vmatpush1.msra.mxu0 0.0
    %2912 = vmatprep.subr.mxu0 0.0
    %2913 = vmatpush1.msra.mxu0 0.0
    %2914 = vmatprep.subr.mxu0 0.0
    %2915 = vmatpush1.msra.mxu0 0.0
    %2916 = vmatprep.subr.mxu0 0.0
    %2917 = vmatpush1.msra.mxu0 0.0
    %2918 = vmatprep.subr.mxu0 0.0
    %2919 = vmatpush1.msra.mxu0 0.0
    %2920 = vmatprep.subr.mxu0 0.0
    %2921 = vmatpush1.msra.mxu0 0.0
    %2922 = vmatprep.subr.mxu0 0.0
    %2923 = vmatpush1.msra.mxu0 0.0
    %2924 = vmatprep.subr.mxu0 0.0
    %2925 = vmatpush1.msra.mxu0 0.0
    %2926 = vmatprep.subr.mxu0 0.0
    %2927 = vmatpush1.msra.mxu0 0.0
    %2928 = vmatprep.subr.mxu0 0.0
    %2929 = vmatpush1.msra.mxu0 0.0
    %2930 = vmatprep.subr.mxu0 0.0
    %2931 = vmatpush1.msra.mxu0 0.0
    %2932 = vmatprep.mubr.f32.mxu0 0.0
    %2933 = vmatmul.mubr.f32.gmra.mrb[0].mxu0 %v2857
    %v2934 = vpop.f32.mrb[0].mxu0
    %v2935 = vadd.f32 %v2842, %v2934
    %v2936 = vpop.f32.mrb[0].mxu0
    %2937 = vmatprep.mubr.f32.mxu0 0.0
    %2938 = vmatmul.mubr.f32.gmra.mrb[0].mxu0 %v2860
    %v2939 = vpop.f32.mrb[0].mxu0
    %v2940 = vadd.f32 %v2846, %v2939
    %v2941 = vpop.f32.mrb[0].mxu0
    %2942 = vmatprep.mubr.f32.mxu0 0.0
    %2943 = vmatmul.mubr.f32.gmra.mrb[0].mxu0 %v2863
    %v2944 = vpop.f32.mrb[0].mxu0
    %v2945 = vadd.f32 %v2850, %v2944
    %v2946 = vpop.f32.mrb[0].mxu0
    %2947 = vmatprep.mubr.f32.mxu0 0.0
    %2948 = vmatmul.mubr.f32.gmra.mrb[0].mxu0 %v2866
    %v2949 = vpop.f32.mrb[0].mxu0
    %v2950 = vadd.f32 %v2854, %v2949
    %v2951 = vpop.f32.mrb[0].mxu0
    %2952 = vdwg.mxu0
    %v2953 = vand.u32 2147483647, %v2935
    %vm2954 = vcmp.le.f32.partialorder %v2953, 0.7853982
    %vm2955 = vcmp.lt.s32.totalorder %v2935, 0
    %v2956 = vand.u32 %v2935, 2139095040
    %v2957 = vshrl.u32 %v2956, 23
    %v2958 = vsub.s32 %v2957, 127
    %v2959 = vand.u32 2147483647, %v2935
    %v2960 = vand.u32 %v2959, 8388607
    %v2961 = vor.u32 %v2960, 8388608
    %v2962 = vsub.s32 0, %v2961
    %v2963 = vadd.s32 %v2958, 1
    %vm2964 = vcmp.gt.s32.totalorder %v2963, 0
    %v2965 = vsel %vm2964, %v2963, 0
    %v2966 = vshrl.u32 %v2965, 5
    %v2967 = vand.u32 %v2965, 31
    %v2968 = vsub.s32 32, %v2967
    %v2969 = vshrl.u32 683565275, %v2968
    %v2970 = vshll.u32 683565275, %v2967
    %v2971 = vshrl.u32 2475754826, %v2968
    %v2972 = vor.u32 %v2970, %v2971
    %v2973 = vshll.u32 2475754826, %v2967
    %v2974 = vshrl.u32 2131351028, %v2968
    %v2975 = vor.u32 %v2973, %v2974
    %v2976 = vshll.u32 2131351028, %v2967
    %v2977 = vshrl.u32 2102212464, %v2968
    %v2978 = vor.u32 %v2976, %v2977
    %v2979 = vshll.u32 2102212464, %v2967
    %v2980 = vshrl.u32 920167782, %v2968
    %v2981 = vor.u32 %v2979, %v2980
    %v2982 = vshll.u32 920167782, %v2967
    %v2983 = vshrl.u32 1326507024, %v2968
    %v2984 = vor.u32 %v2982, %v2983
    %vm2985 = vcmp.lt.s32.totalorder %v2966, 1
    %vm2986 = vcmp.lt.s32.totalorder %v2966, 2
    %vm2987 = vcmp.lt.s32.totalorder %v2966, 3
    %vm2988 = vcmp.lt.s32.totalorder %v2966, 4
    %v2989 = vsel %vm2985, %v2969, %v2972
    %v2990 = vsel %vm2988, %v2978, 2102212464
    %v2991 = vsel %vm2987, %v2975, %v2990
    %v2992 = vsel %vm2986, %v2989, %v2991
    %v2993 = vsel %vm2985, %v2972, %v2975
    %v2994 = vsel %vm2988, %v2981, 920167782
    %v2995 = vsel %vm2987, %v2978, %v2994
    %v2996 = vsel %vm2986, %v2993, %v2995
    %v2997 = vsel %vm2985, %v2975, %v2978
    %v2998 = vsel %vm2988, %v2984, 1326507024
    %v2999 = vsel %vm2987, %v2981, %v2998
    %v3000 = vsel %vm2986, %v2997, %v2999
    %v3001 = vshll.u32 %v2961, 8
    %v3002 = vmul.u32.u64.compose %v3001, %v3000
    %v3003 = vextract.low.u32 %v3002
    %v3004 = vextract.high.u32 %v3002
    %v3005 = vmul.u32.u64.compose %v3001, %v2996
    %v3006 = vextract.low.u32 %v3005
    %v3007 = vextract.high.u32 %v3005
    %v3008 = vmul.u32 %v3001, %v2992
    %v3009 = vadd.s32 %v3004, %v3006
    %vm3010 = vc.u32 %v3004, %v3006
    %v3011 = vadd.s32 %v3007, 1
    %v3012 = vsel %vm3010, %v3011, %v3007
    %v3013 = vadd.s32 %v3008, %v3012
    %v3014 = vadd.s32 %v3013, 536870912
    %v3015 = vshrl.u32 %v3014, 30
    %v3016 = vshll.u32 %v3015, 30
    %v3017 = vsub.s32 %v3013, %v3016
    %vm3018 = vcmp.lt.s32.totalorder %v3017, 0
    %v3019 = vsub.s32 0, %v3017
    %v3020 = vsel %vm3018, %v3019, %v3017
    %v3021 = vclz %v3020
    %v3022 = vsub.s32 %v3021, 2
    %vm3023 = vcmp.gt.s32.totalorder 0, %v3022
    %v3024 = vsel %vm3023, 0, %v3022
    %v3025 = vsub.s32 32, %v3024
    %v3026 = vshll.u32 %v3017, %v3024
    %v3027 = vshrl.u32 %v3009, %v3025
    %v3028 = vor.u32 %v3026, %v3027
    %v3029 = vsub.s32 4294967266, %v3024
    %v3030 = vadd.s32 %v3029, 127
    %v3031 = vshll.u32 %v3030, 23
    %v3032 = vor.u32 4788187, %v3031
    %v3033 = vand.u32 2147483647, %v3032
    %v3035 = vcvt.s32.f32 %v3028
    %v3036 = vmul.f32 %v3035, %v3033
    %v3037 = vxor.u32 %v3036, 2147483648
    %v3038 = vsel %vm2955, %v3037, %v3036
    %v3039 = vsub.s32 4, %v3015
    %v3040 = vsel %vm2955, %v3039, %v3015
    %v3041 = vsel %vm2954, %v2935, %v3038
    %v3042 = vsel %vm2954, 0, %v3040
    %v3043 = vcosq.f32.pop %v3041
    %v3044 = vsinq.f32.pop %v3041
    %vm3045 = vweird.f32 %v2935
    %v3046 = vadd.s32 %v3042, 3
    %v3047 = vand.u32 %v3046, 3
    %vm3048 = vcmp.lt.s32.totalorder %v3047, 2
    %vm3049 = vcmp.eq.s32.totalorder %v3047, 0
    %v3050 = vxor.u32 %v3044, 2147483648
    %v3051 = vsel %vm3049, %v3043, %v3050
    %vm3052 = vcmp.eq.s32.totalorder %v3047, 2
    %v3053 = vxor.u32 %v3043, 2147483648
    %v3054 = vsel %vm3052, %v3053, %v3044
    %v3055 = vsel %vm3048, %v3051, %v3054
    %v3056 = vsel %vm3045, nan, %v3055
    %v3057 = vand.u32 2147483647, %v2940
    %vm3058 = vcmp.le.f32.partialorder %v3057, 0.7853982
    %vm3059 = vcmp.lt.s32.totalorder %v2940, 0
    %v3060 = vand.u32 %v2940, 2139095040
    %v3061 = vshrl.u32 %v3060, 23
    %v3062 = vsub.s32 %v3061, 127
    %v3063 = vand.u32 2147483647, %v2940
    %v3064 = vand.u32 %v3063, 8388607
    %v3065 = vor.u32 %v3064, 8388608
    %v3066 = vsub.s32 0, %v3065
    %v3067 = vadd.s32 %v3062, 1
    %vm3068 = vcmp.gt.s32.totalorder %v3067, 0
    %v3069 = vsel %vm3068, %v3067, 0
    %v3070 = vshrl.u32 %v3069, 5
    %v3071 = vand.u32 %v3069, 31
    %v3072 = vsub.s32 32, %v3071
    %v3073 = vshrl.u32 683565275, %v3072
    %v3074 = vshll.u32 683565275, %v3071
    %v3075 = vshrl.u32 2475754826, %v3072
    %v3076 = vor.u32 %v3074, %v3075
    %v3077 = vshll.u32 2475754826, %v3071
    %v3078 = vshrl.u32 2131351028, %v3072
    %v3079 = vor.u32 %v3077, %v3078
    %v3080 = vshll.u32 2131351028, %v3071
    %v3081 = vshrl.u32 2102212464, %v3072
    %v3082 = vor.u32 %v3080, %v3081
    %v3083 = vshll.u32 2102212464, %v3071
    %v3084 = vshrl.u32 920167782, %v3072
    %v3085 = vor.u32 %v3083, %v3084
    %v3086 = vshll.u32 920167782, %v3071
    %v3087 = vshrl.u32 1326507024, %v3072
    %v3088 = vor.u32 %v3086, %v3087
    %vm3089 = vcmp.lt.s32.totalorder %v3070, 1
    %vm3090 = vcmp.lt.s32.totalorder %v3070, 2
    %vm3091 = vcmp.lt.s32.totalorder %v3070, 3
    %vm3092 = vcmp.lt.s32.totalorder %v3070, 4
    %v3093 = vsel %vm3089, %v3073, %v3076
    %v3094 = vsel %vm3092, %v3082, 2102212464
    %v3095 = vsel %vm3091, %v3079, %v3094
    %v3096 = vsel %vm3090, %v3093, %v3095
    %v3097 = vsel %vm3089, %v3076, %v3079
    %v3098 = vsel %vm3092, %v3085, 920167782
    %v3099 = vsel %vm3091, %v3082, %v3098
    %v3100 = vsel %vm3090, %v3097, %v3099
    %v3101 = vsel %vm3089, %v3079, %v3082
    %v3102 = vsel %vm3092, %v3088, 1326507024
    %v3103 = vsel %vm3091, %v3085, %v3102
    %v3104 = vsel %vm3090, %v3101, %v3103
    %v3105 = vshll.u32 %v3065, 8
    %v3106 = vmul.u32.u64.compose %v3105, %v3104
    %v3107 = vextract.low.u32 %v3106
    %v3108 = vextract.high.u32 %v3106
    %v3109 = vmul.u32.u64.compose %v3105, %v3100
    %v3110 = vextract.low.u32 %v3109
    %v3111 = vextract.high.u32 %v3109
    %v3112 = vmul.u32 %v3105, %v3096
    %v3113 = vadd.s32 %v3108, %v3110
    %vm3114 = vc.u32 %v3108, %v3110
    %v3115 = vadd.s32 %v3111, 1
    %v3116 = vsel %vm3114, %v3115, %v3111
    %v3117 = vadd.s32 %v3112, %v3116
    %v3118 = vadd.s32 %v3117, 536870912
    %v3119 = vshrl.u32 %v3118, 30
    %v3120 = vshll.u32 %v3119, 30
    %v3121 = vsub.s32 %v3117, %v3120
    %vm3122 = vcmp.lt.s32.totalorder %v3121, 0
    %v3123 = vsub.s32 0, %v3121
    %v3124 = vsel %vm3122, %v3123, %v3121
    %v3125 = vclz %v3124
    %v3126 = vsub.s32 %v3125, 2
    %vm3127 = vcmp.gt.s32.totalorder 0, %v3126
    %v3128 = vsel %vm3127, 0, %v3126
    %v3129 = vsub.s32 32, %v3128
    %v3130 = vshll.u32 %v3121, %v3128
    %v3131 = vshrl.u32 %v3113, %v3129
    %v3132 = vor.u32 %v3130, %v3131
    %v3133 = vsub.s32 4294967266, %v3128
    %v3134 = vadd.s32 %v3133, 127
    %v3135 = vshll.u32 %v3134, 23
    %v3136 = vor.u32 4788187, %v3135
    %v3137 = vand.u32 2147483647, %v3136
    %v3139 = vcvt.s32.f32 %v3132
    %v3140 = vmul.f32 %v3139, %v3137
    %v3141 = vxor.u32 %v3140, 2147483648
    %v3142 = vsel %vm3059, %v3141, %v3140
    %v3143 = vsub.s32 4, %v3119
    %v3144 = vsel %vm3059, %v3143, %v3119
    %v3145 = vsel %vm3058, %v2940, %v3142
    %v3146 = vsel %vm3058, 0, %v3144
    %v3147 = vcosq.f32.pop %v3145
    %v3148 = vsinq.f32.pop %v3145
    %vm3149 = vweird.f32 %v2940
    %v3150 = vadd.s32 %v3146, 3
    %v3151 = vand.u32 %v3150, 3
    %vm3152 = vcmp.lt.s32.totalorder %v3151, 2
    %vm3153 = vcmp.eq.s32.totalorder %v3151, 0
    %v3154 = vxor.u32 %v3148, 2147483648
    %v3155 = vsel %vm3153, %v3147, %v3154
    %vm3156 = vcmp.eq.s32.totalorder %v3151, 2
    %v3157 = vxor.u32 %v3147, 2147483648
    %v3158 = vsel %vm3156, %v3157, %v3148
    %v3159 = vsel %vm3152, %v3155, %v3158
    %v3160 = vsel %vm3149, nan, %v3159
    %v3161 = vand.u32 2147483647, %v2945
    %vm3162 = vcmp.le.f32.partialorder %v3161, 0.7853982
    %vm3163 = vcmp.lt.s32.totalorder %v2945, 0
    %v3164 = vand.u32 %v2945, 2139095040
    %v3165 = vshrl.u32 %v3164, 23
    %v3166 = vsub.s32 %v3165, 127
    %v3167 = vand.u32 2147483647, %v2945
    %v3168 = vand.u32 %v3167, 8388607
    %v3169 = vor.u32 %v3168, 8388608
    %v3170 = vsub.s32 0, %v3169
    %v3171 = vadd.s32 %v3166, 1
    %vm3172 = vcmp.gt.s32.totalorder %v3171, 0
    %v3173 = vsel %vm3172, %v3171, 0
    %v3174 = vshrl.u32 %v3173, 5
    %v3175 = vand.u32 %v3173, 31
    %v3176 = vsub.s32 32, %v3175
    %v3177 = vshrl.u32 683565275, %v3176
    %v3178 = vshll.u32 683565275, %v3175
    %v3179 = vshrl.u32 2475754826, %v3176
    %v3180 = vor.u32 %v3178, %v3179
    %v3181 = vshll.u32 2475754826, %v3175
    %v3182 = vshrl.u32 2131351028, %v3176
    %v3183 = vor.u32 %v3181, %v3182
    %v3184 = vshll.u32 2131351028, %v3175
    %v3185 = vshrl.u32 2102212464, %v3176
    %v3186 = vor.u32 %v3184, %v3185
    %v3187 = vshll.u32 2102212464, %v3175
    %v3188 = vshrl.u32 920167782, %v3176
    %v3189 = vor.u32 %v3187, %v3188
    %v3190 = vshll.u32 920167782, %v3175
    %v3191 = vshrl.u32 1326507024, %v3176
    %v3192 = vor.u32 %v3190, %v3191
    %vm3193 = vcmp.lt.s32.totalorder %v3174, 1
    %vm3194 = vcmp.lt.s32.totalorder %v3174, 2
    %vm3195 = vcmp.lt.s32.totalorder %v3174, 3
    %vm3196 = vcmp.lt.s32.totalorder %v3174, 4
    %v3197 = vsel %vm3193, %v3177, %v3180
    %v3198 = vsel %vm3196, %v3186, 2102212464
    %v3199 = vsel %vm3195, %v3183, %v3198
    %v3200 = vsel %vm3194, %v3197, %v3199
    %v3201 = vsel %vm3193, %v3180, %v3183
    %v3202 = vsel %vm3196, %v3189, 920167782
    %v3203 = vsel %vm3195, %v3186, %v3202
    %v3204 = vsel %vm3194, %v3201, %v3203
    %v3205 = vsel %vm3193, %v3183, %v3186
    %v3206 = vsel %vm3196, %v3192, 1326507024
    %v3207 = vsel %vm3195, %v3189, %v3206
    %v3208 = vsel %vm3194, %v3205, %v3207
    %v3209 = vshll.u32 %v3169, 8
    %v3210 = vmul.u32.u64.compose %v3209, %v3208
    %v3211 = vextract.low.u32 %v3210
    %v3212 = vextract.high.u32 %v3210
    %v3213 = vmul.u32.u64.compose %v3209, %v3204
    %v3214 = vextract.low.u32 %v3213
    %v3215 = vextract.high.u32 %v3213
    %v3216 = vmul.u32 %v3209, %v3200
    %v3217 = vadd.s32 %v3212, %v3214
    %vm3218 = vc.u32 %v3212, %v3214
    %v3219 = vadd.s32 %v3215, 1
    %v3220 = vsel %vm3218, %v3219, %v3215
    %v3221 = vadd.s32 %v3216, %v3220
    %v3222 = vadd.s32 %v3221, 536870912
    %v3223 = vshrl.u32 %v3222, 30
    %v3224 = vshll.u32 %v3223, 30
    %v3225 = vsub.s32 %v3221, %v3224
    %vm3226 = vcmp.lt.s32.totalorder %v3225, 0
    %v3227 = vsub.s32 0, %v3225
    %v3228 = vsel %vm3226, %v3227, %v3225
    %v3229 = vclz %v3228
    %v3230 = vsub.s32 %v3229, 2
    %vm3231 = vcmp.gt.s32.totalorder 0, %v3230
    %v3232 = vsel %vm3231, 0, %v3230
    %v3233 = vsub.s32 32, %v3232
    %v3234 = vshll.u32 %v3225, %v3232
    %v3235 = vshrl.u32 %v3217, %v3233
    %v3236 = vor.u32 %v3234, %v3235
    %v3237 = vsub.s32 4294967266, %v3232
    %v3238 = vadd.s32 %v3237, 127
    %v3239 = vshll.u32 %v3238, 23
    %v3240 = vor.u32 4788187, %v3239
    %v3241 = vand.u32 2147483647, %v3240
    %v3243 = vcvt.s32.f32 %v3236
    %v3244 = vmul.f32 %v3243, %v3241
    %v3245 = vxor.u32 %v3244, 2147483648
    %v3246 = vsel %vm3163, %v3245, %v3244
    %v3247 = vsub.s32 4, %v3223
    %v3248 = vsel %vm3163, %v3247, %v3223
    %v3249 = vsel %vm3162, %v2945, %v3246
    %v3250 = vsel %vm3162, 0, %v3248
    %v3251 = vcosq.f32.pop %v3249
    %v3252 = vsinq.f32.pop %v3249
    %vm3253 = vweird.f32 %v2945
    %v3254 = vadd.s32 %v3250, 3
    %v3255 = vand.u32 %v3254, 3
    %vm3256 = vcmp.lt.s32.totalorder %v3255, 2
    %vm3257 = vcmp.eq.s32.totalorder %v3255, 0
    %v3258 = vxor.u32 %v3252, 2147483648
    %v3259 = vsel %vm3257, %v3251, %v3258
    %vm3260 = vcmp.eq.s32.totalorder %v3255, 2
    %v3261 = vxor.u32 %v3251, 2147483648
    %v3262 = vsel %vm3260, %v3261, %v3252
    %v3263 = vsel %vm3256, %v3259, %v3262
    %v3264 = vsel %vm3253, nan, %v3263
    %v3265 = vand.u32 2147483647, %v2950
    %vm3266 = vcmp.le.f32.partialorder %v3265, 0.7853982
    %vm3267 = vcmp.lt.s32.totalorder %v2950, 0
    %v3268 = vand.u32 %v2950, 2139095040
    %v3269 = vshrl.u32 %v3268, 23
    %v3270 = vsub.s32 %v3269, 127
    %v3271 = vand.u32 2147483647, %v2950
    %v3272 = vand.u32 %v3271, 8388607
    %v3273 = vor.u32 %v3272, 8388608
    %v3274 = vsub.s32 0, %v3273
    %v3275 = vadd.s32 %v3270, 1
    %vm3276 = vcmp.gt.s32.totalorder %v3275, 0
    %v3277 = vsel %vm3276, %v3275, 0
    %v3278 = vshrl.u32 %v3277, 5
    %v3279 = vand.u32 %v3277, 31
    %v3280 = vsub.s32 32, %v3279
    %v3281 = vshrl.u32 683565275, %v3280
    %v3282 = vshll.u32 683565275, %v3279
    %v3283 = vshrl.u32 2475754826, %v3280
    %v3284 = vor.u32 %v3282, %v3283
    %v3285 = vshll.u32 2475754826, %v3279
    %v3286 = vshrl.u32 2131351028, %v3280
    %v3287 = vor.u32 %v3285, %v3286
    %v3288 = vshll.u32 2131351028, %v3279
    %v3289 = vshrl.u32 2102212464, %v3280
    %v3290 = vor.u32 %v3288, %v3289
    %v3291 = vshll.u32 2102212464, %v3279
    %v3292 = vshrl.u32 920167782, %v3280
    %v3293 = vor.u32 %v3291, %v3292
    %v3294 = vshll.u32 920167782, %v3279
    %v3295 = vshrl.u32 1326507024, %v3280
    %v3296 = vor.u32 %v3294, %v3295
    %vm3297 = vcmp.lt.s32.totalorder %v3278, 1
    %vm3298 = vcmp.lt.s32.totalorder %v3278, 2
    %vm3299 = vcmp.lt.s32.totalorder %v3278, 3
    %vm3300 = vcmp.lt.s32.totalorder %v3278, 4
    %v3301 = vsel %vm3297, %v3281, %v3284
    %v3302 = vsel %vm3300, %v3290, 2102212464
    %v3303 = vsel %vm3299, %v3287, %v3302
    %v3304 = vsel %vm3298, %v3301, %v3303
    %v3305 = vsel %vm3297, %v3284, %v3287
    %v3306 = vsel %vm3300, %v3293, 920167782
    %v3307 = vsel %vm3299, %v3290, %v3306
    %v3308 = vsel %vm3298, %v3305, %v3307
    %v3309 = vsel %vm3297, %v3287, %v3290
    %v3310 = vsel %vm3300, %v3296, 1326507024
    %v3311 = vsel %vm3299, %v3293, %v3310
    %v3312 = vsel %vm3298, %v3309, %v3311
    %v3313 = vshll.u32 %v3273, 8
    %v3314 = vmul.u32.u64.compose %v3313, %v3312
    %v3315 = vextract.low.u32 %v3314
    %v3316 = vextract.high.u32 %v3314
    %v3317 = vmul.u32.u64.compose %v3313, %v3308
    %v3318 = vextract.low.u32 %v3317
    %v3319 = vextract.high.u32 %v3317
    %v3320 = vmul.u32 %v3313, %v3304
    %v3321 = vadd.s32 %v3316, %v3318
    %vm3322 = vc.u32 %v3316, %v3318
    %v3323 = vadd.s32 %v3319, 1
    %v3324 = vsel %vm3322, %v3323, %v3319
    %v3325 = vadd.s32 %v3320, %v3324
    %v3326 = vadd.s32 %v3325, 536870912
    %v3327 = vshrl.u32 %v3326, 30
    %v3328 = vshll.u32 %v3327, 30
    %v3329 = vsub.s32 %v3325, %v3328
    %vm3330 = vcmp.lt.s32.totalorder %v3329, 0
    %v3331 = vsub.s32 0, %v3329
    %v3332 = vsel %vm3330, %v3331, %v3329
    %v3333 = vclz %v3332
    %v3334 = vsub.s32 %v3333, 2
    %vm3335 = vcmp.gt.s32.totalorder 0, %v3334
    %v3336 = vsel %vm3335, 0, %v3334
    %v3337 = vsub.s32 32, %v3336
    %v3338 = vshll.u32 %v3329, %v3336
    %v3339 = vshrl.u32 %v3321, %v3337
    %v3340 = vor.u32 %v3338, %v3339
    %v3341 = vsub.s32 4294967266, %v3336
    %v3342 = vadd.s32 %v3341, 127
    %v3343 = vshll.u32 %v3342, 23
    %v3344 = vor.u32 4788187, %v3343
    %v3345 = vand.u32 2147483647, %v3344
    %v3347 = vcvt.s32.f32 %v3340
    %v3348 = vmul.f32 %v3347, %v3345
    %v3349 = vxor.u32 %v3348, 2147483648
    %v3350 = vsel %vm3267, %v3349, %v3348
    %v3351 = vsub.s32 4, %v3327
    %v3352 = vsel %vm3267, %v3351, %v3327
    %v3353 = vsel %vm3266, %v2950, %v3350
    %v3354 = vsel %vm3266, 0, %v3352
    %v3355 = vcosq.f32.pop %v3353
    %v3356 = vsinq.f32.pop %v3353
    %vm3357 = vweird.f32 %v2950
    %v3358 = vadd.s32 %v3354, 3
    %v3359 = vand.u32 %v3358, 3
    %vm3360 = vcmp.lt.s32.totalorder %v3359, 2
    %vm3361 = vcmp.eq.s32.totalorder %v3359, 0
    %v3362 = vxor.u32 %v3356, 2147483648
    %v3363 = vsel %vm3361, %v3355, %v3362
    %vm3364 = vcmp.eq.s32.totalorder %v3359, 2
    %v3365 = vxor.u32 %v3355, 2147483648
    %v3366 = vsel %vm3364, %v3365, %v3356
    %v3367 = vsel %vm3360, %v3363, %v3366
    %v3368 = vsel %vm3357, nan, %v3367
    %s3369 = scalar_lea.vmem [#allocation3], 160
    %v3370 = vld [vmem:[%s3369] sm:$0xff]
    %v3371 = vld [vmem:[%s3369 + $0x8] sm:$0xff]
    %v3372 = vld [vmem:[%s3369 + $0x10] sm:$0xff]
    %v3373 = vld [vmem:[%s3369 + $0x18] sm:$0xff]
    %3374 = vset.pattern.permute.xlu0 6
    %3375 = vperm.xlu0 %3374, %v51
    %v3376 = vpop.permute.xlu0 %3375
    %3378 = vset.pattern.permute.xlu0 6
    %3379 = vperm.xlu0 %3378, %v52
    %v3380 = vpop.permute.xlu0 %3379
    %3382 = vset.pattern.permute.xlu0 6
    %3383 = vperm.xlu0 %3382, %v53
    %v3384 = vpop.permute.xlu0 %3383
    %3386 = vset.pattern.permute.xlu0 6
    %3387 = vperm.xlu0 %3386, %v54
    %v3388 = vpop.permute.xlu0 %3387
    %v3391 = vsel %vm613, %v3370, 0
    %v3394 = vsel %vm613, %v3371, 0
    %v3397 = vsel %vm613, %v3372, 0
    %v3400 = vsel %vm613, %v3373, 0
    %3402 = vmatprep.subr.mxu0 0.0
    %3403 = vmatpush1.msra.mxu0 %v3056
    %3404 = vmatprep.subr.mxu0 0.0
    %3405 = vmatpush1.msra.mxu0 %v3160
    %3406 = vmatprep.subr.mxu0 0.0
    %3407 = vmatpush1.msra.mxu0 %v3264
    %3408 = vmatprep.subr.mxu0 0.0
    %3409 = vmatpush1.msra.mxu0 %v3368
    %3410 = vmatprep.subr.mxu0 0.0
    %3411 = vmatpush1.msra.mxu0 0.0
    %3412 = vmatprep.subr.mxu0 0.0
    %3413 = vmatpush1.msra.mxu0 0.0
    %3414 = vmatprep.subr.mxu0 0.0
    %3415 = vmatpush1.msra.mxu0 0.0
    %3416 = vmatprep.subr.mxu0 0.0
    %3417 = vmatpush1.msra.mxu0 0.0
    %3418 = vmatprep.subr.mxu0 0.0
    %3419 = vmatpush1.msra.mxu0 0.0
    %3420 = vmatprep.subr.mxu0 0.0
    %3421 = vmatpush1.msra.mxu0 0.0
    %3422 = vmatprep.subr.mxu0 0.0
    %3423 = vmatpush1.msra.mxu0 0.0
    %3424 = vmatprep.subr.mxu0 0.0
    %3425 = vmatpush1.msra.mxu0 0.0
    %3426 = vmatprep.subr.mxu0 0.0
    %3427 = vmatpush1.msra.mxu0 0.0
    %3428 = vmatprep.subr.mxu0 0.0
    %3429 = vmatpush1.msra.mxu0 0.0
    %3430 = vmatprep.subr.mxu0 0.0
    %3431 = vmatpush1.msra.mxu0 0.0
    %3432 = vmatprep.subr.mxu0 0.0
    %3433 = vmatpush1.msra.mxu0 0.0
    %3434 = vmatprep.subr.mxu0 0.0
    %3435 = vmatpush1.msra.mxu0 0.0
    %3436 = vmatprep.subr.mxu0 0.0
    %3437 = vmatpush1.msra.mxu0 0.0
    %3438 = vmatprep.subr.mxu0 0.0
    %3439 = vmatpush1.msra.mxu0 0.0
    %3440 = vmatprep.subr.mxu0 0.0
    %3441 = vmatpush1.msra.mxu0 0.0
    %3442 = vmatprep.subr.mxu0 0.0
    %3443 = vmatpush1.msra.mxu0 0.0
    %3444 = vmatprep.subr.mxu0 0.0
    %3445 = vmatpush1.msra.mxu0 0.0
    %3446 = vmatprep.subr.mxu0 0.0
    %3447 = vmatpush1.msra.mxu0 0.0
    %3448 = vmatprep.subr.mxu0 0.0
    %3449 = vmatpush1.msra.mxu0 0.0
    %3450 = vmatprep.subr.mxu0 0.0
    %3451 = vmatpush1.msra.mxu0 0.0
    %3452 = vmatprep.subr.mxu0 0.0
    %3453 = vmatpush1.msra.mxu0 0.0
    %3454 = vmatprep.subr.mxu0 0.0
    %3455 = vmatpush1.msra.mxu0 0.0
    %3456 = vmatprep.subr.mxu0 0.0
    %3457 = vmatpush1.msra.mxu0 0.0
    %3458 = vmatprep.subr.mxu0 0.0
    %3459 = vmatpush1.msra.mxu0 0.0
    %3460 = vmatprep.subr.mxu0 0.0
    %3461 = vmatpush1.msra.mxu0 0.0
    %3462 = vmatprep.subr.mxu0 0.0
    %3463 = vmatpush1.msra.mxu0 0.0
    %3464 = vmatprep.subr.mxu0 0.0
    %3465 = vmatpush1.msra.mxu0 0.0
    %3466 = vmatprep.mubr.f32.mxu0 0.0
    %3467 = vmatmul.mubr.f32.gmra.mrb[0].mxu0 %v3391
    %v3468 = vpop.f32.mrb[0].mxu0
    %v3469 = vadd.f32 %v3376, %v3468
    %v3470 = vpop.f32.mrb[0].mxu0
    %3471 = vmatprep.mubr.f32.mxu0 0.0
    %3472 = vmatmul.mubr.f32.gmra.mrb[0].mxu0 %v3394
    %v3473 = vpop.f32.mrb[0].mxu0
    %v3474 = vadd.f32 %v3380, %v3473
    %v3475 = vpop.f32.mrb[0].mxu0
    %3476 = vmatprep.mubr.f32.mxu0 0.0
    %3477 = vmatmul.mubr.f32.gmra.mrb[0].mxu0 %v3397
    %v3478 = vpop.f32.mrb[0].mxu0
    %v3479 = vadd.f32 %v3384, %v3478
    %v3480 = vpop.f32.mrb[0].mxu0
    %3481 = vmatprep.mubr.f32.mxu0 0.0
    %3482 = vmatmul.mubr.f32.gmra.mrb[0].mxu0 %v3400
    %v3483 = vpop.f32.mrb[0].mxu0
    %v3484 = vadd.f32 %v3388, %v3483
    %v3485 = vpop.f32.mrb[0].mxu0
    %3486 = vdwg.mxu0
    %v3487 = vand.u32 2147483647, %v3469
    %vm3488 = vcmp.le.f32.partialorder %v3487, 0.7853982
    %vm3489 = vcmp.lt.s32.totalorder %v3469, 0
    %v3490 = vand.u32 %v3469, 2139095040
    %v3491 = vshrl.u32 %v3490, 23
    %v3492 = vsub.s32 %v3491, 127
    %v3493 = vand.u32 2147483647, %v3469
    %v3494 = vand.u32 %v3493, 8388607
    %v3495 = vor.u32 %v3494, 8388608
    %v3496 = vsub.s32 0, %v3495
    %v3497 = vadd.s32 %v3492, 1
    %vm3498 = vcmp.gt.s32.totalorder %v3497, 0
    %v3499 = vsel %vm3498, %v3497, 0
    %v3500 = vshrl.u32 %v3499, 5
    %v3501 = vand.u32 %v3499, 31
    %v3502 = vsub.s32 32, %v3501
    %v3503 = vshrl.u32 683565275, %v3502
    %v3504 = vshll.u32 683565275, %v3501
    %v3505 = vshrl.u32 2475754826, %v3502
    %v3506 = vor.u32 %v3504, %v3505
    %v3507 = vshll.u32 2475754826, %v3501
    %v3508 = vshrl.u32 2131351028, %v3502
    %v3509 = vor.u32 %v3507, %v3508
    %v3510 = vshll.u32 2131351028, %v3501
    %v3511 = vshrl.u32 2102212464, %v3502
    %v3512 = vor.u32 %v3510, %v3511
    %v3513 = vshll.u32 2102212464, %v3501
    %v3514 = vshrl.u32 920167782, %v3502
    %v3515 = vor.u32 %v3513, %v3514
    %v3516 = vshll.u32 920167782, %v3501
    %v3517 = vshrl.u32 1326507024, %v3502
    %v3518 = vor.u32 %v3516, %v3517
    %vm3519 = vcmp.lt.s32.totalorder %v3500, 1
    %vm3520 = vcmp.lt.s32.totalorder %v3500, 2
    %vm3521 = vcmp.lt.s32.totalorder %v3500, 3
    %vm3522 = vcmp.lt.s32.totalorder %v3500, 4
    %v3523 = vsel %vm3519, %v3503, %v3506
    %v3524 = vsel %vm3522, %v3512, 2102212464
    %v3525 = vsel %vm3521, %v3509, %v3524
    %v3526 = vsel %vm3520, %v3523, %v3525
    %v3527 = vsel %vm3519, %v3506, %v3509
    %v3528 = vsel %vm3522, %v3515, 920167782
    %v3529 = vsel %vm3521, %v3512, %v3528
    %v3530 = vsel %vm3520, %v3527, %v3529
    %v3531 = vsel %vm3519, %v3509, %v3512
    %v3532 = vsel %vm3522, %v3518, 1326507024
    %v3533 = vsel %vm3521, %v3515, %v3532
    %v3534 = vsel %vm3520, %v3531, %v3533
    %v3535 = vshll.u32 %v3495, 8
    %v3536 = vmul.u32.u64.compose %v3535, %v3534
    %v3537 = vextract.low.u32 %v3536
    %v3538 = vextract.high.u32 %v3536
    %v3539 = vmul.u32.u64.compose %v3535, %v3530
    %v3540 = vextract.low.u32 %v3539
    %v3541 = vextract.high.u32 %v3539
    %v3542 = vmul.u32 %v3535, %v3526
    %v3543 = vadd.s32 %v3538, %v3540
    %vm3544 = vc.u32 %v3538, %v3540
    %v3545 = vadd.s32 %v3541, 1
    %v3546 = vsel %vm3544, %v3545, %v3541
    %v3547 = vadd.s32 %v3542, %v3546
    %v3548 = vadd.s32 %v3547, 536870912
    %v3549 = vshrl.u32 %v3548, 30
    %v3550 = vshll.u32 %v3549, 30
    %v3551 = vsub.s32 %v3547, %v3550
    %vm3552 = vcmp.lt.s32.totalorder %v3551, 0
    %v3553 = vsub.s32 0, %v3551
    %v3554 = vsel %vm3552, %v3553, %v3551
    %v3555 = vclz %v3554
    %v3556 = vsub.s32 %v3555, 2
    %vm3557 = vcmp.gt.s32.totalorder 0, %v3556
    %v3558 = vsel %vm3557, 0, %v3556
    %v3559 = vsub.s32 32, %v3558
    %v3560 = vshll.u32 %v3551, %v3558
    %v3561 = vshrl.u32 %v3543, %v3559
    %v3562 = vor.u32 %v3560, %v3561
    %v3563 = vsub.s32 4294967266, %v3558
    %v3564 = vadd.s32 %v3563, 127
    %v3565 = vshll.u32 %v3564, 23
    %v3566 = vor.u32 4788187, %v3565
    %v3567 = vand.u32 2147483647, %v3566
    %v3569 = vcvt.s32.f32 %v3562
    %v3570 = vmul.f32 %v3569, %v3567
    %v3571 = vxor.u32 %v3570, 2147483648
    %v3572 = vsel %vm3489, %v3571, %v3570
    %v3573 = vsub.s32 4, %v3549
    %v3574 = vsel %vm3489, %v3573, %v3549
    %v3575 = vsel %vm3488, %v3469, %v3572
    %v3576 = vsel %vm3488, 0, %v3574
    %v3577 = vcosq.f32.pop %v3575
    %v3578 = vsinq.f32.pop %v3575
    %vm3579 = vweird.f32 %v3469
    %v3580 = vadd.s32 %v3576, 3
    %v3581 = vand.u32 %v3580, 3
    %vm3582 = vcmp.lt.s32.totalorder %v3581, 2
    %vm3583 = vcmp.eq.s32.totalorder %v3581, 0
    %v3584 = vxor.u32 %v3578, 2147483648
    %v3585 = vsel %vm3583, %v3577, %v3584
    %vm3586 = vcmp.eq.s32.totalorder %v3581, 2
    %v3587 = vxor.u32 %v3577, 2147483648
    %v3588 = vsel %vm3586, %v3587, %v3578
    %v3589 = vsel %vm3582, %v3585, %v3588
    %v3590 = vsel %vm3579, nan, %v3589
    %v3591 = vand.u32 2147483647, %v3474
    %vm3592 = vcmp.le.f32.partialorder %v3591, 0.7853982
    %vm3593 = vcmp.lt.s32.totalorder %v3474, 0
    %v3594 = vand.u32 %v3474, 2139095040
    %v3595 = vshrl.u32 %v3594, 23
    %v3596 = vsub.s32 %v3595, 127
    %v3597 = vand.u32 2147483647, %v3474
    %v3598 = vand.u32 %v3597, 8388607
    %v3599 = vor.u32 %v3598, 8388608
    %v3600 = vsub.s32 0, %v3599
    %v3601 = vadd.s32 %v3596, 1
    %vm3602 = vcmp.gt.s32.totalorder %v3601, 0
    %v3603 = vsel %vm3602, %v3601, 0
    %v3604 = vshrl.u32 %v3603, 5
    %v3605 = vand.u32 %v3603, 31
    %v3606 = vsub.s32 32, %v3605
    %v3607 = vshrl.u32 683565275, %v3606
    %v3608 = vshll.u32 683565275, %v3605
    %v3609 = vshrl.u32 2475754826, %v3606
    %v3610 = vor.u32 %v3608, %v3609
    %v3611 = vshll.u32 2475754826, %v3605
    %v3612 = vshrl.u32 2131351028, %v3606
    %v3613 = vor.u32 %v3611, %v3612
    %v3614 = vshll.u32 2131351028, %v3605
    %v3615 = vshrl.u32 2102212464, %v3606
    %v3616 = vor.u32 %v3614, %v3615
    %v3617 = vshll.u32 2102212464, %v3605
    %v3618 = vshrl.u32 920167782, %v3606
    %v3619 = vor.u32 %v3617, %v3618
    %v3620 = vshll.u32 920167782, %v3605
    %v3621 = vshrl.u32 1326507024, %v3606
    %v3622 = vor.u32 %v3620, %v3621
    %vm3623 = vcmp.lt.s32.totalorder %v3604, 1
    %vm3624 = vcmp.lt.s32.totalorder %v3604, 2
    %vm3625 = vcmp.lt.s32.totalorder %v3604, 3
    %vm3626 = vcmp.lt.s32.totalorder %v3604, 4
    %v3627 = vsel %vm3623, %v3607, %v3610
    %v3628 = vsel %vm3626, %v3616, 2102212464
    %v3629 = vsel %vm3625, %v3613, %v3628
    %v3630 = vsel %vm3624, %v3627, %v3629
    %v3631 = vsel %vm3623, %v3610, %v3613
    %v3632 = vsel %vm3626, %v3619, 920167782
    %v3633 = vsel %vm3625, %v3616, %v3632
    %v3634 = vsel %vm3624, %v3631, %v3633
    %v3635 = vsel %vm3623, %v3613, %v3616
    %v3636 = vsel %vm3626, %v3622, 1326507024
    %v3637 = vsel %vm3625, %v3619, %v3636
    %v3638 = vsel %vm3624, %v3635, %v3637
    %v3639 = vshll.u32 %v3599, 8
    %v3640 = vmul.u32.u64.compose %v3639, %v3638
    %v3641 = vextract.low.u32 %v3640
    %v3642 = vextract.high.u32 %v3640
    %v3643 = vmul.u32.u64.compose %v3639, %v3634
    %v3644 = vextract.low.u32 %v3643
    %v3645 = vextract.high.u32 %v3643
    %v3646 = vmul.u32 %v3639, %v3630
    %v3647 = vadd.s32 %v3642, %v3644
    %vm3648 = vc.u32 %v3642, %v3644
    %v3649 = vadd.s32 %v3645, 1
    %v3650 = vsel %vm3648, %v3649, %v3645
    %v3651 = vadd.s32 %v3646, %v3650
    %v3652 = vadd.s32 %v3651, 536870912
    %v3653 = vshrl.u32 %v3652, 30
    %v3654 = vshll.u32 %v3653, 30
    %v3655 = vsub.s32 %v3651, %v3654
    %vm3656 = vcmp.lt.s32.totalorder %v3655, 0
    %v3657 = vsub.s32 0, %v3655
    %v3658 = vsel %vm3656, %v3657, %v3655
    %v3659 = vclz %v3658
    %v3660 = vsub.s32 %v3659, 2
    %vm3661 = vcmp.gt.s32.totalorder 0, %v3660
    %v3662 = vsel %vm3661, 0, %v3660
    %v3663 = vsub.s32 32, %v3662
    %v3664 = vshll.u32 %v3655, %v3662
    %v3665 = vshrl.u32 %v3647, %v3663
    %v3666 = vor.u32 %v3664, %v3665
    %v3667 = vsub.s32 4294967266, %v3662
    %v3668 = vadd.s32 %v3667, 127
    %v3669 = vshll.u32 %v3668, 23
    %v3670 = vor.u32 4788187, %v3669
    %v3671 = vand.u32 2147483647, %v3670
    %v3673 = vcvt.s32.f32 %v3666
    %v3674 = vmul.f32 %v3673, %v3671
    %v3675 = vxor.u32 %v3674, 2147483648
    %v3676 = vsel %vm3593, %v3675, %v3674
    %v3677 = vsub.s32 4, %v3653
    %v3678 = vsel %vm3593, %v3677, %v3653
    %v3679 = vsel %vm3592, %v3474, %v3676
    %v3680 = vsel %vm3592, 0, %v3678
    %v3681 = vcosq.f32.pop %v3679
    %v3682 = vsinq.f32.pop %v3679
    %vm3683 = vweird.f32 %v3474
    %v3684 = vadd.s32 %v3680, 3
    %v3685 = vand.u32 %v3684, 3
    %vm3686 = vcmp.lt.s32.totalorder %v3685, 2
    %vm3687 = vcmp.eq.s32.totalorder %v3685, 0
    %v3688 = vxor.u32 %v3682, 2147483648
    %v3689 = vsel %vm3687, %v3681, %v3688
    %vm3690 = vcmp.eq.s32.totalorder %v3685, 2
    %v3691 = vxor.u32 %v3681, 2147483648
    %v3692 = vsel %vm3690, %v3691, %v3682
    %v3693 = vsel %vm3686, %v3689, %v3692
    %v3694 = vsel %vm3683, nan, %v3693
    %v3695 = vand.u32 2147483647, %v3479
    %vm3696 = vcmp.le.f32.partialorder %v3695, 0.7853982
    %vm3697 = vcmp.lt.s32.totalorder %v3479, 0
    %v3698 = vand.u32 %v3479, 2139095040
    %v3699 = vshrl.u32 %v3698, 23
    %v3700 = vsub.s32 %v3699, 127
    %v3701 = vand.u32 2147483647, %v3479
    %v3702 = vand.u32 %v3701, 8388607
    %v3703 = vor.u32 %v3702, 8388608
    %v3704 = vsub.s32 0, %v3703
    %v3705 = vadd.s32 %v3700, 1
    %vm3706 = vcmp.gt.s32.totalorder %v3705, 0
    %v3707 = vsel %vm3706, %v3705, 0
    %v3708 = vshrl.u32 %v3707, 5
    %v3709 = vand.u32 %v3707, 31
    %v3710 = vsub.s32 32, %v3709
    %v3711 = vshrl.u32 683565275, %v3710
    %v3712 = vshll.u32 683565275, %v3709
    %v3713 = vshrl.u32 2475754826, %v3710
    %v3714 = vor.u32 %v3712, %v3713
    %v3715 = vshll.u32 2475754826, %v3709
    %v3716 = vshrl.u32 2131351028, %v3710
    %v3717 = vor.u32 %v3715, %v3716
    %v3718 = vshll.u32 2131351028, %v3709
    %v3719 = vshrl.u32 2102212464, %v3710
    %v3720 = vor.u32 %v3718, %v3719
    %v3721 = vshll.u32 2102212464, %v3709
    %v3722 = vshrl.u32 920167782, %v3710
    %v3723 = vor.u32 %v3721, %v3722
    %v3724 = vshll.u32 920167782, %v3709
    %v3725 = vshrl.u32 1326507024, %v3710
    %v3726 = vor.u32 %v3724, %v3725
    %vm3727 = vcmp.lt.s32.totalorder %v3708, 1
    %vm3728 = vcmp.lt.s32.totalorder %v3708, 2
    %vm3729 = vcmp.lt.s32.totalorder %v3708, 3
    %vm3730 = vcmp.lt.s32.totalorder %v3708, 4
    %v3731 = vsel %vm3727, %v3711, %v3714
    %v3732 = vsel %vm3730, %v3720, 2102212464
    %v3733 = vsel %vm3729, %v3717, %v3732
    %v3734 = vsel %vm3728, %v3731, %v3733
    %v3735 = vsel %vm3727, %v3714, %v3717
    %v3736 = vsel %vm3730, %v3723, 920167782
    %v3737 = vsel %vm3729, %v3720, %v3736
    %v3738 = vsel %vm3728, %v3735, %v3737
    %v3739 = vsel %vm3727, %v3717, %v3720
    %v3740 = vsel %vm3730, %v3726, 1326507024
    %v3741 = vsel %vm3729, %v3723, %v3740
    %v3742 = vsel %vm3728, %v3739, %v3741
    %v3743 = vshll.u32 %v3703, 8
    %v3744 = vmul.u32.u64.compose %v3743, %v3742
    %v3745 = vextract.low.u32 %v3744
    %v3746 = vextract.high.u32 %v3744
    %v3747 = vmul.u32.u64.compose %v3743, %v3738
    %v3748 = vextract.low.u32 %v3747
    %v3749 = vextract.high.u32 %v3747
    %v3750 = vmul.u32 %v3743, %v3734
    %v3751 = vadd.s32 %v3746, %v3748
    %vm3752 = vc.u32 %v3746, %v3748
    %v3753 = vadd.s32 %v3749, 1
    %v3754 = vsel %vm3752, %v3753, %v3749
    %v3755 = vadd.s32 %v3750, %v3754
    %v3756 = vadd.s32 %v3755, 536870912
    %v3757 = vshrl.u32 %v3756, 30
    %v3758 = vshll.u32 %v3757, 30
    %v3759 = vsub.s32 %v3755, %v3758
    %vm3760 = vcmp.lt.s32.totalorder %v3759, 0
    %v3761 = vsub.s32 0, %v3759
    %v3762 = vsel %vm3760, %v3761, %v3759
    %v3763 = vclz %v3762
    %v3764 = vsub.s32 %v3763, 2
    %vm3765 = vcmp.gt.s32.totalorder 0, %v3764
    %v3766 = vsel %vm3765, 0, %v3764
    %v3767 = vsub.s32 32, %v3766
    %v3768 = vshll.u32 %v3759, %v3766
    %v3769 = vshrl.u32 %v3751, %v3767
    %v3770 = vor.u32 %v3768, %v3769
    %v3771 = vsub.s32 4294967266, %v3766
    %v3772 = vadd.s32 %v3771, 127
    %v3773 = vshll.u32 %v3772, 23
    %v3774 = vor.u32 4788187, %v3773
    %v3775 = vand.u32 2147483647, %v3774
    %v3777 = vcvt.s32.f32 %v3770
    %v3778 = vmul.f32 %v3777, %v3775
    %v3779 = vxor.u32 %v3778, 2147483648
    %v3780 = vsel %vm3697, %v3779, %v3778
    %v3781 = vsub.s32 4, %v3757
    %v3782 = vsel %vm3697, %v3781, %v3757
    %v3783 = vsel %vm3696, %v3479, %v3780
    %v3784 = vsel %vm3696, 0, %v3782
    %v3785 = vcosq.f32.pop %v3783
    %v3786 = vsinq.f32.pop %v3783
    %vm3787 = vweird.f32 %v3479
    %v3788 = vadd.s32 %v3784, 3
    %v3789 = vand.u32 %v3788, 3
    %vm3790 = vcmp.lt.s32.totalorder %v3789, 2
    %vm3791 = vcmp.eq.s32.totalorder %v3789, 0
    %v3792 = vxor.u32 %v3786, 2147483648
    %v3793 = vsel %vm3791, %v3785, %v3792
    %vm3794 = vcmp.eq.s32.totalorder %v3789, 2
    %v3795 = vxor.u32 %v3785, 2147483648
    %v3796 = vsel %vm3794, %v3795, %v3786
    %v3797 = vsel %vm3790, %v3793, %v3796
    %v3798 = vsel %vm3787, nan, %v3797
    %v3799 = vand.u32 2147483647, %v3484
    %vm3800 = vcmp.le.f32.partialorder %v3799, 0.7853982
    %vm3801 = vcmp.lt.s32.totalorder %v3484, 0
    %v3802 = vand.u32 %v3484, 2139095040
    %v3803 = vshrl.u32 %v3802, 23
    %v3804 = vsub.s32 %v3803, 127
    %v3805 = vand.u32 2147483647, %v3484
    %v3806 = vand.u32 %v3805, 8388607
    %v3807 = vor.u32 %v3806, 8388608
    %v3808 = vsub.s32 0, %v3807
    %v3809 = vadd.s32 %v3804, 1
    %vm3810 = vcmp.gt.s32.totalorder %v3809, 0
    %v3811 = vsel %vm3810, %v3809, 0
    %v3812 = vshrl.u32 %v3811, 5
    %v3813 = vand.u32 %v3811, 31
    %v3814 = vsub.s32 32, %v3813
    %v3815 = vshrl.u32 683565275, %v3814
    %v3816 = vshll.u32 683565275, %v3813
    %v3817 = vshrl.u32 2475754826, %v3814
    %v3818 = vor.u32 %v3816, %v3817
    %v3819 = vshll.u32 2475754826, %v3813
    %v3820 = vshrl.u32 2131351028, %v3814
    %v3821 = vor.u32 %v3819, %v3820
    %v3822 = vshll.u32 2131351028, %v3813
    %v3823 = vshrl.u32 2102212464, %v3814
    %v3824 = vor.u32 %v3822, %v3823
    %v3825 = vshll.u32 2102212464, %v3813
    %v3826 = vshrl.u32 920167782, %v3814
    %v3827 = vor.u32 %v3825, %v3826
    %v3828 = vshll.u32 920167782, %v3813
    %v3829 = vshrl.u32 1326507024, %v3814
    %v3830 = vor.u32 %v3828, %v3829
    %vm3831 = vcmp.lt.s32.totalorder %v3812, 1
    %vm3832 = vcmp.lt.s32.totalorder %v3812, 2
    %vm3833 = vcmp.lt.s32.totalorder %v3812, 3
    %vm3834 = vcmp.lt.s32.totalorder %v3812, 4
    %v3835 = vsel %vm3831, %v3815, %v3818
    %v3836 = vsel %vm3834, %v3824, 2102212464
    %v3837 = vsel %vm3833, %v3821, %v3836
    %v3838 = vsel %vm3832, %v3835, %v3837
    %v3839 = vsel %vm3831, %v3818, %v3821
    %v3840 = vsel %vm3834, %v3827, 920167782
    %v3841 = vsel %vm3833, %v3824, %v3840
    %v3842 = vsel %vm3832, %v3839, %v3841
    %v3843 = vsel %vm3831, %v3821, %v3824
    %v3844 = vsel %vm3834, %v3830, 1326507024
    %v3845 = vsel %vm3833, %v3827, %v3844
    %v3846 = vsel %vm3832, %v3843, %v3845
    %v3847 = vshll.u32 %v3807, 8
    %v3848 = vmul.u32.u64.compose %v3847, %v3846
    %v3849 = vextract.low.u32 %v3848
    %v3850 = vextract.high.u32 %v3848
    %v3851 = vmul.u32.u64.compose %v3847, %v3842
    %v3852 = vextract.low.u32 %v3851
    %v3853 = vextract.high.u32 %v3851
    %v3854 = vmul.u32 %v3847, %v3838
    %v3855 = vadd.s32 %v3850, %v3852
    %vm3856 = vc.u32 %v3850, %v3852
    %v3857 = vadd.s32 %v3853, 1
    %v3858 = vsel %vm3856, %v3857, %v3853
    %v3859 = vadd.s32 %v3854, %v3858
    %v3860 = vadd.s32 %v3859, 536870912
    %v3861 = vshrl.u32 %v3860, 30
    %v3862 = vshll.u32 %v3861, 30
    %v3863 = vsub.s32 %v3859, %v3862
    %vm3864 = vcmp.lt.s32.totalorder %v3863, 0
    %v3865 = vsub.s32 0, %v3863
    %v3866 = vsel %vm3864, %v3865, %v3863
    %v3867 = vclz %v3866
    %v3868 = vsub.s32 %v3867, 2
    %vm3869 = vcmp.gt.s32.totalorder 0, %v3868
    %v3870 = vsel %vm3869, 0, %v3868
    %v3871 = vsub.s32 32, %v3870
    %v3872 = vshll.u32 %v3863, %v3870
    %v3873 = vshrl.u32 %v3855, %v3871
    %v3874 = vor.u32 %v3872, %v3873
    %v3875 = vsub.s32 4294967266, %v3870
    %v3876 = vadd.s32 %v3875, 127
    %v3877 = vshll.u32 %v3876, 23
    %v3878 = vor.u32 4788187, %v3877
    %v3879 = vand.u32 2147483647, %v3878
    %v3881 = vcvt.s32.f32 %v3874
    %v3882 = vmul.f32 %v3881, %v3879
    %v3883 = vxor.u32 %v3882, 2147483648
    %v3884 = vsel %vm3801, %v3883, %v3882
    %v3885 = vsub.s32 4, %v3861
    %v3886 = vsel %vm3801, %v3885, %v3861
    %v3887 = vsel %vm3800, %v3484, %v3884
    %v3888 = vsel %vm3800, 0, %v3886
    %v3889 = vcosq.f32.pop %v3887
    %v3890 = vsinq.f32.pop %v3887
    %vm3891 = vweird.f32 %v3484
    %v3892 = vadd.s32 %v3888, 3
    %v3893 = vand.u32 %v3892, 3
    %vm3894 = vcmp.lt.s32.totalorder %v3893, 2
    %vm3895 = vcmp.eq.s32.totalorder %v3893, 0
    %v3896 = vxor.u32 %v3890, 2147483648
    %v3897 = vsel %vm3895, %v3889, %v3896
    %vm3898 = vcmp.eq.s32.totalorder %v3893, 2
    %v3899 = vxor.u32 %v3889, 2147483648
    %v3900 = vsel %vm3898, %v3899, %v3890
    %v3901 = vsel %vm3894, %v3897, %v3900
    %v3902 = vsel %vm3891, nan, %v3901
    %s3903 = scalar_lea.vmem [#allocation3], 192
    %v3904 = vld [vmem:[%s3903] sm:$0xff]
    %v3905 = vld [vmem:[%s3903 + $0x8] sm:$0xff]
    %v3906 = vld [vmem:[%s3903 + $0x10] sm:$0xff]
    %v3907 = vld [vmem:[%s3903 + $0x18] sm:$0xff]
    %3908 = vset.pattern.permute.xlu0 7
    %3909 = vperm.xlu0 %3908, %v51
    %v3910 = vpop.permute.xlu0 %3909
    %3912 = vset.pattern.permute.xlu0 7
    %3913 = vperm.xlu0 %3912, %v52
    %v3914 = vpop.permute.xlu0 %3913
    %3916 = vset.pattern.permute.xlu0 7
    %3917 = vperm.xlu0 %3916, %v53
    %v3918 = vpop.permute.xlu0 %3917
    %3920 = vset.pattern.permute.xlu0 7
    %3921 = vperm.xlu0 %3920, %v54
    %v3922 = vpop.permute.xlu0 %3921
    %v3925 = vsel %vm613, %v3904, 0
    %v3928 = vsel %vm613, %v3905, 0
    %v3931 = vsel %vm613, %v3906, 0
    %v3934 = vsel %vm613, %v3907, 0
    %3936 = vmatprep.subr.mxu0 0.0
    %3937 = vmatpush1.msra.mxu0 %v3590
    %3938 = vmatprep.subr.mxu0 0.0
    %3939 = vmatpush1.msra.mxu0 %v3694
    %3940 = vmatprep.subr.mxu0 0.0
    %3941 = vmatpush1.msra.mxu0 %v3798
    %3942 = vmatprep.subr.mxu0 0.0
    %3943 = vmatpush1.msra.mxu0 %v3902
    %3944 = vmatprep.subr.mxu0 0.0
    %3945 = vmatpush1.msra.mxu0 0.0
    %3946 = vmatprep.subr.mxu0 0.0
    %3947 = vmatpush1.msra.mxu0 0.0
    %3948 = vmatprep.subr.mxu0 0.0
    %3949 = vmatpush1.msra.mxu0 0.0
    %3950 = vmatprep.subr.mxu0 0.0
    %3951 = vmatpush1.msra.mxu0 0.0
    %3952 = vmatprep.subr.mxu0 0.0
    %3953 = vmatpush1.msra.mxu0 0.0
    %3954 = vmatprep.subr.mxu0 0.0
    %3955 = vmatpush1.msra.mxu0 0.0
    %3956 = vmatprep.subr.mxu0 0.0
    %3957 = vmatpush1.msra.mxu0 0.0
    %3958 = vmatprep.subr.mxu0 0.0
    %3959 = vmatpush1.msra.mxu0 0.0
    %3960 = vmatprep.subr.mxu0 0.0
    %3961 = vmatpush1.msra.mxu0 0.0
    %3962 = vmatprep.subr.mxu0 0.0
    %3963 = vmatpush1.msra.mxu0 0.0
    %3964 = vmatprep.subr.mxu0 0.0
    %3965 = vmatpush1.msra.mxu0 0.0
    %3966 = vmatprep.subr.mxu0 0.0
    %3967 = vmatpush1.msra.mxu0 0.0
    %3968 = vmatprep.subr.mxu0 0.0
    %3969 = vmatpush1.msra.mxu0 0.0
    %3970 = vmatprep.subr.mxu0 0.0
    %3971 = vmatpush1.msra.mxu0 0.0
    %3972 = vmatprep.subr.mxu0 0.0
    %3973 = vmatpush1.msra.mxu0 0.0
    %3974 = vmatprep.subr.mxu0 0.0
    %3975 = vmatpush1.msra.mxu0 0.0
    %3976 = vmatprep.subr.mxu0 0.0
    %3977 = vmatpush1.msra.mxu0 0.0
    %3978 = vmatprep.subr.mxu0 0.0
    %3979 = vmatpush1.msra.mxu0 0.0
    %3980 = vmatprep.subr.mxu0 0.0
    %3981 = vmatpush1.msra.mxu0 0.0
    %3982 = vmatprep.subr.mxu0 0.0
    %3983 = vmatpush1.msra.mxu0 0.0
    %3984 = vmatprep.subr.mxu0 0.0
    %3985 = vmatpush1.msra.mxu0 0.0
    %3986 = vmatprep.subr.mxu0 0.0
    %3987 = vmatpush1.msra.mxu0 0.0
    %3988 = vmatprep.subr.mxu0 0.0
    %3989 = vmatpush1.msra.mxu0 0.0
    %3990 = vmatprep.subr.mxu0 0.0
    %3991 = vmatpush1.msra.mxu0 0.0
    %3992 = vmatprep.subr.mxu0 0.0
    %3993 = vmatpush1.msra.mxu0 0.0
    %3994 = vmatprep.subr.mxu0 0.0
    %3995 = vmatpush1.msra.mxu0 0.0
    %3996 = vmatprep.subr.mxu0 0.0
    %3997 = vmatpush1.msra.mxu0 0.0
    %3998 = vmatprep.subr.mxu0 0.0
    %3999 = vmatpush1.msra.mxu0 0.0
    %4000 = vmatprep.mubr.f32.mxu0 0.0
    %4001 = vmatmul.mubr.f32.gmra.mrb[0].mxu0 %v3925
    %v4002 = vpop.f32.mrb[0].mxu0
    %v4003 = vadd.f32 %v3910, %v4002
    %v4004 = vpop.f32.mrb[0].mxu0
    %4005 = vmatprep.mubr.f32.mxu0 0.0
    %4006 = vmatmul.mubr.f32.gmra.mrb[0].mxu0 %v3928
    %v4007 = vpop.f32.mrb[0].mxu0
    %v4008 = vadd.f32 %v3914, %v4007
    %v4009 = vpop.f32.mrb[0].mxu0
    %4010 = vmatprep.mubr.f32.mxu0 0.0
    %4011 = vmatmul.mubr.f32.gmra.mrb[0].mxu0 %v3931
    %v4012 = vpop.f32.mrb[0].mxu0
    %v4013 = vadd.f32 %v3918, %v4012
    %v4014 = vpop.f32.mrb[0].mxu0
    %4015 = vmatprep.mubr.f32.mxu0 0.0
    %4016 = vmatmul.mubr.f32.gmra.mrb[0].mxu0 %v3934
    %v4017 = vpop.f32.mrb[0].mxu0
    %v4018 = vadd.f32 %v3922, %v4017
    %v4019 = vpop.f32.mrb[0].mxu0
    %4020 = vdwg.mxu0
    %v4021 = vand.u32 2147483647, %v4003
    %vm4022 = vcmp.le.f32.partialorder %v4021, 0.7853982
    %vm4023 = vcmp.lt.s32.totalorder %v4003, 0
    %v4024 = vand.u32 %v4003, 2139095040
    %v4025 = vshrl.u32 %v4024, 23
    %v4026 = vsub.s32 %v4025, 127
    %v4027 = vand.u32 2147483647, %v4003
    %v4028 = vand.u32 %v4027, 8388607
    %v4029 = vor.u32 %v4028, 8388608
    %v4030 = vsub.s32 0, %v4029
    %v4031 = vadd.s32 %v4026, 1
    %vm4032 = vcmp.gt.s32.totalorder %v4031, 0
    %v4033 = vsel %vm4032, %v4031, 0
    %v4034 = vshrl.u32 %v4033, 5
    %v4035 = vand.u32 %v4033, 31
    %v4036 = vsub.s32 32, %v4035
    %v4037 = vshrl.u32 683565275, %v4036
    %v4038 = vshll.u32 683565275, %v4035
    %v4039 = vshrl.u32 2475754826, %v4036
    %v4040 = vor.u32 %v4038, %v4039
    %v4041 = vshll.u32 2475754826, %v4035
    %v4042 = vshrl.u32 2131351028, %v4036
    %v4043 = vor.u32 %v4041, %v4042
    %v4044 = vshll.u32 2131351028, %v4035
    %v4045 = vshrl.u32 2102212464, %v4036
    %v4046 = vor.u32 %v4044, %v4045
    %v4047 = vshll.u32 2102212464, %v4035
    %v4048 = vshrl.u32 920167782, %v4036
    %v4049 = vor.u32 %v4047, %v4048
    %v4050 = vshll.u32 920167782, %v4035
    %v4051 = vshrl.u32 1326507024, %v4036
    %v4052 = vor.u32 %v4050, %v4051
    %vm4053 = vcmp.lt.s32.totalorder %v4034, 1
    %vm4054 = vcmp.lt.s32.totalorder %v4034, 2
    %vm4055 = vcmp.lt.s32.totalorder %v4034, 3
    %vm4056 = vcmp.lt.s32.totalorder %v4034, 4
    %v4057 = vsel %vm4053, %v4037, %v4040
    %v4058 = vsel %vm4056, %v4046, 2102212464
    %v4059 = vsel %vm4055, %v4043, %v4058
    %v4060 = vsel %vm4054, %v4057, %v4059
    %v4061 = vsel %vm4053, %v4040, %v4043
    %v4062 = vsel %vm4056, %v4049, 920167782
    %v4063 = vsel %vm4055, %v4046, %v4062
    %v4064 = vsel %vm4054, %v4061, %v4063
    %v4065 = vsel %vm4053, %v4043, %v4046
    %v4066 = vsel %vm4056, %v4052, 1326507024
    %v4067 = vsel %vm4055, %v4049, %v4066
    %v4068 = vsel %vm4054, %v4065, %v4067
    %v4069 = vshll.u32 %v4029, 8
    %v4070 = vmul.u32.u64.compose %v4069, %v4068
    %v4071 = vextract.low.u32 %v4070
    %v4072 = vextract.high.u32 %v4070
    %v4073 = vmul.u32.u64.compose %v4069, %v4064
    %v4074 = vextract.low.u32 %v4073
    %v4075 = vextract.high.u32 %v4073
    %v4076 = vmul.u32 %v4069, %v4060
    %v4077 = vadd.s32 %v4072, %v4074
    %vm4078 = vc.u32 %v4072, %v4074
    %v4079 = vadd.s32 %v4075, 1
    %v4080 = vsel %vm4078, %v4079, %v4075
    %v4081 = vadd.s32 %v4076, %v4080
    %v4082 = vadd.s32 %v4081, 536870912
    %v4083 = vshrl.u32 %v4082, 30
    %v4084 = vshll.u32 %v4083, 30
    %v4085 = vsub.s32 %v4081, %v4084
    %vm4086 = vcmp.lt.s32.totalorder %v4085, 0
    %v4087 = vsub.s32 0, %v4085
    %v4088 = vsel %vm4086, %v4087, %v4085
    %v4089 = vclz %v4088
    %v4090 = vsub.s32 %v4089, 2
    %vm4091 = vcmp.gt.s32.totalorder 0, %v4090
    %v4092 = vsel %vm4091, 0, %v4090
    %v4093 = vsub.s32 32, %v4092
    %v4094 = vshll.u32 %v4085, %v4092
    %v4095 = vshrl.u32 %v4077, %v4093
    %v4096 = vor.u32 %v4094, %v4095
    %v4097 = vsub.s32 4294967266, %v4092
    %v4098 = vadd.s32 %v4097, 127
    %v4099 = vshll.u32 %v4098, 23
    %v4100 = vor.u32 4788187, %v4099
    %v4101 = vand.u32 2147483647, %v4100
    %v4103 = vcvt.s32.f32 %v4096
    %v4104 = vmul.f32 %v4103, %v4101
    %v4105 = vxor.u32 %v4104, 2147483648
    %v4106 = vsel %vm4023, %v4105, %v4104
    %v4107 = vsub.s32 4, %v4083
    %v4108 = vsel %vm4023, %v4107, %v4083
    %v4109 = vsel %vm4022, %v4003, %v4106
    %v4110 = vsel %vm4022, 0, %v4108
    %v4111 = vcosq.f32.pop %v4109
    %v4112 = vsinq.f32.pop %v4109
    %vm4113 = vweird.f32 %v4003
    %v4114 = vadd.s32 %v4110, 3
    %v4115 = vand.u32 %v4114, 3
    %vm4116 = vcmp.lt.s32.totalorder %v4115, 2
    %vm4117 = vcmp.eq.s32.totalorder %v4115, 0
    %v4118 = vxor.u32 %v4112, 2147483648
    %v4119 = vsel %vm4117, %v4111, %v4118
    %vm4120 = vcmp.eq.s32.totalorder %v4115, 2
    %v4121 = vxor.u32 %v4111, 2147483648
    %v4122 = vsel %vm4120, %v4121, %v4112
    %v4123 = vsel %vm4116, %v4119, %v4122
    %v4124 = vsel %vm4113, nan, %v4123
    %v4125 = vand.u32 2147483647, %v4008
    %vm4126 = vcmp.le.f32.partialorder %v4125, 0.7853982
    %vm4127 = vcmp.lt.s32.totalorder %v4008, 0
    %v4128 = vand.u32 %v4008, 2139095040
    %v4129 = vshrl.u32 %v4128, 23
    %v4130 = vsub.s32 %v4129, 127
    %v4131 = vand.u32 2147483647, %v4008
    %v4132 = vand.u32 %v4131, 8388607
    %v4133 = vor.u32 %v4132, 8388608
    %v4134 = vsub.s32 0, %v4133
    %v4135 = vadd.s32 %v4130, 1
    %vm4136 = vcmp.gt.s32.totalorder %v4135, 0
    %v4137 = vsel %vm4136, %v4135, 0
    %v4138 = vshrl.u32 %v4137, 5
    %v4139 = vand.u32 %v4137, 31
    %v4140 = vsub.s32 32, %v4139
    %v4141 = vshrl.u32 683565275, %v4140
    %v4142 = vshll.u32 683565275, %v4139
    %v4143 = vshrl.u32 2475754826, %v4140
    %v4144 = vor.u32 %v4142, %v4143
    %v4145 = vshll.u32 2475754826, %v4139
    %v4146 = vshrl.u32 2131351028, %v4140
    %v4147 = vor.u32 %v4145, %v4146
    %v4148 = vshll.u32 2131351028, %v4139
    %v4149 = vshrl.u32 2102212464, %v4140
    %v4150 = vor.u32 %v4148, %v4149
    %v4151 = vshll.u32 2102212464, %v4139
    %v4152 = vshrl.u32 920167782, %v4140
    %v4153 = vor.u32 %v4151, %v4152
    %v4154 = vshll.u32 920167782, %v4139
    %v4155 = vshrl.u32 1326507024, %v4140
    %v4156 = vor.u32 %v4154, %v4155
    %vm4157 = vcmp.lt.s32.totalorder %v4138, 1
    %vm4158 = vcmp.lt.s32.totalorder %v4138, 2
    %vm4159 = vcmp.lt.s32.totalorder %v4138, 3
    %vm4160 = vcmp.lt.s32.totalorder %v4138, 4
    %v4161 = vsel %vm4157, %v4141, %v4144
    %v4162 = vsel %vm4160, %v4150, 2102212464
    %v4163 = vsel %vm4159, %v4147, %v4162
    %v4164 = vsel %vm4158, %v4161, %v4163
    %v4165 = vsel %vm4157, %v4144, %v4147
    %v4166 = vsel %vm4160, %v4153, 920167782
    %v4167 = vsel %vm4159, %v4150, %v4166
    %v4168 = vsel %vm4158, %v4165, %v4167
    %v4169 = vsel %vm4157, %v4147, %v4150
    %v4170 = vsel %vm4160, %v4156, 1326507024
    %v4171 = vsel %vm4159, %v4153, %v4170
    %v4172 = vsel %vm4158, %v4169, %v4171
    %v4173 = vshll.u32 %v4133, 8
    %v4174 = vmul.u32.u64.compose %v4173, %v4172
    %v4175 = vextract.low.u32 %v4174
    %v4176 = vextract.high.u32 %v4174
    %v4177 = vmul.u32.u64.compose %v4173, %v4168
    %v4178 = vextract.low.u32 %v4177
    %v4179 = vextract.high.u32 %v4177
    %v4180 = vmul.u32 %v4173, %v4164
    %v4181 = vadd.s32 %v4176, %v4178
    %vm4182 = vc.u32 %v4176, %v4178
    %v4183 = vadd.s32 %v4179, 1
    %v4184 = vsel %vm4182, %v4183, %v4179
    %v4185 = vadd.s32 %v4180, %v4184
    %v4186 = vadd.s32 %v4185, 536870912
    %v4187 = vshrl.u32 %v4186, 30
    %v4188 = vshll.u32 %v4187, 30
    %v4189 = vsub.s32 %v4185, %v4188
    %vm4190 = vcmp.lt.s32.totalorder %v4189, 0
    %v4191 = vsub.s32 0, %v4189
    %v4192 = vsel %vm4190, %v4191, %v4189
    %v4193 = vclz %v4192
    %v4194 = vsub.s32 %v4193, 2
    %vm4195 = vcmp.gt.s32.totalorder 0, %v4194
    %v4196 = vsel %vm4195, 0, %v4194
    %v4197 = vsub.s32 32, %v4196
    %v4198 = vshll.u32 %v4189, %v4196
    %v4199 = vshrl.u32 %v4181, %v4197
    %v4200 = vor.u32 %v4198, %v4199
    %v4201 = vsub.s32 4294967266, %v4196
    %v4202 = vadd.s32 %v4201, 127
    %v4203 = vshll.u32 %v4202, 23
    %v4204 = vor.u32 4788187, %v4203
    %v4205 = vand.u32 2147483647, %v4204
    %v4207 = vcvt.s32.f32 %v4200
    %v4208 = vmul.f32 %v4207, %v4205
    %v4209 = vxor.u32 %v4208, 2147483648
    %v4210 = vsel %vm4127, %v4209, %v4208
    %v4211 = vsub.s32 4, %v4187
    %v4212 = vsel %vm4127, %v4211, %v4187
    %v4213 = vsel %vm4126, %v4008, %v4210
    %v4214 = vsel %vm4126, 0, %v4212
    %v4215 = vcosq.f32.pop %v4213
    %v4216 = vsinq.f32.pop %v4213
    %vm4217 = vweird.f32 %v4008
    %v4218 = vadd.s32 %v4214, 3
    %v4219 = vand.u32 %v4218, 3
    %vm4220 = vcmp.lt.s32.totalorder %v4219, 2
    %vm4221 = vcmp.eq.s32.totalorder %v4219, 0
    %v4222 = vxor.u32 %v4216, 2147483648
    %v4223 = vsel %vm4221, %v4215, %v4222
    %vm4224 = vcmp.eq.s32.totalorder %v4219, 2
    %v4225 = vxor.u32 %v4215, 2147483648
    %v4226 = vsel %vm4224, %v4225, %v4216
    %v4227 = vsel %vm4220, %v4223, %v4226
    %v4228 = vsel %vm4217, nan, %v4227
    %v4229 = vand.u32 2147483647, %v4013
    %vm4230 = vcmp.le.f32.partialorder %v4229, 0.7853982
    %vm4231 = vcmp.lt.s32.totalorder %v4013, 0
    %v4232 = vand.u32 %v4013, 2139095040
    %v4233 = vshrl.u32 %v4232, 23
    %v4234 = vsub.s32 %v4233, 127
    %v4235 = vand.u32 2147483647, %v4013
    %v4236 = vand.u32 %v4235, 8388607
    %v4237 = vor.u32 %v4236, 8388608
    %v4238 = vsub.s32 0, %v4237
    %v4239 = vadd.s32 %v4234, 1
    %vm4240 = vcmp.gt.s32.totalorder %v4239, 0
    %v4241 = vsel %vm4240, %v4239, 0
    %v4242 = vshrl.u32 %v4241, 5
    %v4243 = vand.u32 %v4241, 31
    %v4244 = vsub.s32 32, %v4243
    %v4245 = vshrl.u32 683565275, %v4244
    %v4246 = vshll.u32 683565275, %v4243
    %v4247 = vshrl.u32 2475754826, %v4244
    %v4248 = vor.u32 %v4246, %v4247
    %v4249 = vshll.u32 2475754826, %v4243
    %v4250 = vshrl.u32 2131351028, %v4244
    %v4251 = vor.u32 %v4249, %v4250
    %v4252 = vshll.u32 2131351028, %v4243
    %v4253 = vshrl.u32 2102212464, %v4244
    %v4254 = vor.u32 %v4252, %v4253
    %v4255 = vshll.u32 2102212464, %v4243
    %v4256 = vshrl.u32 920167782, %v4244
    %v4257 = vor.u32 %v4255, %v4256
    %v4258 = vshll.u32 920167782, %v4243
    %v4259 = vshrl.u32 1326507024, %v4244
    %v4260 = vor.u32 %v4258, %v4259
    %vm4261 = vcmp.lt.s32.totalorder %v4242, 1
    %vm4262 = vcmp.lt.s32.totalorder %v4242, 2
    %vm4263 = vcmp.lt.s32.totalorder %v4242, 3
    %vm4264 = vcmp.lt.s32.totalorder %v4242, 4
    %v4265 = vsel %vm4261, %v4245, %v4248
    %v4266 = vsel %vm4264, %v4254, 2102212464
    %v4267 = vsel %vm4263, %v4251, %v4266
    %v4268 = vsel %vm4262, %v4265, %v4267
    %v4269 = vsel %vm4261, %v4248, %v4251
    %v4270 = vsel %vm4264, %v4257, 920167782
    %v4271 = vsel %vm4263, %v4254, %v4270
    %v4272 = vsel %vm4262, %v4269, %v4271
    %v4273 = vsel %vm4261, %v4251, %v4254
    %v4274 = vsel %vm4264, %v4260, 1326507024
    %v4275 = vsel %vm4263, %v4257, %v4274
    %v4276 = vsel %vm4262, %v4273, %v4275
    %v4277 = vshll.u32 %v4237, 8
    %v4278 = vmul.u32.u64.compose %v4277, %v4276
    %v4279 = vextract.low.u32 %v4278
    %v4280 = vextract.high.u32 %v4278
    %v4281 = vmul.u32.u64.compose %v4277, %v4272
    %v4282 = vextract.low.u32 %v4281
    %v4283 = vextract.high.u32 %v4281
    %v4284 = vmul.u32 %v4277, %v4268
    %v4285 = vadd.s32 %v4280, %v4282
    %vm4286 = vc.u32 %v4280, %v4282
    %v4287 = vadd.s32 %v4283, 1
    %v4288 = vsel %vm4286, %v4287, %v4283
    %v4289 = vadd.s32 %v4284, %v4288
    %v4290 = vadd.s32 %v4289, 536870912
    %v4291 = vshrl.u32 %v4290, 30
    %v4292 = vshll.u32 %v4291, 30
    %v4293 = vsub.s32 %v4289, %v4292
    %vm4294 = vcmp.lt.s32.totalorder %v4293, 0
    %v4295 = vsub.s32 0, %v4293
    %v4296 = vsel %vm4294, %v4295, %v4293
    %v4297 = vclz %v4296
    %v4298 = vsub.s32 %v4297, 2
    %vm4299 = vcmp.gt.s32.totalorder 0, %v4298
    %v4300 = vsel %vm4299, 0, %v4298
    %v4301 = vsub.s32 32, %v4300
    %v4302 = vshll.u32 %v4293, %v4300
    %v4303 = vshrl.u32 %v4285, %v4301
    %v4304 = vor.u32 %v4302, %v4303
    %v4305 = vsub.s32 4294967266, %v4300
    %v4306 = vadd.s32 %v4305, 127
    %v4307 = vshll.u32 %v4306, 23
    %v4308 = vor.u32 4788187, %v4307
    %v4309 = vand.u32 2147483647, %v4308
    %v4311 = vcvt.s32.f32 %v4304
    %v4312 = vmul.f32 %v4311, %v4309
    %v4313 = vxor.u32 %v4312, 2147483648
    %v4314 = vsel %vm4231, %v4313, %v4312
    %v4315 = vsub.s32 4, %v4291
    %v4316 = vsel %vm4231, %v4315, %v4291
    %v4317 = vsel %vm4230, %v4013, %v4314
    %v4318 = vsel %vm4230, 0, %v4316
    %v4319 = vcosq.f32.pop %v4317
    %v4320 = vsinq.f32.pop %v4317
    %vm4321 = vweird.f32 %v4013
    %v4322 = vadd.s32 %v4318, 3
    %v4323 = vand.u32 %v4322, 3
    %vm4324 = vcmp.lt.s32.totalorder %v4323, 2
    %vm4325 = vcmp.eq.s32.totalorder %v4323, 0
    %v4326 = vxor.u32 %v4320, 2147483648
    %v4327 = vsel %vm4325, %v4319, %v4326
    %vm4328 = vcmp.eq.s32.totalorder %v4323, 2
    %v4329 = vxor.u32 %v4319, 2147483648
    %v4330 = vsel %vm4328, %v4329, %v4320
    %v4331 = vsel %vm4324, %v4327, %v4330
    %v4332 = vsel %vm4321, nan, %v4331
    %v4333 = vand.u32 2147483647, %v4018
    %vm4334 = vcmp.le.f32.partialorder %v4333, 0.7853982
    %vm4335 = vcmp.lt.s32.totalorder %v4018, 0
    %v4336 = vand.u32 %v4018, 2139095040
    %v4337 = vshrl.u32 %v4336, 23
    %v4338 = vsub.s32 %v4337, 127
    %v4339 = vand.u32 2147483647, %v4018
    %v4340 = vand.u32 %v4339, 8388607
    %v4341 = vor.u32 %v4340, 8388608
    %v4342 = vsub.s32 0, %v4341
    %v4343 = vadd.s32 %v4338, 1
    %vm4344 = vcmp.gt.s32.totalorder %v4343, 0
    %v4345 = vsel %vm4344, %v4343, 0
    %v4346 = vshrl.u32 %v4345, 5
    %v4347 = vand.u32 %v4345, 31
    %v4348 = vsub.s32 32, %v4347
    %v4349 = vshrl.u32 683565275, %v4348
    %v4350 = vshll.u32 683565275, %v4347
    %v4351 = vshrl.u32 2475754826, %v4348
    %v4352 = vor.u32 %v4350, %v4351
    %v4353 = vshll.u32 2475754826, %v4347
    %v4354 = vshrl.u32 2131351028, %v4348
    %v4355 = vor.u32 %v4353, %v4354
    %v4356 = vshll.u32 2131351028, %v4347
    %v4357 = vshrl.u32 2102212464, %v4348
    %v4358 = vor.u32 %v4356, %v4357
    %v4359 = vshll.u32 2102212464, %v4347
    %v4360 = vshrl.u32 920167782, %v4348
    %v4361 = vor.u32 %v4359, %v4360
    %v4362 = vshll.u32 920167782, %v4347
    %v4363 = vshrl.u32 1326507024, %v4348
    %v4364 = vor.u32 %v4362, %v4363
    %vm4365 = vcmp.lt.s32.totalorder %v4346, 1
    %vm4366 = vcmp.lt.s32.totalorder %v4346, 2
    %vm4367 = vcmp.lt.s32.totalorder %v4346, 3
    %vm4368 = vcmp.lt.s32.totalorder %v4346, 4
    %v4369 = vsel %vm4365, %v4349, %v4352
    %v4370 = vsel %vm4368, %v4358, 2102212464
    %v4371 = vsel %vm4367, %v4355, %v4370
    %v4372 = vsel %vm4366, %v4369, %v4371
    %v4373 = vsel %vm4365, %v4352, %v4355
    %v4374 = vsel %vm4368, %v4361, 920167782
    %v4375 = vsel %vm4367, %v4358, %v4374
    %v4376 = vsel %vm4366, %v4373, %v4375
    %v4377 = vsel %vm4365, %v4355, %v4358
    %v4378 = vsel %vm4368, %v4364, 1326507024
    %v4379 = vsel %vm4367, %v4361, %v4378
    %v4380 = vsel %vm4366, %v4377, %v4379
    %v4381 = vshll.u32 %v4341, 8
    %v4382 = vmul.u32.u64.compose %v4381, %v4380
    %v4383 = vextract.low.u32 %v4382
    %v4384 = vextract.high.u32 %v4382
    %v4385 = vmul.u32.u64.compose %v4381, %v4376
    %v4386 = vextract.low.u32 %v4385
    %v4387 = vextract.high.u32 %v4385
    %v4388 = vmul.u32 %v4381, %v4372
    %v4389 = vadd.s32 %v4384, %v4386
    %vm4390 = vc.u32 %v4384, %v4386
    %v4391 = vadd.s32 %v4387, 1
    %v4392 = vsel %vm4390, %v4391, %v4387
    %v4393 = vadd.s32 %v4388, %v4392
    %v4394 = vadd.s32 %v4393, 536870912
    %v4395 = vshrl.u32 %v4394, 30
    %v4396 = vshll.u32 %v4395, 30
    %v4397 = vsub.s32 %v4393, %v4396
    %vm4398 = vcmp.lt.s32.totalorder %v4397, 0
    %v4399 = vsub.s32 0, %v4397
    %v4400 = vsel %vm4398, %v4399, %v4397
    %v4401 = vclz %v4400
    %v4402 = vsub.s32 %v4401, 2
    %vm4403 = vcmp.gt.s32.totalorder 0, %v4402
    %v4404 = vsel %vm4403, 0, %v4402
    %v4405 = vsub.s32 32, %v4404
    %v4406 = vshll.u32 %v4397, %v4404
    %v4407 = vshrl.u32 %v4389, %v4405
    %v4408 = vor.u32 %v4406, %v4407
    %v4409 = vsub.s32 4294967266, %v4404
    %v4410 = vadd.s32 %v4409, 127
    %v4411 = vshll.u32 %v4410, 23
    %v4412 = vor.u32 4788187, %v4411
    %v4413 = vand.u32 2147483647, %v4412
    %v4415 = vcvt.s32.f32 %v4408
    %v4416 = vmul.f32 %v4415, %v4413
    %v4417 = vxor.u32 %v4416, 2147483648
    %v4418 = vsel %vm4335, %v4417, %v4416
    %v4419 = vsub.s32 4, %v4395
    %v4420 = vsel %vm4335, %v4419, %v4395
    %v4421 = vsel %vm4334, %v4018, %v4418
    %v4422 = vsel %vm4334, 0, %v4420
    %v4423 = vcosq.f32.pop %v4421
    %v4424 = vsinq.f32.pop %v4421
    %vm4425 = vweird.f32 %v4018
    %v4426 = vadd.s32 %v4422, 3
    %v4427 = vand.u32 %v4426, 3
    %vm4428 = vcmp.lt.s32.totalorder %v4427, 2
    %vm4429 = vcmp.eq.s32.totalorder %v4427, 0
    %v4430 = vxor.u32 %v4424, 2147483648
    %v4431 = vsel %vm4429, %v4423, %v4430
    %vm4432 = vcmp.eq.s32.totalorder %v4427, 2
    %v4433 = vxor.u32 %v4423, 2147483648
    %v4434 = vsel %vm4432, %v4433, %v4424
    %v4435 = vsel %vm4428, %v4431, %v4434
    %v4436 = vsel %vm4425, nan, %v4435
    %s4437 = scalar_lea.vmem [#allocation3], 224
    %v4438 = vld [vmem:[%s4437] sm:$0xff]
    %v4439 = vld [vmem:[%s4437 + $0x8] sm:$0xff]
    %v4440 = vld [vmem:[%s4437 + $0x10] sm:$0xff]
    %v4441 = vld [vmem:[%s4437 + $0x18] sm:$0xff]
    %4442 = vset.pattern.permute.xlu0 8
    %4443 = vperm.xlu0 %4442, %v51
    %v4444 = vpop.permute.xlu0 %4443
    %4446 = vset.pattern.permute.xlu0 8
    %4447 = vperm.xlu0 %4446, %v52
    %v4448 = vpop.permute.xlu0 %4447
    %4450 = vset.pattern.permute.xlu0 8
    %4451 = vperm.xlu0 %4450, %v53
    %v4452 = vpop.permute.xlu0 %4451
    %4454 = vset.pattern.permute.xlu0 8
    %4455 = vperm.xlu0 %4454, %v54
    %v4456 = vpop.permute.xlu0 %4455
    %v4459 = vsel %vm613, %v4438, 0
    %v4462 = vsel %vm613, %v4439, 0
    %v4465 = vsel %vm613, %v4440, 0
    %v4468 = vsel %vm613, %v4441, 0
    %4470 = vmatprep.subr.mxu0 0.0
    %4471 = vmatpush1.msra.mxu0 %v4124
    %4472 = vmatprep.subr.mxu0 0.0
    %4473 = vmatpush1.msra.mxu0 %v4228
    %4474 = vmatprep.subr.mxu0 0.0
    %4475 = vmatpush1.msra.mxu0 %v4332
    %4476 = vmatprep.subr.mxu0 0.0
    %4477 = vmatpush1.msra.mxu0 %v4436
    %4478 = vmatprep.subr.mxu0 0.0
    %4479 = vmatpush1.msra.mxu0 0.0
    %4480 = vmatprep.subr.mxu0 0.0
    %4481 = vmatpush1.msra.mxu0 0.0
    %4482 = vmatprep.subr.mxu0 0.0
    %4483 = vmatpush1.msra.mxu0 0.0
    %4484 = vmatprep.subr.mxu0 0.0
    %4485 = vmatpush1.msra.mxu0 0.0
    %4486 = vmatprep.subr.mxu0 0.0
    %4487 = vmatpush1.msra.mxu0 0.0
    %4488 = vmatprep.subr.mxu0 0.0
    %4489 = vmatpush1.msra.mxu0 0.0
    %4490 = vmatprep.subr.mxu0 0.0
    %4491 = vmatpush1.msra.mxu0 0.0
    %4492 = vmatprep.subr.mxu0 0.0
    %4493 = vmatpush1.msra.mxu0 0.0
    %4494 = vmatprep.subr.mxu0 0.0
    %4495 = vmatpush1.msra.mxu0 0.0
    %4496 = vmatprep.subr.mxu0 0.0
    %4497 = vmatpush1.msra.mxu0 0.0
    %4498 = vmatprep.subr.mxu0 0.0
    %4499 = vmatpush1.msra.mxu0 0.0
    %4500 = vmatprep.subr.mxu0 0.0
    %4501 = vmatpush1.msra.mxu0 0.0
    %4502 = vmatprep.subr.mxu0 0.0
    %4503 = vmatpush1.msra.mxu0 0.0
    %4504 = vmatprep.subr.mxu0 0.0
    %4505 = vmatpush1.msra.mxu0 0.0
    %4506 = vmatprep.subr.mxu0 0.0
    %4507 = vmatpush1.msra.mxu0 0.0
    %4508 = vmatprep.subr.mxu0 0.0
    %4509 = vmatpush1.msra.mxu0 0.0
    %4510 = vmatprep.subr.mxu0 0.0
    %4511 = vmatpush1.msra.mxu0 0.0
    %4512 = vmatprep.subr.mxu0 0.0
    %4513 = vmatpush1.msra.mxu0 0.0
    %4514 = vmatprep.subr.mxu0 0.0
    %4515 = vmatpush1.msra.mxu0 0.0
    %4516 = vmatprep.subr.mxu0 0.0
    %4517 = vmatpush1.msra.mxu0 0.0
    %4518 = vmatprep.subr.mxu0 0.0
    %4519 = vmatpush1.msra.mxu0 0.0
    %4520 = vmatprep.subr.mxu0 0.0
    %4521 = vmatpush1.msra.mxu0 0.0
    %4522 = vmatprep.subr.mxu0 0.0
    %4523 = vmatpush1.msra.mxu0 0.0
    %4524 = vmatprep.subr.mxu0 0.0
    %4525 = vmatpush1.msra.mxu0 0.0
    %4526 = vmatprep.subr.mxu0 0.0
    %4527 = vmatpush1.msra.mxu0 0.0
    %4528 = vmatprep.subr.mxu0 0.0
    %4529 = vmatpush1.msra.mxu0 0.0
    %4530 = vmatprep.subr.mxu0 0.0
    %4531 = vmatpush1.msra.mxu0 0.0
    %4532 = vmatprep.subr.mxu0 0.0
    %4533 = vmatpush1.msra.mxu0 0.0
    %4534 = vmatprep.mubr.f32.mxu0 0.0
    %4535 = vmatmul.mubr.f32.gmra.mrb[0].mxu0 %v4459
    %v4536 = vpop.f32.mrb[0].mxu0
    %v4537 = vadd.f32 %v4444, %v4536
    %v4538 = vpop.f32.mrb[0].mxu0
    %4539 = vmatprep.mubr.f32.mxu0 0.0
    %4540 = vmatmul.mubr.f32.gmra.mrb[0].mxu0 %v4462
    %v4541 = vpop.f32.mrb[0].mxu0
    %v4542 = vadd.f32 %v4448, %v4541
    %v4543 = vpop.f32.mrb[0].mxu0
    %4544 = vmatprep.mubr.f32.mxu0 0.0
    %4545 = vmatmul.mubr.f32.gmra.mrb[0].mxu0 %v4465
    %v4546 = vpop.f32.mrb[0].mxu0
    %v4547 = vadd.f32 %v4452, %v4546
    %v4548 = vpop.f32.mrb[0].mxu0
    %4549 = vmatprep.mubr.f32.mxu0 0.0
    %4550 = vmatmul.mubr.f32.gmra.mrb[0].mxu0 %v4468
    %v4551 = vpop.f32.mrb[0].mxu0
    %v4552 = vadd.f32 %v4456, %v4551
    %v4553 = vpop.f32.mrb[0].mxu0
    %4554 = vdwg.mxu0
    %v4555 = vld [vmem:[%s3] sm:$0xff]
    %v4556 = vld [vmem:[%s3 + $0x8] sm:$0xff]
    %v4557 = vld [vmem:[%s6] sm:$0xff]
    %v4558 = vld [vmem:[%s6 + $0x8] sm:$0xff]
    %4560 = vset.pattern.permute.xlu0 0
    %4561 = vperm.xlu0 %4560, %v4557
    %v4562 = vpop.permute.xlu0 %4561
    %4565 = vset.pattern.permute.xlu0 0
    %4566 = vperm.xlu0 %4565, %v4558
    %v4567 = vpop.permute.xlu0 %4566
    %v4570 = vsel %vm613, %v4555, 0
    %v4573 = vsel %vm613, %v4556, 0
    %4575 = vmatprep.subr.mxu0 0.0
    %4576 = vmatpush1.msra.mxu0 %v4537
    %4577 = vmatprep.subr.mxu0 0.0
    %4578 = vmatpush1.msra.mxu0 %v4542
    %4579 = vmatprep.subr.mxu0 0.0
    %4580 = vmatpush1.msra.mxu0 %v4547
    %4581 = vmatprep.subr.mxu0 0.0
    %4582 = vmatpush1.msra.mxu0 %v4552
    %4583 = vmatprep.subr.mxu0 0.0
    %4584 = vmatpush1.msra.mxu0 0.0
    %4585 = vmatprep.subr.mxu0 0.0
    %4586 = vmatpush1.msra.mxu0 0.0
    %4587 = vmatprep.subr.mxu0 0.0
    %4588 = vmatpush1.msra.mxu0 0.0
    %4589 = vmatprep.subr.mxu0 0.0
    %4590 = vmatpush1.msra.mxu0 0.0
    %4591 = vmatprep.subr.mxu0 0.0
    %4592 = vmatpush1.msra.mxu0 0.0
    %4593 = vmatprep.subr.mxu0 0.0
    %4594 = vmatpush1.msra.mxu0 0.0
    %4595 = vmatprep.subr.mxu0 0.0
    %4596 = vmatpush1.msra.mxu0 0.0
    %4597 = vmatprep.subr.mxu0 0.0
    %4598 = vmatpush1.msra.mxu0 0.0
    %4599 = vmatprep.subr.mxu0 0.0
    %4600 = vmatpush1.msra.mxu0 0.0
    %4601 = vmatprep.subr.mxu0 0.0
    %4602 = vmatpush1.msra.mxu0 0.0
    %4603 = vmatprep.subr.mxu0 0.0
    %4604 = vmatpush1.msra.mxu0 0.0
    %4605 = vmatprep.subr.mxu0 0.0
    %4606 = vmatpush1.msra.mxu0 0.0
    %4607 = vmatprep.subr.mxu0 0.0
    %4608 = vmatpush1.msra.mxu0 0.0
    %4609 = vmatprep.subr.mxu0 0.0
    %4610 = vmatpush1.msra.mxu0 0.0
    %4611 = vmatprep.subr.mxu0 0.0
    %4612 = vmatpush1.msra.mxu0 0.0
    %4613 = vmatprep.subr.mxu0 0.0
    %4614 = vmatpush1.msra.mxu0 0.0
    %4615 = vmatprep.subr.mxu0 0.0
    %4616 = vmatpush1.msra.mxu0 0.0
    %4617 = vmatprep.subr.mxu0 0.0
    %4618 = vmatpush1.msra.mxu0 0.0
    %4619 = vmatprep.subr.mxu0 0.0
    %4620 = vmatpush1.msra.mxu0 0.0
    %4621 = vmatprep.subr.mxu0 0.0
    %4622 = vmatpush1.msra.mxu0 0.0
    %4623 = vmatprep.subr.mxu0 0.0
    %4624 = vmatpush1.msra.mxu0 0.0
    %4625 = vmatprep.subr.mxu0 0.0
    %4626 = vmatpush1.msra.mxu0 0.0
    %4627 = vmatprep.subr.mxu0 0.0
    %4628 = vmatpush1.msra.mxu0 0.0
    %4629 = vmatprep.subr.mxu0 0.0
    %4630 = vmatpush1.msra.mxu0 0.0
    %4631 = vmatprep.subr.mxu0 0.0
    %4632 = vmatpush1.msra.mxu0 0.0
    %4633 = vmatprep.subr.mxu0 0.0
    %4634 = vmatpush1.msra.mxu0 0.0
    %4635 = vmatprep.subr.mxu0 0.0
    %4636 = vmatpush1.msra.mxu0 0.0
    %4637 = vmatprep.subr.mxu0 0.0
    %4638 = vmatpush1.msra.mxu0 0.0
    %4639 = vmatprep.mubr.f32.mxu0 0.0
    %4640 = vmatmul.mubr.f32.gmra.mrb[0].mxu0 %v4570
    %v4641 = vpop.f32.mrb[0].mxu0
    %v4642 = vadd.f32 %v4562, %v4641
    %v4643 = vpop.f32.mrb[0].mxu0
    %4644 = vmatprep.mubr.f32.mxu0 0.0
    %4645 = vmatmul.mubr.f32.gmra.mrb[0].mxu0 %v4573
    %v4646 = vpop.f32.mrb[0].mxu0
    %v4647 = vadd.f32 %v4567, %v4646
    %v4648 = vpop.f32.mrb[0].mxu0
    %4649 = vdwg.mxu0
    %v4650 = vand.u32 2147483647, %v4642
    %vm4651 = vcmp.le.f32.partialorder %v4650, 0.7853982
    %vm4652 = vcmp.lt.s32.totalorder %v4642, 0
    %v4653 = vand.u32 %v4642, 2139095040
    %v4654 = vshrl.u32 %v4653, 23
    %v4655 = vsub.s32 %v4654, 127
    %v4656 = vand.u32 2147483647, %v4642
    %v4657 = vand.u32 %v4656, 8388607
    %v4658 = vor.u32 %v4657, 8388608
    %v4659 = vsub.s32 0, %v4658
    %v4660 = vadd.s32 %v4655, 1
    %vm4661 = vcmp.gt.s32.totalorder %v4660, 0
    %v4662 = vsel %vm4661, %v4660, 0
    %v4663 = vshrl.u32 %v4662, 5
    %v4664 = vand.u32 %v4662, 31
    %v4665 = vsub.s32 32, %v4664
    %v4666 = vshrl.u32 683565275, %v4665
    %v4667 = vshll.u32 683565275, %v4664
    %v4668 = vshrl.u32 2475754826, %v4665
    %v4669 = vor.u32 %v4667, %v4668
    %v4670 = vshll.u32 2475754826, %v4664
    %v4671 = vshrl.u32 2131351028, %v4665
    %v4672 = vor.u32 %v4670, %v4671
    %v4673 = vshll.u32 2131351028, %v4664
    %v4674 = vshrl.u32 2102212464, %v4665
    %v4675 = vor.u32 %v4673, %v4674
    %v4676 = vshll.u32 2102212464, %v4664
    %v4677 = vshrl.u32 920167782, %v4665
    %v4678 = vor.u32 %v4676, %v4677
    %v4679 = vshll.u32 920167782, %v4664
    %v4680 = vshrl.u32 1326507024, %v4665
    %v4681 = vor.u32 %v4679, %v4680
    %vm4682 = vcmp.lt.s32.totalorder %v4663, 1
    %vm4683 = vcmp.lt.s32.totalorder %v4663, 2
    %vm4684 = vcmp.lt.s32.totalorder %v4663, 3
    %vm4685 = vcmp.lt.s32.totalorder %v4663, 4
    %v4686 = vsel %vm4682, %v4666, %v4669
    %v4687 = vsel %vm4685, %v4675, 2102212464
    %v4688 = vsel %vm4684, %v4672, %v4687
    %v4689 = vsel %vm4683, %v4686, %v4688
    %v4690 = vsel %vm4682, %v4669, %v4672
    %v4691 = vsel %vm4685, %v4678, 920167782
    %v4692 = vsel %vm4684, %v4675, %v4691
    %v4693 = vsel %vm4683, %v4690, %v4692
    %v4694 = vsel %vm4682, %v4672, %v4675
    %v4695 = vsel %vm4685, %v4681, 1326507024
    %v4696 = vsel %vm4684, %v4678, %v4695
    %v4697 = vsel %vm4683, %v4694, %v4696
    %v4698 = vshll.u32 %v4658, 8
    %v4699 = vmul.u32.u64.compose %v4698, %v4697
    %v4700 = vextract.low.u32 %v4699
    %v4701 = vextract.high.u32 %v4699
    %v4702 = vmul.u32.u64.compose %v4698, %v4693
    %v4703 = vextract.low.u32 %v4702
    %v4704 = vextract.high.u32 %v4702
    %v4705 = vmul.u32 %v4698, %v4689
    %v4706 = vadd.s32 %v4701, %v4703
    %vm4707 = vc.u32 %v4701, %v4703
    %v4708 = vadd.s32 %v4704, 1
    %v4709 = vsel %vm4707, %v4708, %v4704
    %v4710 = vadd.s32 %v4705, %v4709
    %v4711 = vadd.s32 %v4710, 536870912
    %v4712 = vshrl.u32 %v4711, 30
    %v4713 = vshll.u32 %v4712, 30
    %v4714 = vsub.s32 %v4710, %v4713
    %vm4715 = vcmp.lt.s32.totalorder %v4714, 0
    %v4716 = vsub.s32 0, %v4714
    %v4717 = vsel %vm4715, %v4716, %v4714
    %v4718 = vclz %v4717
    %v4719 = vsub.s32 %v4718, 2
    %vm4720 = vcmp.gt.s32.totalorder 0, %v4719
    %v4721 = vsel %vm4720, 0, %v4719
    %v4722 = vsub.s32 32, %v4721
    %v4723 = vshll.u32 %v4714, %v4721
    %v4724 = vshrl.u32 %v4706, %v4722
    %v4725 = vor.u32 %v4723, %v4724
    %v4726 = vsub.s32 4294967266, %v4721
    %v4727 = vadd.s32 %v4726, 127
    %v4728 = vshll.u32 %v4727, 23
    %v4729 = vor.u32 4788187, %v4728
    %v4730 = vand.u32 2147483647, %v4729
    %v4732 = vcvt.s32.f32 %v4725
    %v4733 = vmul.f32 %v4732, %v4730
    %v4734 = vxor.u32 %v4733, 2147483648
    %v4735 = vsel %vm4652, %v4734, %v4733
    %v4736 = vsub.s32 4, %v4712
    %v4737 = vsel %vm4652, %v4736, %v4712
    %v4738 = vsel %vm4651, %v4642, %v4735
    %v4739 = vsel %vm4651, 0, %v4737
    %v4740 = vcosq.f32.pop %v4738
    %v4741 = vsinq.f32.pop %v4738
    %vm4742 = vweird.f32 %v4642
    %v4743 = vadd.s32 %v4739, 3
    %v4744 = vand.u32 %v4743, 3
    %vm4745 = vcmp.lt.s32.totalorder %v4744, 2
    %vm4746 = vcmp.eq.s32.totalorder %v4744, 0
    %v4747 = vxor.u32 %v4741, 2147483648
    %v4748 = vsel %vm4746, %v4740, %v4747
    %vm4749 = vcmp.eq.s32.totalorder %v4744, 2
    %v4750 = vxor.u32 %v4740, 2147483648
    %v4751 = vsel %vm4749, %v4750, %v4741
    %v4752 = vsel %vm4745, %v4748, %v4751
    %v4753 = vsel %vm4742, nan, %v4752
    %v4754 = vand.u32 2147483647, %v4647
    %vm4755 = vcmp.le.f32.partialorder %v4754, 0.7853982
    %vm4756 = vcmp.lt.s32.totalorder %v4647, 0
    %v4757 = vand.u32 %v4647, 2139095040
    %v4758 = vshrl.u32 %v4757, 23
    %v4759 = vsub.s32 %v4758, 127
    %v4760 = vand.u32 2147483647, %v4647
    %v4761 = vand.u32 %v4760, 8388607
    %v4762 = vor.u32 %v4761, 8388608
    %v4763 = vsub.s32 0, %v4762
    %v4764 = vadd.s32 %v4759, 1
    %vm4765 = vcmp.gt.s32.totalorder %v4764, 0
    %v4766 = vsel %vm4765, %v4764, 0
    %v4767 = vshrl.u32 %v4766, 5
    %v4768 = vand.u32 %v4766, 31
    %v4769 = vsub.s32 32, %v4768
    %v4770 = vshrl.u32 683565275, %v4769
    %v4771 = vshll.u32 683565275, %v4768
    %v4772 = vshrl.u32 2475754826, %v4769
    %v4773 = vor.u32 %v4771, %v4772
    %v4774 = vshll.u32 2475754826, %v4768
    %v4775 = vshrl.u32 2131351028, %v4769
    %v4776 = vor.u32 %v4774, %v4775
    %v4777 = vshll.u32 2131351028, %v4768
    %v4778 = vshrl.u32 2102212464, %v4769
    %v4779 = vor.u32 %v4777, %v4778
    %v4780 = vshll.u32 2102212464, %v4768
    %v4781 = vshrl.u32 920167782, %v4769
    %v4782 = vor.u32 %v4780, %v4781
    %v4783 = vshll.u32 920167782, %v4768
    %v4784 = vshrl.u32 1326507024, %v4769
    %v4785 = vor.u32 %v4783, %v4784
    %vm4786 = vcmp.lt.s32.totalorder %v4767, 1
    %vm4787 = vcmp.lt.s32.totalorder %v4767, 2
    %vm4788 = vcmp.lt.s32.totalorder %v4767, 3
    %vm4789 = vcmp.lt.s32.totalorder %v4767, 4
    %v4790 = vsel %vm4786, %v4770, %v4773
    %v4791 = vsel %vm4789, %v4779, 2102212464
    %v4792 = vsel %vm4788, %v4776, %v4791
    %v4793 = vsel %vm4787, %v4790, %v4792
    %v4794 = vsel %vm4786, %v4773, %v4776
    %v4795 = vsel %vm4789, %v4782, 920167782
    %v4796 = vsel %vm4788, %v4779, %v4795
    %v4797 = vsel %vm4787, %v4794, %v4796
    %v4798 = vsel %vm4786, %v4776, %v4779
    %v4799 = vsel %vm4789, %v4785, 1326507024
    %v4800 = vsel %vm4788, %v4782, %v4799
    %v4801 = vsel %vm4787, %v4798, %v4800
    %v4802 = vshll.u32 %v4762, 8
    %v4803 = vmul.u32.u64.compose %v4802, %v4801
    %v4804 = vextract.low.u32 %v4803
    %v4805 = vextract.high.u32 %v4803
    %v4806 = vmul.u32.u64.compose %v4802, %v4797
    %v4807 = vextract.low.u32 %v4806
    %v4808 = vextract.high.u32 %v4806
    %v4809 = vmul.u32 %v4802, %v4793
    %v4810 = vadd.s32 %v4805, %v4807
    %vm4811 = vc.u32 %v4805, %v4807
    %v4812 = vadd.s32 %v4808, 1
    %v4813 = vsel %vm4811, %v4812, %v4808
    %v4814 = vadd.s32 %v4809, %v4813
    %v4815 = vadd.s32 %v4814, 536870912
    %v4816 = vshrl.u32 %v4815, 30
    %v4817 = vshll.u32 %v4816, 30
    %v4818 = vsub.s32 %v4814, %v4817
    %vm4819 = vcmp.lt.s32.totalorder %v4818, 0
    %v4820 = vsub.s32 0, %v4818
    %v4821 = vsel %vm4819, %v4820, %v4818
    %v4822 = vclz %v4821
    %v4823 = vsub.s32 %v4822, 2
    %vm4824 = vcmp.gt.s32.totalorder 0, %v4823
    %v4825 = vsel %vm4824, 0, %v4823
    %v4826 = vsub.s32 32, %v4825
    %v4827 = vshll.u32 %v4818, %v4825
    %v4828 = vshrl.u32 %v4810, %v4826
    %v4829 = vor.u32 %v4827, %v4828
    %v4830 = vsub.s32 4294967266, %v4825
    %v4831 = vadd.s32 %v4830, 127
    %v4832 = vshll.u32 %v4831, 23
    %v4833 = vor.u32 4788187, %v4832
    %v4834 = vand.u32 2147483647, %v4833
    %v4836 = vcvt.s32.f32 %v4829
    %v4837 = vmul.f32 %v4836, %v4834
    %v4838 = vxor.u32 %v4837, 2147483648
    %v4839 = vsel %vm4756, %v4838, %v4837
    %v4840 = vsub.s32 4, %v4816
    %v4841 = vsel %vm4756, %v4840, %v4816
    %v4842 = vsel %vm4755, %v4647, %v4839
    %v4843 = vsel %vm4755, 0, %v4841
    %v4844 = vcosq.f32.pop %v4842
    %v4845 = vsinq.f32.pop %v4842
    %vm4846 = vweird.f32 %v4647
    %v4847 = vadd.s32 %v4843, 3
    %v4848 = vand.u32 %v4847, 3
    %vm4849 = vcmp.lt.s32.totalorder %v4848, 2
    %vm4850 = vcmp.eq.s32.totalorder %v4848, 0
    %v4851 = vxor.u32 %v4845, 2147483648
    %v4852 = vsel %vm4850, %v4844, %v4851
    %vm4853 = vcmp.eq.s32.totalorder %v4848, 2
    %v4854 = vxor.u32 %v4844, 2147483648
    %v4855 = vsel %vm4853, %v4854, %v4845
    %v4856 = vsel %vm4849, %v4852, %v4855
    %v4857 = vsel %vm4846, nan, %v4856
    %v4858 = vld [vmem:[%s4] sm:$0xff]
    %v4859 = vld [vmem:[%s4 + $0x8] sm:$0xff]
    %4861 = vset.pattern.permute.xlu0 0
    %4862 = vperm.xlu0 %4861, %v4858
    %v4863 = vpop.permute.xlu0 %4862
    %4866 = vset.pattern.permute.xlu0 0
    %4867 = vperm.xlu0 %4866, %v4859
    %v4868 = vpop.permute.xlu0 %4867
    %v4870 = vmul.f32 %v4863, %v4753
    %v4871 = vmul.f32 %v4868, %v4857
    %v4872 = vadd.f32 %v4870, %v4871
    %v4873 = vrot.slane %v4872, 4
    %v4874 = vadd.f32 %v4872, %v4873
    %v4875 = vrot.slane %v4874, 2
    %v4876 = vadd.f32 %v4874, %v4875
    %v4877 = vrot.slane %v4876, 1
    %v4878 = vadd.f32 %v4876, %v4877
    %v4879 = vld [vmem:[#allocation2] sm:$0x1]
    %4881 = vset.pattern.permute.xlu0 0
    %4882 = vperm.xlu0 %4881, %v4879
    %v4883 = vpop.permute.xlu0 %4882
    %v4885 = vlaneseq
    %v4886 = vshrl.u32 %v4885, 7
    %v4887 = vsub.s32 0, %v4886
    %v4888 = vrot.slane %v4883, %v4887
    %v4889 = vadd.f32 %v4878, %v4888
    %4890 = vst [vmem:[#allocation6] sm:$0x1] %v4889
    // Predicated region
    $region38: #{tpu_custom_call.1} parent=1 // pred_check
      _
    $region39: #{tpu_custom_call.1} parent=1 // pred_check_branch
      %4892 = sbr.rel (0) target = $region41
    $region40: #{tpu_custom_call.1} parent=1 // pred_region
      %s4894 = ssub.s32 16, 16
      %4895 = vsyncadd [#allocation5], %s4894
      %s4897 = sshll.u32 [#allocation6], 4
      %s4898 = int_to_ptr.vmem [resolvable:$true] %s4897
      %4900 = dma.vmem_to_hbm [thread:$0]  %s4898, 16, %s8, [#allocation5]
    $region41: #{tpu_custom_call.1} parent=1 // pred_fallthru
      _
    // Predicated region
    $region42: #{tpu_custom_call.1} parent=1 // pred_check
      _
    $region43: #{tpu_custom_call.1} parent=1 // pred_check_branch
      %4902 = sbr.rel (0) target = $region45
    $region44: #{tpu_custom_call.1} parent=1 // pred_region
      %4903 = dma.done [#allocation5], 16
    $region45: #{tpu_custom_call.1} parent=1 // pred_fallthru
      _
    %4904 = vsyncpa [#allocation4], 1
    %4905 = vsyncpa [#allocation5], 1

</llo_original>
